<compile_context>
chip_gen: v5e
topology: v5e:2x2
jax: 0.10.0
libtpu: 0.0.40
codegen_flags: <defaults>
</compile_context>

<pallas_src>
import functools

import numpy as np
import jax
import jax.numpy as jnp
from jax.experimental import pallas as pl
from jax.experimental.pallas import tpu as pltpu


def _round_up(x, m):
    return (x + m - 1) // m * m


def _vpu_bf16_ok():
    # v6e / v7x VPUs handle bf16 natively; on v5e/v4 a bf16 elementwise path is widened
    # back to f32 and only adds cast passes, so keep the reduce in f32 there.
    try:
        kind = jax.devices()[0].device_kind.lower()
    except Exception:
        return False
    return ("v6" in kind) or ("v7" in kind)


# ----------------------------------------------------------------------------
# Kernel 1: per-point MLP (1x1 convs) + max-pool over points.
# ----------------------------------------------------------------------------
def _stn3d_pool_kernel(x_ref, w1, b1, w2, b2, w3, out_ref, *, conv3_dtype):
    n = pl.program_id(1)

    x = x_ref[0]                                                       # (T, 3) bf16
    h = jnp.dot(x, w1[...], preferred_element_type=jnp.float32) + b1[...]
    h = jnp.maximum(h, 0.0)
    h = jnp.dot(h.astype(jnp.bfloat16), w2[...],
                preferred_element_type=jnp.float32) + b2[...]
    h = jnp.maximum(h, 0.0)
    # conv3: bias + ReLU hoisted past the max-pool (applied once in the head kernel).
    h = jnp.dot(h.astype(jnp.bfloat16), w3[...],
                preferred_element_type=conv3_dtype)                    # (T, 1024)

    m = jnp.max(h, axis=0, keepdims=True).astype(out_ref.dtype)        # (1, 1024)

    @pl.when(n == 0)
    def _first():
        out_ref[0] = m

    @pl.when(n != 0)
    def _rest():
        out_ref[0] = jnp.maximum(out_ref[0], m)


# ----------------------------------------------------------------------------
# Kernel 2: combine partial maxes + hoisted conv3 bias/ReLU + fc head + identity.
# ----------------------------------------------------------------------------
def _stn3d_head_kernel(pooled_ref, b3, fw1, fb1, fw2, fb2, fw3, fb3, iden, out_ref):
    g = jnp.max(pooled_ref[...], axis=1)                               # (B, 1024)
    g = jnp.maximum(g + b3[...], 0.0)                                  # hoisted conv3 bias+ReLU
    g = jnp.maximum(jnp.dot(g.astype(jnp.bfloat16), fw1[...],
                            preferred_element_type=jnp.float32) + fb1[...], 0.0)
    g = jnp.maximum(jnp.dot(g.astype(jnp.bfloat16), fw2[...],
                            preferred_element_type=jnp.float32) + fb2[...], 0.0)
    g = jnp.dot(g.astype(jnp.bfloat16), fw3[...],
                preferred_element_type=jnp.float32) + fb3[...]
    out_ref[...] = g + iden[...]                                       # (B, 9)


# ----------------------------------------------------------------------------
# Wrapper
# ----------------------------------------------------------------------------
def stn3d_forward(x_bcn, params, *, max_tile_n=1024):
    """x_bcn: (B, 3, N) float32 (PyTorch NCW).  Returns (B, 3, 3) transform."""
    B, C, N = x_bcn.shape
    assert C == 3

    # Split the points axis 2-way when B == 1 so the "parallel" batch grid axis can feed
    # both TensorCores of a megacore; on single-core chips it is just the same total work.
    n_splits = 2 if B == 1 else 1
    Bv = B * n_splits

    tile_n = min(max_tile_n, _round_up(N, 8))
    n_per_split = _round_up(pl.cdiv(N, n_splits), tile_n)
    n_tiles = n_per_split // tile_n
    n_pad = n_splits * n_per_split

    # (B, 3, N) -> (B, N, 3); pad points by duplicating the last point (max-invariant, so no
    # in-kernel masking pass), cast to bf16 once, fold the split factor into the batch axis.
    x = jnp.transpose(x_bcn, (0, 2, 1)).astype(jnp.float32)
    if n_pad != N:
        x = jnp.pad(x, ((0, 0), (0, n_pad - N), (0, 0)), mode="edge")
    x = x.astype(jnp.bfloat16).reshape(Bv, n_per_split, 3)

    bf16 = jnp.bfloat16
    w1, b1 = params["conv1"]
    w2, b2 = params["conv2"]
    w3, b3 = params["conv3"]
    fw1, fb1 = params["fc1"]
    fw2, fb2 = params["fc2"]
    fw3, fb3 = params["fc3"]
    iden = jnp.array([1, 0, 0, 0, 1, 0, 0, 0, 1], jnp.float32).reshape(1, 9)

    conv3_dtype = jnp.bfloat16 if _vpu_bf16_ok() else jnp.float32

    def wspec(shape):  # resident weights: constant block index across the whole grid
        return pl.BlockSpec(shape, lambda b, n: (0,) * len(shape))

    # tile_n=1024 keeps the per-tile VMEM footprint ~6 MiB (under every generation's scoped
    # default, incl. v5e's 16 MiB); only raise the limit for larger experimental tiles.
    mosaic_kwargs = dict(dimension_semantics=("parallel", "arbitrary"))
    if tile_n > 1024:
        mosaic_kwargs["vmem_limit_bytes"] = 64 * 1024 * 1024

    pooled = pl.pallas_call(
        functools.partial(_stn3d_pool_kernel, conv3_dtype=conv3_dtype),
        out_shape=jax.ShapeDtypeStruct((Bv, 1, 1024), jnp.float32),
        grid=(Bv, n_tiles),
        in_specs=[pl.BlockSpec((1, tile_n, 3), lambda b, n: (b, n, 0)),
                  wspec(w1.shape), wspec(b1.shape),
                  wspec(w2.shape), wspec(b2.shape),
                  wspec(w3.shape)],
        out_specs=pl.BlockSpec((1, 1, 1024), lambda b, n: (b, 0, 0)),
        compiler_params=pltpu.CompilerParams(**mosaic_kwargs),
    )(x, w1.astype(bf16), b1, w2.astype(bf16), b2, w3.astype(bf16))

    pooled = pooled.reshape(B, n_splits, 1024)

    def hspec(shape):  # one-shot full-array blocks for the tiny head kernel
        return pl.BlockSpec(shape, lambda i: (0,) * len(shape))

    out = pl.pallas_call(
        _stn3d_head_kernel,
        out_shape=jax.ShapeDtypeStruct((B, 9), jnp.float32),
        grid=(1,),
        in_specs=[hspec(pooled.shape), hspec(b3.shape),
                  hspec(fw1.shape), hspec(fb1.shape),
                  hspec(fw2.shape), hspec(fb2.shape),
                  hspec(fw3.shape), hspec(fb3.shape),
                  hspec(iden.shape)],
        out_specs=hspec((B, 9)),
        compiler_params=pltpu.CompilerParams(dimension_semantics=("arbitrary",)),
    )(pooled, b3, fw1.astype(bf16), fb1, fw2.astype(bf16), fb2,
      fw3.astype(bf16), fb3, iden)

    return out.reshape(B, 3, 3)


# ----------------------------------------------------------------------------
# Parameters (deterministic, PyTorch-default-like uniform init).
# W stored as (Cin, Cout) == torch Conv1d weight[:, :, 0].T / Linear weight.T
# ----------------------------------------------------------------------------
def _init_linear(key, cin, cout):
    kw, kb = jax.random.split(key)
    bound = 1.0 / np.sqrt(cin)
    w = jax.random.uniform(kw, (cin, cout), jnp.float32, -bound, bound)
    b = jax.random.uniform(kb, (1, cout), jnp.float32, -bound, bound)
    return w, b


def init_params(key):
    ks = iter(jax.random.split(key, 6))
    lin = lambda cin, cout: _init_linear(next(ks), cin, cout)
    return {"conv1": lin(3, 64), "conv2": lin(64, 128), "conv3": lin(128, 1024),
            "fc1": lin(1024, 512), "fc2": lin(512, 256), "fc3": lin(256, 9)}


# ----------------------------------------------------------------------------
# Pure-JAX references.
#   use_bf16=True + round_conv3 matching the kernel -> tight check.
#   use_bf16=False -> full-precision sanity check.
# ----------------------------------------------------------------------------
def ref_stn3d(x_bcn, params, *, use_bf16, round_conv3=False):
    B, _, N = x_bcn.shape
    x = jnp.transpose(x_bcn, (0, 2, 1)).astype(jnp.float32)

    def mm(a, w):
        if use_bf16:
            return jnp.dot(a.astype(jnp.bfloat16), w.astype(jnp.bfloat16),
                           preferred_element_type=jnp.float32)
        return jnp.dot(a, w, preferred_element_type=jnp.float32)

    h = jnp.maximum(mm(x, params["conv1"][0]) + params["conv1"][1], 0.0)
    h = jnp.maximum(mm(h, params["conv2"][0]) + params["conv2"][1], 0.0)
    z = mm(h, params["conv3"][0])
    if round_conv3:
        z = z.astype(jnp.bfloat16).astype(jnp.float32)
    h = jnp.maximum(z + params["conv3"][1], 0.0)
    feat = jnp.max(h, axis=1)                                            # (B, 1024)
    g = jnp.maximum(mm(feat, params["fc1"][0]) + params["fc1"][1], 0.0)
    g = jnp.maximum(mm(g, params["fc2"][0]) + params["fc2"][1], 0.0)
    g = mm(g, params["fc3"][0]) + params["fc3"][1]
    iden = jnp.array([1, 0, 0, 0, 1, 0, 0, 0, 1], jnp.float32)
    return (g + iden).reshape(B, 3, 3)


if __name__ == "__main__":
    key = jax.random.PRNGKey(0)
    kp, kx1, kx2 = jax.random.split(key, 3)
    params = init_params(kp)
    round_conv3 = _vpu_bf16_ok()   # mirror the kernel's conv3-output dtype in the reference

    fwd = jax.jit(stn3d_forward)

    # Case 1: B=2, tile-aligned N (PyTorch NCW input: (batch, 3, n_points)).
    x1 = jax.random.normal(kx1, (2, 3, 16), jnp.float32)
    t1 = fwd(x1, params)
    jax.block_until_ready(t1)
    assert t1.shape == (2, 3, 3)
    np.testing.assert_allclose(
        np.asarray(t1),
        np.asarray(ref_stn3d(x1, params, use_bf16=True, round_conv3=round_conv3)),
        rtol=5e-3, atol=5e-3)
    np.testing.assert_allclose(
        np.asarray(t1), np.asarray(ref_stn3d(x1, params, use_bf16=False)),
        rtol=5e-2, atol=5e-2)

    # Case 2: B=1 with non-aligned N (exercises edge-padding + 2-way point split).
    x2 = jax.random.normal(kx2, (1, 3, 20), jnp.float32)
    t2 = fwd(x2, params)
    jax.block_until_ready(t2)
    assert t2.shape == (1, 3, 3)
    np.testing.assert_allclose(
        np.asarray(t2),
        np.asarray(ref_stn3d(x2, params, use_bf16=True, round_conv3=round_conv3)),
        rtol=5e-3, atol=5e-3)
    np.testing.assert_allclose(
        np.asarray(t2), np.asarray(ref_stn3d(x2, params, use_bf16=False)),
        rtol=5e-2, atol=5e-2)

    print("KERNEL_OK")
</pallas_src>

<mosaic_0001>
module attributes {stable_mosaic.version = 11 : i64} {
  func.func @_stn3d_pool_kernel(%arg0: i32, %arg1: i32, %arg2: memref<1x16x3xbf16, #tpu.memory_space<vmem>>, %arg3: memref<3x64xbf16, #tpu.memory_space<vmem>>, %arg4: memref<1x64xf32, #tpu.memory_space<vmem>>, %arg5: memref<64x128xbf16, #tpu.memory_space<vmem>>, %arg6: memref<1x128xf32, #tpu.memory_space<vmem>>, %arg7: memref<128x1024xbf16, #tpu.memory_space<vmem>>, %arg8: memref<1x1x1024xf32, #tpu.memory_space<vmem>>) attributes {dimension_semantics = [#tpu.dimension_semantics<parallel>, #tpu.dimension_semantics<arbitrary>], iteration_bounds = array<i64: 2, 1>, scalar_prefetch = 0 : i64, scratch_operands = 0 : i64, tpu.core_type = #tpu.core_type<tc>, window_params = [{transform_indices = @transform_0, window_bounds = array<i64: 1, 16, 3>}, {pipeline_mode = #tpu.pipeline_mode<synchronous>, transform_indices = @transform_1, window_bounds = array<i64: 3, 64>}, {pipeline_mode = #tpu.pipeline_mode<synchronous>, transform_indices = @transform_2, window_bounds = array<i64: 1, 64>}, {pipeline_mode = #tpu.pipeline_mode<synchronous>, transform_indices = @transform_3, window_bounds = array<i64: 64, 128>}, {pipeline_mode = #tpu.pipeline_mode<synchronous>, transform_indices = @transform_4, window_bounds = array<i64: 1, 128>}, {pipeline_mode = #tpu.pipeline_mode<synchronous>, transform_indices = @transform_5, window_bounds = array<i64: 128, 1024>}, {transform_indices = @transform_6, window_bounds = array<i64: 1, 1, 1024>}]} {
    %c0 = arith.constant 0 : index
    %c0_0 = arith.constant 0 : index
    %c0_1 = arith.constant 0 : index
    %0 = vector.load %arg2[%c0, %c0_0, %c0_1] : memref<1x16x3xbf16, #tpu.memory_space<vmem>>, vector<1x16x3xbf16>
    %1 = vector.shape_cast %0 : vector<1x16x3xbf16> to vector<16x3xbf16>
    %c0_2 = arith.constant 0 : index
    %c0_3 = arith.constant 0 : index
    %2 = vector.load %arg3[%c0_2, %c0_3] : memref<3x64xbf16, #tpu.memory_space<vmem>>, vector<3x64xbf16>
    %cst = arith.constant dense<0.000000e+00> : vector<16x64xf32>
    %3 = tpu.matmul %1, %2, %cst {dimension_numbers = #tpu.dot_dimension_numbers<[1], [0], [0], [1], [0, 0, 1, 1], [], []>} : vector<16x3xbf16>, vector<3x64xbf16>, vector<16x64xf32> -> vector<16x64xf32>
    %c0_4 = arith.constant 0 : index
    %c0_5 = arith.constant 0 : index
    %4 = vector.load %arg4[%c0_4, %c0_5] : memref<1x64xf32, #tpu.memory_space<vmem>>, vector<1x64xf32>
    %5 = vector.broadcast %4 : vector<1x64xf32> to vector<16x64xf32>
    %6 = arith.addf %3, %5 : vector<16x64xf32>
    %cst_6 = arith.constant 0.000000e+00 : f32
    %7 = vector.broadcast %cst_6 : f32 to vector<16x64xf32>
    %8 = arith.maximumf %6, %7 : vector<16x64xf32>
    %9 = arith.truncf %8 : vector<16x64xf32> to vector<16x64xbf16>
    %c0_7 = arith.constant 0 : index
    %c0_8 = arith.constant 0 : index
    %10 = vector.load %arg5[%c0_7, %c0_8] : memref<64x128xbf16, #tpu.memory_space<vmem>>, vector<64x128xbf16>
    %cst_9 = arith.constant dense<0.000000e+00> : vector<16x128xf32>
    %11 = tpu.matmul %9, %10, %cst_9 {dimension_numbers = #tpu.dot_dimension_numbers<[1], [0], [0], [1], [0, 0, 1, 1], [], []>} : vector<16x64xbf16>, vector<64x128xbf16>, vector<16x128xf32> -> vector<16x128xf32>
    %c0_10 = arith.constant 0 : index
    %c0_11 = arith.constant 0 : index
    %12 = vector.load %arg6[%c0_10, %c0_11] : memref<1x128xf32, #tpu.memory_space<vmem>>, vector<1x128xf32>
    %13 = vector.broadcast %12 : vector<1x128xf32> to vector<16x128xf32>
    %14 = arith.addf %11, %13 : vector<16x128xf32>
    %cst_12 = arith.constant 0.000000e+00 : f32
    %15 = vector.broadcast %cst_12 : f32 to vector<16x128xf32>
    %16 = arith.maximumf %14, %15 : vector<16x128xf32>
    %17 = arith.truncf %16 : vector<16x128xf32> to vector<16x128xbf16>
    %c0_13 = arith.constant 0 : index
    %c0_14 = arith.constant 0 : index
    %18 = vector.load %arg7[%c0_13, %c0_14] : memref<128x1024xbf16, #tpu.memory_space<vmem>>, vector<128x1024xbf16>
    %cst_15 = arith.constant dense<0.000000e+00> : vector<16x1024xf32>
    %19 = tpu.matmul %17, %18, %cst_15 {dimension_numbers = #tpu.dot_dimension_numbers<[1], [0], [0], [1], [0, 0, 1, 1], [], []>} : vector<16x128xbf16>, vector<128x1024xbf16>, vector<16x1024xf32> -> vector<16x1024xf32>
    %cst_16 = arith.constant dense<0xFF800000> : vector<1024xf32>
    %20 = vector.multi_reduction <maximumf>, %19, %cst_16 [0] : vector<16x1024xf32> to vector<1024xf32>
    %21 = vector.shape_cast %20 : vector<1024xf32> to vector<1x1024xf32>
    %c0_i32 = arith.constant 0 : i32
    %22 = arith.cmpi eq, %arg1, %c0_i32 : i32
    %23 = arith.extui %22 : i1 to i32
    %c0_i32_17 = arith.constant 0 : i32
    %24 = arith.cmpi ne, %23, %c0_i32_17 : i32
    scf.if %24 {
      %c0_20 = arith.constant 0 : index
      %c0_21 = arith.constant 0 : index
      %c0_22 = arith.constant 0 : index
      %28 = vector.load %arg8[%c0_20, %c0_21, %c0_22] : memref<1x1x1024xf32, #tpu.memory_space<vmem>>, vector<1x1x1024xf32>
      %29 = vector.shape_cast %28 : vector<1x1x1024xf32> to vector<1x1024xf32>
      %30 = vector.shape_cast %21 : vector<1x1024xf32> to vector<1x1x1024xf32>
      tpu.vector_store %arg8[%c0_20, %c0_21, %c0_22], %30 {strides = array<i32>} : memref<1x1x1024xf32, #tpu.memory_space<vmem>>, vector<1x1x1024xf32>,
    } else {
    }
    %c0_i32_18 = arith.constant 0 : i32
    %25 = arith.cmpi ne, %arg1, %c0_i32_18 : i32
    %26 = arith.extui %25 : i1 to i32
    %c0_i32_19 = arith.constant 0 : i32
    %27 = arith.cmpi ne, %26, %c0_i32_19 : i32
    scf.if %27 {
      %c0_20 = arith.constant 0 : index
      %c0_21 = arith.constant 0 : index
      %c0_22 = arith.constant 0 : index
      %28 = vector.load %arg8[%c0_20, %c0_21, %c0_22] : memref<1x1x1024xf32, #tpu.memory_space<vmem>>, vector<1x1x1024xf32>
      %29 = vector.shape_cast %28 : vector<1x1x1024xf32> to vector<1x1024xf32>
      %30 = arith.maximumf %29, %21 : vector<1x1024xf32>
      %c0_23 = arith.constant 0 : index
      %c0_24 = arith.constant 0 : index
      %c0_25 = arith.constant 0 : index
      %31 = vector.load %arg8[%c0_23, %c0_24, %c0_25] : memref<1x1x1024xf32, #tpu.memory_space<vmem>>, vector<1x1x1024xf32>
      %32 = vector.shape_cast %31 : vector<1x1x1024xf32> to vector<1x1024xf32>
      %33 = vector.shape_cast %30 : vector<1x1024xf32> to vector<1x1x1024xf32>
      tpu.vector_store %arg8[%c0_23, %c0_24, %c0_25], %33 {strides = array<i32>} : memref<1x1x1024xf32, #tpu.memory_space<vmem>>, vector<1x1x1024xf32>,
    } else {
    }
    return
  }
  func.func @transform_0(%arg0: i32, %arg1: i32) -> (i32, i32, i32) {
    %c0_i32 = arith.constant 0 : i32
    %c0_i32_0 = arith.constant 0 : i32
    return %arg0, %arg1, %c0_i32 : i32, i32, i32
  }
  func.func @transform_1(%arg0: i32, %arg1: i32) -> (i32, i32) {
    %c0_i32 = arith.constant 0 : i32
    %c0_i32_0 = arith.constant 0 : i32
    %c0_i32_1 = arith.constant 0 : i32
    return %c0_i32, %c0_i32_0 : i32, i32
  }
  func.func @transform_2(%arg0: i32, %arg1: i32) -> (i32, i32) {
    %c0_i32 = arith.constant 0 : i32
    %c0_i32_0 = arith.constant 0 : i32
    %c0_i32_1 = arith.constant 0 : i32
    return %c0_i32, %c0_i32_0 : i32, i32
  }
  func.func @transform_3(%arg0: i32, %arg1: i32) -> (i32, i32) {
    %c0_i32 = arith.constant 0 : i32
    %c0_i32_0 = arith.constant 0 : i32
    %c0_i32_1 = arith.constant 0 : i32
    return %c0_i32, %c0_i32_0 : i32, i32
  }
  func.func @transform_4(%arg0: i32, %arg1: i32) -> (i32, i32) {
    %c0_i32 = arith.constant 0 : i32
    %c0_i32_0 = arith.constant 0 : i32
    %c0_i32_1 = arith.constant 0 : i32
    return %c0_i32, %c0_i32_0 : i32, i32
  }
  func.func @transform_5(%arg0: i32, %arg1: i32) -> (i32, i32) {
    %c0_i32 = arith.constant 0 : i32
    %c0_i32_0 = arith.constant 0 : i32
    %c0_i32_1 = arith.constant 0 : i32
    return %c0_i32, %c0_i32_0 : i32, i32
  }
  func.func @transform_6(%arg0: i32, %arg1: i32) -> (i32, i32, i32) {
    %c0_i32 = arith.constant 0 : i32
    %c0_i32_0 = arith.constant 0 : i32
    %c0_i32_1 = arith.constant 0 : i32
    return %arg0, %c0_i32, %c0_i32_0 : i32, i32, i32
  }
}

module attributes {stable_mosaic.version = 11 : i64} {
  func.func @_stn3d_head_kernel(%arg0: i32, %arg1: memref<2x1x1024xf32, #tpu.memory_space<vmem>>, %arg2: memref<1x1024xf32, #tpu.memory_space<vmem>>, %arg3: memref<1024x512xbf16, #tpu.memory_space<vmem>>, %arg4: memref<1x512xf32, #tpu.memory_space<vmem>>, %arg5: memref<512x256xbf16, #tpu.memory_space<vmem>>, %arg6: memref<1x256xf32, #tpu.memory_space<vmem>>, %arg7: memref<256x9xbf16, #tpu.memory_space<vmem>>, %arg8: memref<1x9xf32, #tpu.memory_space<vmem>>, %arg9: memref<1x9xf32, #tpu.memory_space<vmem>>, %arg10: memref<2x9xf32, #tpu.memory_space<vmem>>) attributes {dimension_semantics = [#tpu.dimension_semantics<arbitrary>], iteration_bounds = array<i64: 1>, scalar_prefetch = 0 : i64, scratch_operands = 0 : i64, tpu.core_type = #tpu.core_type<tc>, window_params = [{pipeline_mode = #tpu.pipeline_mode<synchronous>, transform_indices = @transform_0, window_bounds = array<i64: 2, 1, 1024>}, {pipeline_mode = #tpu.pipeline_mode<synchronous>, transform_indices = @transform_1, window_bounds = array<i64: 1, 1024>}, {pipeline_mode = #tpu.pipeline_mode<synchronous>, transform_indices = @transform_2, window_bounds = array<i64: 1024, 512>}, {pipeline_mode = #tpu.pipeline_mode<synchronous>, transform_indices = @transform_3, window_bounds = array<i64: 1, 512>}, {pipeline_mode = #tpu.pipeline_mode<synchronous>, transform_indices = @transform_4, window_bounds = array<i64: 512, 256>}, {pipeline_mode = #tpu.pipeline_mode<synchronous>, transform_indices = @transform_5, window_bounds = array<i64: 1, 256>}, {pipeline_mode = #tpu.pipeline_mode<synchronous>, transform_indices = @transform_6, window_bounds = array<i64: 256, 9>}, {pipeline_mode = #tpu.pipeline_mode<synchronous>, transform_indices = @transform_7, window_bounds = array<i64: 1, 9>}, {pipeline_mode = #tpu.pipeline_mode<synchronous>, transform_indices = @transform_8, window_bounds = array<i64: 1, 9>}, {pipeline_mode = #tpu.pipeline_mode<synchronous>, transform_indices = @transform_9, window_bounds = array<i64: 2, 9>}]} {
    %c0 = arith.constant 0 : index
    %c0_0 = arith.constant 0 : index
    %c0_1 = arith.constant 0 : index
    %0 = vector.load %arg1[%c0, %c0_0, %c0_1] : memref<2x1x1024xf32, #tpu.memory_space<vmem>>, vector<2x1x1024xf32>
    %cst = arith.constant dense<0xFF800000> : vector<2x1024xf32>
    %1 = vector.multi_reduction <maximumf>, %0, %cst [1] : vector<2x1x1024xf32> to vector<2x1024xf32>
    %c0_2 = arith.constant 0 : index
    %c0_3 = arith.constant 0 : index
    %2 = vector.load %arg2[%c0_2, %c0_3] : memref<1x1024xf32, #tpu.memory_space<vmem>>, vector<1x1024xf32>
    %3 = vector.broadcast %2 : vector<1x1024xf32> to vector<2x1024xf32>
    %4 = arith.addf %1, %3 : vector<2x1024xf32>
    %cst_4 = arith.constant 0.000000e+00 : f32
    %5 = vector.broadcast %cst_4 : f32 to vector<2x1024xf32>
    %6 = arith.maximumf %4, %5 : vector<2x1024xf32>
    %7 = arith.truncf %6 : vector<2x1024xf32> to vector<2x1024xbf16>
    %c0_5 = arith.constant 0 : index
    %c0_6 = arith.constant 0 : index
    %8 = vector.load %arg3[%c0_5, %c0_6] : memref<1024x512xbf16, #tpu.memory_space<vmem>>, vector<1024x512xbf16>
    %cst_7 = arith.constant dense<0.000000e+00> : vector<2x512xf32>
    %9 = tpu.matmul %7, %8, %cst_7 {dimension_numbers = #tpu.dot_dimension_numbers<[1], [0], [0], [1], [0, 0, 1, 1], [], []>} : vector<2x1024xbf16>, vector<1024x512xbf16>, vector<2x512xf32> -> vector<2x512xf32>
    %c0_8 = arith.constant 0 : index
    %c0_9 = arith.constant 0 : index
    %10 = vector.load %arg4[%c0_8, %c0_9] : memref<1x512xf32, #tpu.memory_space<vmem>>, vector<1x512xf32>
    %11 = vector.broadcast %10 : vector<1x512xf32> to vector<2x512xf32>
    %12 = arith.addf %9, %11 : vector<2x512xf32>
    %cst_10 = arith.constant 0.000000e+00 : f32
    %13 = vector.broadcast %cst_10 : f32 to vector<2x512xf32>
    %14 = arith.maximumf %12, %13 : vector<2x512xf32>
    %15 = arith.truncf %14 : vector<2x512xf32> to vector<2x512xbf16>
    %c0_11 = arith.constant 0 : index
    %c0_12 = arith.constant 0 : index
    %16 = vector.load %arg5[%c0_11, %c0_12] : memref<512x256xbf16, #tpu.memory_space<vmem>>, vector<512x256xbf16>
    %cst_13 = arith.constant dense<0.000000e+00> : vector<2x256xf32>
    %17 = tpu.matmul %15, %16, %cst_13 {dimension_numbers = #tpu.dot_dimension_numbers<[1], [0], [0], [1], [0, 0, 1, 1], [], []>} : vector<2x512xbf16>, vector<512x256xbf16>, vector<2x256xf32> -> vector<2x256xf32>
    %c0_14 = arith.constant 0 : index
    %c0_15 = arith.constant 0 : index
    %18 = vector.load %arg6[%c0_14, %c0_15] : memref<1x256xf32, #tpu.memory_space<vmem>>, vector<1x256xf32>
    %19 = vector.broadcast %18 : vector<1x256xf32> to vector<2x256xf32>
    %20 = arith.addf %17, %19 : vector<2x256xf32>
    %cst_16 = arith.constant 0.000000e+00 : f32
    %21 = vector.broadcast %cst_16 : f32 to vector<2x256xf32>
    %22 = arith.maximumf %20, %21 : vector<2x256xf32>
    %23 = arith.truncf %22 : vector<2x256xf32> to vector<2x256xbf16>
    %c0_17 = arith.constant 0 : index
    %c0_18 = arith.constant 0 : index
    %24 = vector.load %arg7[%c0_17, %c0_18] : memref<256x9xbf16, #tpu.memory_space<vmem>>, vector<256x9xbf16>
    %cst_19 = arith.constant dense<0.000000e+00> : vector<2x9xf32>
    %25 = tpu.matmul %23, %24, %cst_19 {dimension_numbers = #tpu.dot_dimension_numbers<[1], [0], [0], [1], [0, 0, 1, 1], [], []>} : vector<2x256xbf16>, vector<256x9xbf16>, vector<2x9xf32> -> vector<2x9xf32>
    %c0_20 = arith.constant 0 : index
    %c0_21 = arith.constant 0 : index
    %26 = vector.load %arg8[%c0_20, %c0_21] : memref<1x9xf32, #tpu.memory_space<vmem>>, vector<1x9xf32>
    %27 = vector.broadcast %26 : vector<1x9xf32> to vector<2x9xf32>
    %28 = arith.addf %25, %27 : vector<2x9xf32>
    %c0_22 = arith.constant 0 : index
    %c0_23 = arith.constant 0 : index
    %29 = vector.load %arg9[%c0_22, %c0_23] : memref<1x9xf32, #tpu.memory_space<vmem>>, vector<1x9xf32>
    %30 = vector.broadcast %29 : vector<1x9xf32> to vector<2x9xf32>
    %31 = arith.addf %28, %30 : vector<2x9xf32>
    %c0_24 = arith.constant 0 : index
    %c0_25 = arith.constant 0 : index
    %32 = vector.load %arg10[%c0_24, %c0_25] : memref<2x9xf32, #tpu.memory_space<vmem>>, vector<2x9xf32>
    tpu.vector_store %arg10[%c0_24, %c0_25], %31 {strides = array<i32>} : memref<2x9xf32, #tpu.memory_space<vmem>>, vector<2x9xf32>,
    return
  }
  func.func @transform_0(%arg0: i32) -> (i32, i32, i32) {
    %c0_i32 = arith.constant 0 : i32
    %c0_i32_0 = arith.constant 0 : i32
    %c0_i32_1 = arith.constant 0 : i32
    %c0_i32_2 = arith.constant 0 : i32
    return %c0_i32, %c0_i32_0, %c0_i32_1 : i32, i32, i32
  }
  func.func @transform_1(%arg0: i32) -> (i32, i32) {
    %c0_i32 = arith.constant 0 : i32
    %c0_i32_0 = arith.constant 0 : i32
    %c0_i32_1 = arith.constant 0 : i32
    return %c0_i32, %c0_i32_0 : i32, i32
  }
  func.func @transform_2(%arg0: i32) -> (i32, i32) {
    %c0_i32 = arith.constant 0 : i32
    %c0_i32_0 = arith.constant 0 : i32
    %c0_i32_1 = arith.constant 0 : i32
    return %c0_i32, %c0_i32_0 : i32, i32
  }
  func.func @transform_3(%arg0: i32) -> (i32, i32) {
    %c0_i32 = arith.constant 0 : i32
    %c0_i32_0 = arith.constant 0 : i32
    %c0_i32_1 = arith.constant 0 : i32
    return %c0_i32, %c0_i32_0 : i32, i32
  }
  func.func @transform_4(%arg0: i32) -> (i32, i32) {
    %c0_i32 = arith.constant 0 : i32
    %c0_i32_0 = arith.constant 0 : i32
    %c0_i32_1 = arith.constant 0 : i32
    return %c0_i32, %c0_i32_0 : i32, i32
  }
  func.func @transform_5(%arg0: i32) -> (i32, i32) {
    %c0_i32 = arith.constant 0 : i32
    %c0_i32_0 = arith.constant 0 : i32
    %c0_i32_1 = arith.constant 0 : i32
    return %c0_i32, %c0_i32_0 : i32, i32
  }
  func.func @transform_6(%arg0: i32) -> (i32, i32) {
    %c0_i32 = arith.constant 0 : i32
    %c0_i32_0 = arith.constant 0 : i32
    %c0_i32_1 = arith.constant 0 : i32
    return %c0_i32, %c0_i32_0 : i32, i32
  }
  func.func @transform_7(%arg0: i32) -> (i32, i32) {
    %c0_i32 = arith.constant 0 : i32
    %c0_i32_0 = arith.constant 0 : i32
    %c0_i32_1 = arith.constant 0 : i32
    return %c0_i32, %c0_i32_0 : i32, i32
  }
  func.func @transform_8(%arg0: i32) -> (i32, i32) {
    %c0_i32 = arith.constant 0 : i32
    %c0_i32_0 = arith.constant 0 : i32
    %c0_i32_1 = arith.constant 0 : i32
    return %c0_i32, %c0_i32_0 : i32, i32
  }
  func.func @transform_9(%arg0: i32) -> (i32, i32) {
    %c0_i32 = arith.constant 0 : i32
    %c0_i32_0 = arith.constant 0 : i32
    %c0_i32_1 = arith.constant 0 : i32
    return %c0_i32, %c0_i32_0 : i32, i32
  }
}

</mosaic_0001>

<llo_original>
// kernel: stn3d_forward.2
$region0: #{stn3d_forward.2}
  #allocation0 [shape = 'u32[]', space=smem, size = 0x4, offset = 0x4, fixed_abs, tag = 'smem constant byte address 0x4 - core index']
  #allocation1 [shape = 'u32[72,128]{1,0:T(1,128)}', space=vmem, size = 0x9000, scoped, tag = 'internal scratch']
  %s0 = inlined_call_operand.vmem [shape: bf16[2,16,3], index: 0, kind: input, shape index: {}]
  %s1 = inlined_call_operand.vmem [shape: bf16[3,64], index: 1, kind: input, shape index: {}]
  %s2 = inlined_call_operand.hbm [shape: f32[1,64], index: 2, kind: input, shape index: {}]
  %s3 = inlined_call_operand.vmem [shape: bf16[64,128], index: 3, kind: input, shape index: {}]
  %s4 = inlined_call_operand.hbm [shape: f32[1,128], index: 4, kind: input, shape index: {}]
  %s5 = inlined_call_operand.vmem [shape: bf16[128,1024], index: 5, kind: input, shape index: {}]
  %s6 = inlined_call_operand.vmem [shape: f32[2,1,1024], index: 6, kind: output, shape index: {}]
  %s7 = sld [smem:[#allocation0]]
  $region73: #{stn3d_forward.2} parent=0
    _
  %s9 = ssub.s32 1, %s7
  %s10 = scalar_select 0, %s9, %s7
  $region1: #{stn3d_forward.2} parent=0
    #allocation2 [shape = 'u8[512]{0}', space=vmem, size = 0x400, scoped, tag = 'input window, operand 2, single buffered']
    #allocation3 [shape = 's32[2]{0}', space=sflag, size = 0x8, scoped, tag = 'scoped memory for stn3d_forward.2']
    #allocation4 [shape = 'u8[512]{0}', space=vmem, size = 0x400, scoped, tag = 'input window, operand 4, single buffered']
    #allocation5 [shape = 's32[1]{0}', space=sflag, size = 0x4, scoped, tag = 'scoped memory for stn3d_forward.2']
    %11 = vsyncpa [#allocation3], 0
    %12 = vsyncpa [#allocation5], 0
    loop: start=0, step=1, limit=4
    $region2: #{stn3d_forward.2} parent=1 // loop_pre_header
      _
    $region3: #{stn3d_forward.2} parent=1 // loop_header
      %s14 = sphi 0, %s18
      %p15 = scmp.ge.s32.totalorder %s14, 4
      %s21 = sphi 0, %s33
      %s22 = sphi 0, %s29
      %s23 = sphi 0, %s21
      %s24 = sphi 0, %s22
      %s25 = sphi 0, %s23
      %s26 = sphi 0, %s24
      %s38 = sphi 0, %s40
      %s41 = sphi 0, %s38
      %s42 = sphi 0, %s41
      %s58 = sphi 0, %s42
      %s62 = sphi 0, %s62
      %s64 = sphi 0, %s62
      %s65 = sphi 0, %s64
      %s79 = sphi 0, %s65
      %s83 = sphi 0, %s83
      %s85 = sphi 0, %s83
      %s86 = sphi 0, %s85
      %s100 = sphi 0, %s86
      %s104 = sphi 0, %s104
      %s106 = sphi 0, %s104
      %s107 = sphi 0, %s106
      %s121 = sphi 0, %s107
      %s125 = sphi 0, %s125
      %s127 = sphi 0, %s125
      %s128 = sphi 0, %s127
      %s142 = sphi 0, %s128
      %s146 = sphi 0, %s146
      %s148 = sphi 0, %s146
      %s149 = sphi 0, %s148
      %s163 = sphi 0, %s149
      %s169 = sphi 0, %s171
      %s172 = sphi 0, %s169
      %s173 = sphi 0, %s172
      %s189 = sphi 0, %s173
    $region4: #{stn3d_forward.2} parent=1 // loop_header_branch
      %17 = sbr.rel (%p15) target = $region8
    $region5: #{stn3d_forward.2} parent=1 // loop_body
      %s19 = ssub.s32 %s14, 1
      %s20 = ssub.s32 %s14, 2
      %s27 = sadd.s32 1, %s22
      %p28 = scmp.ge.s32.totalorder %s27, 1
      %s29 = scalar_select %p28, 0, %s27
      %s30 = sadd.s32 1, %s21
      %s31 = scalar_select %p28, %s30, %s21
      %p32 = scmp.ge.s32.totalorder %s31, 2
      %s33 = scalar_select %p32, 0, %s31
      %s34 = ssub.s32 %s21, %s33
      %s35 = ssub.s32 %s22, %s29
      %s36 = sor.u32 %s34, %s35
      %p37 = scmp.eq.s32.totalorder %s36, 0
      %s39 = sadd.s32 %s38, 1
      %s40 = scalar_select %p37, %s38, %s39
      %p43 = pneg %p37
      %p44 = scmp.eq.s32.totalorder %s14, 1
      %p45 = por %p43, %p44
      %p46 = scmp.ne.s32.totalorder %s38, %s41
      %p47 = scmp.eq.s32.totalorder %s14, 0
      %p48 = por %p46, %p47
      %p49 = scmp.ne.s32.totalorder %s38, %s41
      %p50 = scmp.eq.s32.totalorder %s19, 1
      %p51 = por %p49, %p50
      %p52 = scmp.ne.s32.totalorder %s41, %s42
      %p53 = scmp.eq.s32.totalorder %s19, 0
      %p54 = por %p52, %p53
      %p55 = scmp.ne.s32.totalorder %s41, %s42
      %p56 = scmp.eq.s32.totalorder %s20, 1
      %p57 = por %p55, %p56
      %p59 = scmp.ne.s32.totalorder %s42, %s58
      %p60 = scmp.eq.s32.totalorder %s20, 0
      %p61 = por %p59, %p60
      %s63 = sadd.s32 %s62, 1
      %p66 = scmp.eq.s32.totalorder %s14, 1
      %p67 = scmp.ne.s32.totalorder %s62, %s64
      %p68 = scmp.eq.s32.totalorder %s14, 0
      %p69 = por %p67, %p68
      %p70 = scmp.ne.s32.totalorder %s62, %s64
      %p71 = scmp.eq.s32.totalorder %s19, 1
      %p72 = por %p70, %p71
      %p73 = scmp.ne.s32.totalorder %s64, %s65
      %p74 = scmp.eq.s32.totalorder %s19, 0
      %p75 = por %p73, %p74
      %p76 = scmp.ne.s32.totalorder %s64, %s65
      %p77 = scmp.eq.s32.totalorder %s20, 1
      %p78 = por %p76, %p77
      %p80 = scmp.ne.s32.totalorder %s65, %s79
      %p81 = scmp.eq.s32.totalorder %s20, 0
      %p82 = por %p80, %p81
      %s84 = sadd.s32 %s83, 1
      %p87 = scmp.eq.s32.totalorder %s14, 1
      %p88 = scmp.ne.s32.totalorder %s83, %s85
      %p89 = scmp.eq.s32.totalorder %s14, 0
      %p90 = por %p88, %p89
      %p91 = scmp.ne.s32.totalorder %s83, %s85
      %p92 = scmp.eq.s32.totalorder %s19, 1
      %p93 = por %p91, %p92
      %p94 = scmp.ne.s32.totalorder %s85, %s86
      %p95 = scmp.eq.s32.totalorder %s19, 0
      %p96 = por %p94, %p95
      %p97 = scmp.ne.s32.totalorder %s85, %s86
      %p98 = scmp.eq.s32.totalorder %s20, 1
      %p99 = por %p97, %p98
      %p101 = scmp.ne.s32.totalorder %s86, %s100
      %p102 = scmp.eq.s32.totalorder %s20, 0
      %p103 = por %p101, %p102
      %s105 = sadd.s32 %s104, 1
      %p108 = scmp.eq.s32.totalorder %s14, 1
      %p109 = scmp.ne.s32.totalorder %s104, %s106
      %p110 = scmp.eq.s32.totalorder %s14, 0
      %p111 = por %p109, %p110
      %p112 = scmp.ne.s32.totalorder %s104, %s106
      %p113 = scmp.eq.s32.totalorder %s19, 1
      %p114 = por %p112, %p113
      %p115 = scmp.ne.s32.totalorder %s106, %s107
      %p116 = scmp.eq.s32.totalorder %s19, 0
      %p117 = por %p115, %p116
      %p118 = scmp.ne.s32.totalorder %s106, %s107
      %p119 = scmp.eq.s32.totalorder %s20, 1
      %p120 = por %p118, %p119
      %p122 = scmp.ne.s32.totalorder %s107, %s121
      %p123 = scmp.eq.s32.totalorder %s20, 0
      %p124 = por %p122, %p123
      %s126 = sadd.s32 %s125, 1
      %p129 = scmp.eq.s32.totalorder %s14, 1
      %p130 = scmp.ne.s32.totalorder %s125, %s127
      %p131 = scmp.eq.s32.totalorder %s14, 0
      %p132 = por %p130, %p131
      %p133 = scmp.ne.s32.totalorder %s125, %s127
      %p134 = scmp.eq.s32.totalorder %s19, 1
      %p135 = por %p133, %p134
      %p136 = scmp.ne.s32.totalorder %s127, %s128
      %p137 = scmp.eq.s32.totalorder %s19, 0
      %p138 = por %p136, %p137
      %p139 = scmp.ne.s32.totalorder %s127, %s128
      %p140 = scmp.eq.s32.totalorder %s20, 1
      %p141 = por %p139, %p140
      %p143 = scmp.ne.s32.totalorder %s128, %s142
      %p144 = scmp.eq.s32.totalorder %s20, 0
      %p145 = por %p143, %p144
      %s147 = sadd.s32 %s146, 1
      %p150 = scmp.eq.s32.totalorder %s14, 1
      %p151 = scmp.ne.s32.totalorder %s146, %s148
      %p152 = scmp.eq.s32.totalorder %s14, 0
      %p153 = por %p151, %p152
      %p154 = scmp.ne.s32.totalorder %s146, %s148
      %p155 = scmp.eq.s32.totalorder %s19, 1
      %p156 = por %p154, %p155
      %p157 = scmp.ne.s32.totalorder %s148, %s149
      %p158 = scmp.eq.s32.totalorder %s19, 0
      %p159 = por %p157, %p158
      %p160 = scmp.ne.s32.totalorder %s148, %s149
      %p161 = scmp.eq.s32.totalorder %s20, 1
      %p162 = por %p160, %p161
      %p164 = scmp.ne.s32.totalorder %s149, %s163
      %p165 = scmp.eq.s32.totalorder %s20, 0
      %p166 = por %p164, %p165
      %s167 = ssub.s32 %s21, %s33
      %p168 = scmp.eq.s32.totalorder %s167, 0
      %s170 = sadd.s32 %s169, 1
      %s171 = scalar_select %p168, %s169, %s170
      %p174 = pneg %p168
      %p175 = scmp.eq.s32.totalorder %s14, 1
      %p176 = por %p174, %p175
      %p177 = scmp.ne.s32.totalorder %s169, %s172
      %p178 = scmp.eq.s32.totalorder %s14, 0
      %p179 = por %p177, %p178
      %p180 = scmp.ne.s32.totalorder %s169, %s172
      %p181 = scmp.eq.s32.totalorder %s19, 1
      %p182 = por %p180, %p181
      %p183 = scmp.ne.s32.totalorder %s172, %s173
      %p184 = scmp.eq.s32.totalorder %s19, 0
      %p185 = por %p183, %p184
      %p186 = scmp.ne.s32.totalorder %s172, %s173
      %p187 = scmp.eq.s32.totalorder %s20, 1
      %p188 = por %p186, %p187
      %p190 = scmp.ne.s32.totalorder %s173, %s189
      %p191 = scmp.eq.s32.totalorder %s20, 0
      %p192 = por %p190, %p191
      %p193 = scmp.le.s32.totalorder 1, %s14
      %p194 = scmp.lt.s32.totalorder %s14, 3
      %p195 = pnand %p193, %p194
      %p196 = pneg %p195
      // Predicated region
      $region9: #{stn3d_forward.2} parent=5 // pred_check
        _
      $region10: #{stn3d_forward.2} parent=5 // pred_check_branch
        %198 = sbr.rel (%p195) target = $region12
      $region11: #{stn3d_forward.2} parent=5 // pred_region
        %s199 = ssub.s32 %s14, 1
        // Predicated region
        $region13: #{stn3d_forward.2} parent=11 // pred_check
          %p200 = pneg %p75
        $region14: #{stn3d_forward.2} parent=11 // pred_check_branch
          %202 = sbr.rel (%p200) target = $region16
        $region15: #{stn3d_forward.2} parent=11 // pred_region
          _
        $region16: #{stn3d_forward.2} parent=11 // pred_fallthru
          _
        // Predicated region
        $region17: #{stn3d_forward.2} parent=11 // pred_check
          %p203 = pneg %p96
        $region18: #{stn3d_forward.2} parent=11 // pred_check_branch
          %205 = sbr.rel (%p203) target = $region20
        $region19: #{stn3d_forward.2} parent=11 // pred_region
          %207 = vsyncadd [#allocation3], 0
          %s209 = sshll.u32 %s2, 4
          %s210 = int_to_ptr.hbm [resolvable:$true] %s209
          %s211 = sshll.u32 [#allocation2], 4
          %s212 = int_to_ptr.vmem [resolvable:$true] %s211
          %214 = dma.hbm_to_vmem [thread:$0]  %s210, 16, %s212, [#allocation3]
        $region20: #{stn3d_forward.2} parent=11 // pred_fallthru
          _
        // Predicated region
        $region21: #{stn3d_forward.2} parent=11 // pred_check
          %p215 = pneg %p117
        $region22: #{stn3d_forward.2} parent=11 // pred_check_branch
          %217 = sbr.rel (%p215) target = $region24
        $region23: #{stn3d_forward.2} parent=11 // pred_region
          _
        $region24: #{stn3d_forward.2} parent=11 // pred_fallthru
          _
        // Predicated region
        $region25: #{stn3d_forward.2} parent=11 // pred_check
          %p218 = pneg %p138
        $region26: #{stn3d_forward.2} parent=11 // pred_check_branch
          %220 = sbr.rel (%p218) target = $region28
        $region27: #{stn3d_forward.2} parent=11 // pred_region
          %222 = vsyncadd [#allocation5], 0
          %s224 = sshll.u32 %s4, 4
          %s225 = int_to_ptr.hbm [resolvable:$true] %s224
          %s226 = sshll.u32 [#allocation4], 4
          %s227 = int_to_ptr.vmem [resolvable:$true] %s226
          %229 = dma.hbm_to_vmem [thread:$0]  %s225, 16, %s227, [#allocation5]
        $region28: #{stn3d_forward.2} parent=11 // pred_fallthru
          _
        // Predicated region
        $region29: #{stn3d_forward.2} parent=11 // pred_check
          %p230 = pneg %p159
        $region30: #{stn3d_forward.2} parent=11 // pred_check_branch
          %232 = sbr.rel (%p230) target = $region32
        $region31: #{stn3d_forward.2} parent=11 // pred_region
          _
        $region32: #{stn3d_forward.2} parent=11 // pred_fallthru
          _
      $region12: #{stn3d_forward.2} parent=5 // pred_fallthru
        _
      %p233 = scmp.lt.s32.totalorder %s14, 2
      // Predicated region
      $region33: #{stn3d_forward.2} parent=5 // pred_check
        %p234 = pneg %p233
      $region34: #{stn3d_forward.2} parent=5 // pred_check_branch
        %236 = sbr.rel (%p234) target = $region36
      $region35: #{stn3d_forward.2} parent=5 // pred_region
        // Predicated region
        $region37: #{stn3d_forward.2} parent=35 // pred_check
          %p237 = pneg %p48
        $region38: #{stn3d_forward.2} parent=35 // pred_check_branch
          %239 = sbr.rel (%p237) target = $region40
        $region39: #{stn3d_forward.2} parent=35 // pred_region
          %s240 = smul.u32 2, %s22
          %p241 = scmp.lt.s32.totalorder %s21, 1
          %s242 = scalar_select %p241, %s21, 1
          %p243 = scmp.lt.s32.totalorder %s240, 1
          %s244 = scalar_select %p243, %s240, 1
          %s245 = smul.addr %s242, 2
          %s246 = sadd.s32 %s244, %s245
          %s247 = smul.addr %s246, 4
          %s248 = scalar_lea.vmem %s0, %s247
          %s249 = smul.u32 2, %s22
        $region40: #{stn3d_forward.2} parent=35 // pred_fallthru
          _
      $region36: #{stn3d_forward.2} parent=5 // pred_fallthru
        _
      %p250 = scmp.le.s32.totalorder 1, %s14
      %p251 = scmp.lt.s32.totalorder %s14, 3
      %p252 = pnand %p250, %p251
      %p253 = pneg %p252
      // Predicated region
      $region41: #{stn3d_forward.2} parent=5 // pred_check
        _
      $region42: #{stn3d_forward.2} parent=5 // pred_check_branch
        %255 = sbr.rel (%p252) target = $region44
      $region43: #{stn3d_forward.2} parent=5 // pred_region
        %s256 = ssub.s32 %s14, 1
        // Predicated region
        $region45: #{stn3d_forward.2} parent=43 // pred_check
          %p257 = pneg %p96
        $region46: #{stn3d_forward.2} parent=43 // pred_check_branch
          %259 = sbr.rel (%p257) target = $region48
        $region47: #{stn3d_forward.2} parent=43 // pred_region
          %261 = dma.done [#allocation3], 16
        $region48: #{stn3d_forward.2} parent=43 // pred_fallthru
          _
        // Predicated region
        $region49: #{stn3d_forward.2} parent=43 // pred_check
          %p262 = pneg %p138
        $region50: #{stn3d_forward.2} parent=43 // pred_check_branch
          %264 = sbr.rel (%p262) target = $region52
        $region51: #{stn3d_forward.2} parent=43 // pred_region
          %266 = dma.done [#allocation5], 16
        $region52: #{stn3d_forward.2} parent=43 // pred_fallthru
          _
        %s267 = smul.u32 2, %s24
        %p268 = scmp.lt.s32.totalorder %s23, 1
        %s269 = scalar_select %p268, %s23, 1
        %p270 = scmp.lt.s32.totalorder %s267, 1
        %s271 = scalar_select %p270, %s267, 1
        %s272 = smul.addr %s269, 2
        %s273 = sadd.s32 %s271, %s272
        %s274 = smul.addr %s273, 4
        %s275 = scalar_lea.vmem %s0, %s274
        %p276 = pneg %p54
        %p277 = pneg %p51
        %p278 = pneg %p75
        %p279 = pneg %p72
        %p280 = pneg %p96
        %p281 = pneg %p93
        %p282 = pneg %p117
        %p283 = pneg %p114
        %p284 = pneg %p138
        %p285 = pneg %p135
        %p286 = pneg %p159
        %p287 = pneg %p156
        %p288 = pneg %p185
        %p289 = pneg %p182
        %p290 = scmp.lt.s32.totalorder %s23, 1
        %s291 = scalar_select %p290, %s23, 1
        %s292 = smul.addr %s291, 8
        %s293 = scalar_lea.vmem %s6, %s292
        %s294 = smul.u32 2, %s24
        %p295 = scmp.lt.s32.totalorder %s23, 1
        %s296 = scalar_select %p295, %s23, 1
        %p297 = scmp.lt.s32.totalorder %s294, 1
        %s298 = scalar_select %p297, %s294, 1
        %s299 = smul.addr %s296, 2
        %s300 = sadd.s32 %s298, %s299
        %s301 = smul.addr %s300, 4
        %s302 = scalar_lea.vmem %s0, %s301
        %s303 = smul.u32 2, %s24
        %p304 = scmp.lt.s32.totalorder %s23, 1
        %s305 = scalar_select %p304, %s23, 1
        %s306 = smul.addr %s305, 8
        %s307 = scalar_lea.vmem %s6, %s306
        %v309 = vld [vmem:[%s302] sm:$0xf]
        %v310 = vld [vmem:[%s302 + $0x4] sm:$0xf]
        %v311 = vld [vmem:[%s1] sm:$0x3]
        %v312 = vld [vmem:[#allocation2] sm:$0x1]
        %v314 = vperm.slane %v312, 0
        %v318 = vunpack.c.l.b16 %v309
        %v319 = vunpack.c.l.b16 %v310
        %v320 = vpack.c.b16 %v319, %v318
        %vm321 = vcmask 23552
        %v323 = vsel %vm321, %v320, 0
        %vm325 = vcmask 1040384
        %vm326 = vcmask 1041408
        %v327 = vsel %vm325, 4294967295, 65535
        %v328 = vsel %vm326, %v327, 0
        %v330 = vand.u32 %v311, %v328
        %332 = vmatpush.bf16.msra.mxu0 0
        %333 = vmatpush.bf16.msra.mxu0 0
        %334 = vmatpush.bf16.msra.mxu0 0
        %335 = vmatpush.bf16.msra.mxu0 0
        %336 = vmatpush.bf16.msra.mxu0 0
        %337 = vmatpush.bf16.msra.mxu0 0
        %338 = vmatpush.bf16.msra.mxu0 0
        %339 = vmatpush.bf16.msra.mxu0 %v330
        %340 = vmatmul.bf16.gmra.mxu0 %v323
        %v341 = vpop.f32.mrf.mxu0
        %v342 = vadd.f32 %v314, %v341
        %v343 = vpop.f32.mrf.mxu0
        %v344 = vadd.f32 %v314, %v343
        %345 = vdwg.mxu0
        %v346 = vmax.f32 %v342, 0.0
        %v347 = vmax.f32 %v344, 0.0
        %v348 = vpack.c.bf16 %v347, %v346
        %v349 = vld [vmem:[%s3] sm:$0xf]
        %v350 = vld [vmem:[%s3 + $0x4] sm:$0xf]
        %v351 = vld [vmem:[%s3 + $0x8] sm:$0xf]
        %v352 = vld [vmem:[%s3 + $0xc] sm:$0xf]
        %v353 = vld [vmem:[%s3 + $0x10] sm:$0xf]
        %v354 = vld [vmem:[%s3 + $0x14] sm:$0xf]
        %v355 = vld [vmem:[%s3 + $0x18] sm:$0xf]
        %v356 = vld [vmem:[%s3 + $0x1c] sm:$0xf]
        %v357 = vld [vmem:[#allocation4] sm:$0x1]
        %v359 = vperm.slane %v357, 0
        %v369 = vunpack.c.l.b16 %v349
        %v370 = vunpack.c.l.b16 %v350
        %v371 = vunpack.c.l.b16 %v351
        %v372 = vunpack.c.l.b16 %v352
        %v373 = vunpack.c.l.b16 %v353
        %v374 = vunpack.c.l.b16 %v354
        %v375 = vunpack.c.l.b16 %v355
        %v376 = vunpack.c.l.b16 %v356
        %v377 = vpack.c.b16 %v370, %v369
        %v378 = vpack.c.b16 %v372, %v371
        %v379 = vpack.c.b16 %v374, %v373
        %v380 = vpack.c.b16 %v376, %v375
        %vm385 = vcmask 523264
        %v387 = vsel %vm385, %v348, 0
        %389 = vmatpush.bf16.msra.mxu0 0
        %390 = vmatpush.bf16.msra.mxu0 0
        %391 = vmatpush.bf16.msra.mxu0 0
        %392 = vmatpush.bf16.msra.mxu0 0
        %393 = vmatpush.bf16.msra.mxu0 %v380
        %394 = vmatpush.bf16.msra.mxu0 %v379
        %395 = vmatpush.bf16.msra.mxu0 %v378
        %396 = vmatpush.bf16.msra.mxu0 %v377
        %397 = vmatmul.bf16.gmra.mxu0 %v387
        %v398 = vpop.f32.mrf.mxu0
        %v399 = vadd.f32 %v359, %v398
        %v400 = vpop.f32.mrf.mxu0
        %v401 = vadd.f32 %v359, %v400
        %402 = vdwg.mxu0
        %v403 = vmax.f32 %v399, 0.0
        %v404 = vmax.f32 %v401, 0.0
        %v405 = vpack.c.bf16 %v404, %v403
        %v406 = vld [vmem:[%s5] sm:$0xff]
        %v407 = vld [vmem:[%s5 + $0x8] sm:$0xff]
        %v408 = vld [vmem:[%s5 + $0x10] sm:$0xff]
        %v409 = vld [vmem:[%s5 + $0x18] sm:$0xff]
        %v410 = vld [vmem:[%s5 + $0x20] sm:$0xff]
        %v411 = vld [vmem:[%s5 + $0x28] sm:$0xff]
        %v412 = vld [vmem:[%s5 + $0x30] sm:$0xff]
        %v413 = vld [vmem:[%s5 + $0x38] sm:$0xff]
        %v414 = vld [vmem:[%s5 + $0x40] sm:$0xff]
        %v415 = vld [vmem:[%s5 + $0x48] sm:$0xff]
        %v416 = vld [vmem:[%s5 + $0x50] sm:$0xff]
        %v417 = vld [vmem:[%s5 + $0x58] sm:$0xff]
        %v418 = vld [vmem:[%s5 + $0x60] sm:$0xff]
        %v419 = vld [vmem:[%s5 + $0x68] sm:$0xff]
        %v420 = vld [vmem:[%s5 + $0x70] sm:$0xff]
        %v421 = vld [vmem:[%s5 + $0x78] sm:$0xff]
        %v422 = vld [vmem:[%s5 + $0x80] sm:$0xff]
        %v423 = vld [vmem:[%s5 + $0x88] sm:$0xff]
        %v424 = vld [vmem:[%s5 + $0x90] sm:$0xff]
        %v425 = vld [vmem:[%s5 + $0x98] sm:$0xff]
        %v426 = vld [vmem:[%s5 + $0xa0] sm:$0xff]
        %v427 = vld [vmem:[%s5 + $0xa8] sm:$0xff]
        %v428 = vld [vmem:[%s5 + $0xb0] sm:$0xff]
        %v429 = vld [vmem:[%s5 + $0xb8] sm:$0xff]
        %v430 = vld [vmem:[%s5 + $0xc0] sm:$0xff]
        %v431 = vld [vmem:[%s5 + $0xc8] sm:$0xff]
        %v432 = vld [vmem:[%s5 + $0xd0] sm:$0xff]
        %v433 = vld [vmem:[%s5 + $0xd8] sm:$0xff]
        %v434 = vld [vmem:[%s5 + $0xe0] sm:$0xff]
        %v435 = vld [vmem:[%s5 + $0xe8] sm:$0xff]
        %v436 = vld [vmem:[%s5 + $0xf0] sm:$0xff]
        %v437 = vld [vmem:[%s5 + $0xf8] sm:$0xff]
        %v438 = vld [vmem:[%s5 + $0x100] sm:$0xff]
        %v439 = vld [vmem:[%s5 + $0x108] sm:$0xff]
        %v440 = vld [vmem:[%s5 + $0x110] sm:$0xff]
        %v441 = vld [vmem:[%s5 + $0x118] sm:$0xff]
        %v442 = vld [vmem:[%s5 + $0x120] sm:$0xff]
        %v443 = vld [vmem:[%s5 + $0x128] sm:$0xff]
        %v444 = vld [vmem:[%s5 + $0x130] sm:$0xff]
        %v445 = vld [vmem:[%s5 + $0x138] sm:$0xff]
        %v446 = vld [vmem:[%s5 + $0x140] sm:$0xff]
        %v447 = vld [vmem:[%s5 + $0x148] sm:$0xff]
        %v448 = vld [vmem:[%s5 + $0x150] sm:$0xff]
        %v449 = vld [vmem:[%s5 + $0x158] sm:$0xff]
        %v450 = vld [vmem:[%s5 + $0x160] sm:$0xff]
        %v451 = vld [vmem:[%s5 + $0x168] sm:$0xff]
        %v452 = vld [vmem:[%s5 + $0x170] sm:$0xff]
        %v453 = vld [vmem:[%s5 + $0x178] sm:$0xff]
        %v454 = vld [vmem:[%s5 + $0x180] sm:$0xff]
        %v455 = vld [vmem:[%s5 + $0x188] sm:$0xff]
        %v456 = vld [vmem:[%s5 + $0x190] sm:$0xff]
        %v457 = vld [vmem:[%s5 + $0x198] sm:$0xff]
        %v458 = vld [vmem:[%s5 + $0x1a0] sm:$0xff]
        %v459 = vld [vmem:[%s5 + $0x1a8] sm:$0xff]
        %v460 = vld [vmem:[%s5 + $0x1b0] sm:$0xff]
        %v461 = vld [vmem:[%s5 + $0x1b8] sm:$0xff]
        %v462 = vld [vmem:[%s5 + $0x1c0] sm:$0xff]
        %v463 = vld [vmem:[%s5 + $0x1c8] sm:$0xff]
        %v464 = vld [vmem:[%s5 + $0x1d0] sm:$0xff]
        %v465 = vld [vmem:[%s5 + $0x1d8] sm:$0xff]
        %v466 = vld [vmem:[%s5 + $0x1e0] sm:$0xff]
        %v467 = vld [vmem:[%s5 + $0x1e8] sm:$0xff]
        %v468 = vld [vmem:[%s5 + $0x1f0] sm:$0xff]
        %v469 = vld [vmem:[%s5 + $0x1f8] sm:$0xff]
        %v534 = vunpack.c.l.b16 %v406
        %v535 = vunpack.c.h.b16 %v406
        %v536 = vunpack.c.l.b16 %v407
        %v537 = vunpack.c.h.b16 %v407
        %v538 = vunpack.c.l.b16 %v408
        %v539 = vunpack.c.h.b16 %v408
        %v540 = vunpack.c.l.b16 %v409
        %v541 = vunpack.c.h.b16 %v409
        %v542 = vunpack.c.l.b16 %v410
        %v543 = vunpack.c.h.b16 %v410
        %v544 = vunpack.c.l.b16 %v411
        %v545 = vunpack.c.h.b16 %v411
        %v546 = vunpack.c.l.b16 %v412
        %v547 = vunpack.c.h.b16 %v412
        %v548 = vunpack.c.l.b16 %v413
        %v549 = vunpack.c.h.b16 %v413
        %v550 = vunpack.c.l.b16 %v414
        %v551 = vunpack.c.h.b16 %v414
        %v552 = vunpack.c.l.b16 %v415
        %v553 = vunpack.c.h.b16 %v415
        %v554 = vunpack.c.l.b16 %v416
        %v555 = vunpack.c.h.b16 %v416
        %v556 = vunpack.c.l.b16 %v417
        %v557 = vunpack.c.h.b16 %v417
        %v558 = vunpack.c.l.b16 %v418
        %v559 = vunpack.c.h.b16 %v418
        %v560 = vunpack.c.l.b16 %v419
        %v561 = vunpack.c.h.b16 %v419
        %v562 = vunpack.c.l.b16 %v420
        %v563 = vunpack.c.h.b16 %v420
        %v564 = vunpack.c.l.b16 %v421
        %v565 = vunpack.c.h.b16 %v421
        %v566 = vunpack.c.l.b16 %v422
        %v567 = vunpack.c.h.b16 %v422
        %v568 = vunpack.c.l.b16 %v423
        %v569 = vunpack.c.h.b16 %v423
        %v570 = vunpack.c.l.b16 %v424
        %v571 = vunpack.c.h.b16 %v424
        %v572 = vunpack.c.l.b16 %v425
        %v573 = vunpack.c.h.b16 %v425
        %v574 = vunpack.c.l.b16 %v426
        %v575 = vunpack.c.h.b16 %v426
        %v576 = vunpack.c.l.b16 %v427
        %v577 = vunpack.c.h.b16 %v427
        %v578 = vunpack.c.l.b16 %v428
        %v579 = vunpack.c.h.b16 %v428
        %v580 = vunpack.c.l.b16 %v429
        %v581 = vunpack.c.h.b16 %v429
        %v582 = vunpack.c.l.b16 %v430
        %v583 = vunpack.c.h.b16 %v430
        %v584 = vunpack.c.l.b16 %v431
        %v585 = vunpack.c.h.b16 %v431
        %v586 = vunpack.c.l.b16 %v432
        %v587 = vunpack.c.h.b16 %v432
        %v588 = vunpack.c.l.b16 %v433
        %v589 = vunpack.c.h.b16 %v433
        %v590 = vunpack.c.l.b16 %v434
        %v591 = vunpack.c.h.b16 %v434
        %v592 = vunpack.c.l.b16 %v435
        %v593 = vunpack.c.h.b16 %v435
        %v594 = vunpack.c.l.b16 %v436
        %v595 = vunpack.c.h.b16 %v436
        %v596 = vunpack.c.l.b16 %v437
        %v597 = vunpack.c.h.b16 %v437
        %v598 = vunpack.c.l.b16 %v438
        %v599 = vunpack.c.h.b16 %v438
        %v600 = vunpack.c.l.b16 %v439
        %v601 = vunpack.c.h.b16 %v439
        %v602 = vunpack.c.l.b16 %v440
        %v603 = vunpack.c.h.b16 %v440
        %v604 = vunpack.c.l.b16 %v441
        %v605 = vunpack.c.h.b16 %v441
        %v606 = vunpack.c.l.b16 %v442
        %v607 = vunpack.c.h.b16 %v442
        %v608 = vunpack.c.l.b16 %v443
        %v609 = vunpack.c.h.b16 %v443
        %v610 = vunpack.c.l.b16 %v444
        %v611 = vunpack.c.h.b16 %v444
        %v612 = vunpack.c.l.b16 %v445
        %v613 = vunpack.c.h.b16 %v445
        %v614 = vunpack.c.l.b16 %v446
        %v615 = vunpack.c.h.b16 %v446
        %v616 = vunpack.c.l.b16 %v447
        %v617 = vunpack.c.h.b16 %v447
        %v618 = vunpack.c.l.b16 %v448
        %v619 = vunpack.c.h.b16 %v448
        %v620 = vunpack.c.l.b16 %v449
        %v621 = vunpack.c.h.b16 %v449
        %v622 = vunpack.c.l.b16 %v450
        %v623 = vunpack.c.h.b16 %v450
        %v624 = vunpack.c.l.b16 %v451
        %v625 = vunpack.c.h.b16 %v451
        %v626 = vunpack.c.l.b16 %v452
        %v627 = vunpack.c.h.b16 %v452
        %v628 = vunpack.c.l.b16 %v453
        %v629 = vunpack.c.h.b16 %v453
        %v630 = vunpack.c.l.b16 %v454
        %v631 = vunpack.c.h.b16 %v454
        %v632 = vunpack.c.l.b16 %v455
        %v633 = vunpack.c.h.b16 %v455
        %v634 = vunpack.c.l.b16 %v456
        %v635 = vunpack.c.h.b16 %v456
        %v636 = vunpack.c.l.b16 %v457
        %v637 = vunpack.c.h.b16 %v457
        %v638 = vunpack.c.l.b16 %v458
        %v639 = vunpack.c.h.b16 %v458
        %v640 = vunpack.c.l.b16 %v459
        %v641 = vunpack.c.h.b16 %v459
        %v642 = vunpack.c.l.b16 %v460
        %v643 = vunpack.c.h.b16 %v460
        %v644 = vunpack.c.l.b16 %v461
        %v645 = vunpack.c.h.b16 %v461
        %v646 = vunpack.c.l.b16 %v462
        %v647 = vunpack.c.h.b16 %v462
        %v648 = vunpack.c.l.b16 %v463
        %v649 = vunpack.c.h.b16 %v463
        %v650 = vunpack.c.l.b16 %v464
        %v651 = vunpack.c.h.b16 %v464
        %v652 = vunpack.c.l.b16 %v465
        %v653 = vunpack.c.h.b16 %v465
        %v654 = vunpack.c.l.b16 %v466
        %v655 = vunpack.c.h.b16 %v466
        %v656 = vunpack.c.l.b16 %v467
        %v657 = vunpack.c.h.b16 %v467
        %v658 = vunpack.c.l.b16 %v468
        %v659 = vunpack.c.h.b16 %v468
        %v660 = vunpack.c.l.b16 %v469
        %v661 = vunpack.c.h.b16 %v469
        %v662 = vpack.c.b16 %v542, %v534
        %v663 = vpack.c.b16 %v543, %v535
        %v664 = vpack.c.b16 %v544, %v536
        %v665 = vpack.c.b16 %v545, %v537
        %v666 = vpack.c.b16 %v546, %v538
        %v667 = vpack.c.b16 %v547, %v539
        %v668 = vpack.c.b16 %v548, %v540
        %v669 = vpack.c.b16 %v549, %v541
        %v670 = vpack.c.b16 %v558, %v550
        %v671 = vpack.c.b16 %v559, %v551
        %v672 = vpack.c.b16 %v560, %v552
        %v673 = vpack.c.b16 %v561, %v553
        %v674 = vpack.c.b16 %v562, %v554
        %v675 = vpack.c.b16 %v563, %v555
        %v676 = vpack.c.b16 %v564, %v556
        %v677 = vpack.c.b16 %v565, %v557
        %v678 = vpack.c.b16 %v574, %v566
        %v679 = vpack.c.b16 %v575, %v567
        %v680 = vpack.c.b16 %v576, %v568
        %v681 = vpack.c.b16 %v577, %v569
        %v682 = vpack.c.b16 %v578, %v570
        %v683 = vpack.c.b16 %v579, %v571
        %v684 = vpack.c.b16 %v580, %v572
        %v685 = vpack.c.b16 %v581, %v573
        %v686 = vpack.c.b16 %v590, %v582
        %v687 = vpack.c.b16 %v591, %v583
        %v688 = vpack.c.b16 %v592, %v584
        %v689 = vpack.c.b16 %v593, %v585
        %v690 = vpack.c.b16 %v594, %v586
        %v691 = vpack.c.b16 %v595, %v587
        %v692 = vpack.c.b16 %v596, %v588
        %v693 = vpack.c.b16 %v597, %v589
        %v694 = vpack.c.b16 %v606, %v598
        %v695 = vpack.c.b16 %v607, %v599
        %v696 = vpack.c.b16 %v608, %v600
        %v697 = vpack.c.b16 %v609, %v601
        %v698 = vpack.c.b16 %v610, %v602
        %v699 = vpack.c.b16 %v611, %v603
        %v700 = vpack.c.b16 %v612, %v604
        %v701 = vpack.c.b16 %v613, %v605
        %v702 = vpack.c.b16 %v622, %v614
        %v703 = vpack.c.b16 %v623, %v615
        %v704 = vpack.c.b16 %v624, %v616
        %v705 = vpack.c.b16 %v625, %v617
        %v706 = vpack.c.b16 %v626, %v618
        %v707 = vpack.c.b16 %v627, %v619
        %v708 = vpack.c.b16 %v628, %v620
        %v709 = vpack.c.b16 %v629, %v621
        %v710 = vpack.c.b16 %v638, %v630
        %v711 = vpack.c.b16 %v639, %v631
        %v712 = vpack.c.b16 %v640, %v632
        %v713 = vpack.c.b16 %v641, %v633
        %v714 = vpack.c.b16 %v642, %v634
        %v715 = vpack.c.b16 %v643, %v635
        %v716 = vpack.c.b16 %v644, %v636
        %v717 = vpack.c.b16 %v645, %v637
        %v718 = vpack.c.b16 %v654, %v646
        %v719 = vpack.c.b16 %v655, %v647
        %v720 = vpack.c.b16 %v656, %v648
        %v721 = vpack.c.b16 %v657, %v649
        %v722 = vpack.c.b16 %v658, %v650
        %v723 = vpack.c.b16 %v659, %v651
        %v724 = vpack.c.b16 %v660, %v652
        %v725 = vpack.c.b16 %v661, %v653
        %790 = vmatpush.bf16.msra.mxu0 %v718
        %791 = vmatpush.bf16.msra.mxu0 %v710
        %792 = vmatpush.bf16.msra.mxu0 %v702
        %793 = vmatpush.bf16.msra.mxu0 %v694
        %794 = vmatpush.bf16.msra.mxu0 %v686
        %795 = vmatpush.bf16.msra.mxu0 %v678
        %796 = vmatpush.bf16.msra.mxu0 %v670
        %797 = vmatpush.bf16.msra.mxu0 %v662
        %798 = vmatmul.bf16.gmra.mxu0 %v405
        %v799 = vpop.f32.mrf.mxu0
        %v800 = vadd.f32 0.0, %v799
        %v801 = vpop.f32.mrf.mxu0
        %v802 = vadd.f32 0.0, %v801
        %803 = vdwg.mxu0
        %804 = vmatpush.bf16.msra.mxu0 %v719
        %805 = vmatpush.bf16.msra.mxu0 %v711
        %806 = vmatpush.bf16.msra.mxu0 %v703
        %807 = vmatpush.bf16.msra.mxu0 %v695
        %808 = vmatpush.bf16.msra.mxu0 %v687
        %809 = vmatpush.bf16.msra.mxu0 %v679
        %810 = vmatpush.bf16.msra.mxu0 %v671
        %811 = vmatpush.bf16.msra.mxu0 %v663
        %812 = vmatmul.bf16.gmra.mxu0 %v405
        %v813 = vpop.f32.mrf.mxu0
        %v814 = vadd.f32 0.0, %v813
        %v815 = vpop.f32.mrf.mxu0
        %v816 = vadd.f32 0.0, %v815
        %817 = vdwg.mxu0
        %818 = vmatpush.bf16.msra.mxu0 %v720
        %819 = vmatpush.bf16.msra.mxu0 %v712
        %820 = vmatpush.bf16.msra.mxu0 %v704
        %821 = vmatpush.bf16.msra.mxu0 %v696
        %822 = vmatpush.bf16.msra.mxu0 %v688
        %823 = vmatpush.bf16.msra.mxu0 %v680
        %824 = vmatpush.bf16.msra.mxu0 %v672
        %825 = vmatpush.bf16.msra.mxu0 %v664
        %826 = vmatmul.bf16.gmra.mxu0 %v405
        %v827 = vpop.f32.mrf.mxu0
        %v828 = vadd.f32 0.0, %v827
        %v829 = vpop.f32.mrf.mxu0
        %v830 = vadd.f32 0.0, %v829
        %831 = vdwg.mxu0
        %832 = vmatpush.bf16.msra.mxu0 %v721
        %833 = vmatpush.bf16.msra.mxu0 %v713
        %834 = vmatpush.bf16.msra.mxu0 %v705
        %835 = vmatpush.bf16.msra.mxu0 %v697
        %836 = vmatpush.bf16.msra.mxu0 %v689
        %837 = vmatpush.bf16.msra.mxu0 %v681
        %838 = vmatpush.bf16.msra.mxu0 %v673
        %839 = vmatpush.bf16.msra.mxu0 %v665
        %840 = vmatmul.bf16.gmra.mxu0 %v405
        %v841 = vpop.f32.mrf.mxu0
        %v842 = vadd.f32 0.0, %v841
        %v843 = vpop.f32.mrf.mxu0
        %v844 = vadd.f32 0.0, %v843
        %845 = vdwg.mxu0
        %846 = vmatpush.bf16.msra.mxu0 %v722
        %847 = vmatpush.bf16.msra.mxu0 %v714
        %848 = vmatpush.bf16.msra.mxu0 %v706
        %849 = vmatpush.bf16.msra.mxu0 %v698
        %850 = vmatpush.bf16.msra.mxu0 %v690
        %851 = vmatpush.bf16.msra.mxu0 %v682
        %852 = vmatpush.bf16.msra.mxu0 %v674
        %853 = vmatpush.bf16.msra.mxu0 %v666
        %854 = vmatmul.bf16.gmra.mxu0 %v405
        %v855 = vpop.f32.mrf.mxu0
        %v856 = vadd.f32 0.0, %v855
        %v857 = vpop.f32.mrf.mxu0
        %v858 = vadd.f32 0.0, %v857
        %859 = vdwg.mxu0
        %860 = vmatpush.bf16.msra.mxu0 %v723
        %861 = vmatpush.bf16.msra.mxu0 %v715
        %862 = vmatpush.bf16.msra.mxu0 %v707
        %863 = vmatpush.bf16.msra.mxu0 %v699
        %864 = vmatpush.bf16.msra.mxu0 %v691
        %865 = vmatpush.bf16.msra.mxu0 %v683
        %866 = vmatpush.bf16.msra.mxu0 %v675
        %867 = vmatpush.bf16.msra.mxu0 %v667
        %868 = vmatmul.bf16.gmra.mxu0 %v405
        %v869 = vpop.f32.mrf.mxu0
        %v870 = vadd.f32 0.0, %v869
        %v871 = vpop.f32.mrf.mxu0
        %v872 = vadd.f32 0.0, %v871
        %873 = vdwg.mxu0
        %874 = vmatpush.bf16.msra.mxu0 %v724
        %875 = vmatpush.bf16.msra.mxu0 %v716
        %876 = vmatpush.bf16.msra.mxu0 %v708
        %877 = vmatpush.bf16.msra.mxu0 %v700
        %878 = vmatpush.bf16.msra.mxu0 %v692
        %879 = vmatpush.bf16.msra.mxu0 %v684
        %880 = vmatpush.bf16.msra.mxu0 %v676
        %881 = vmatpush.bf16.msra.mxu0 %v668
        %882 = vmatmul.bf16.gmra.mxu0 %v405
        %v883 = vpop.f32.mrf.mxu0
        %v884 = vadd.f32 0.0, %v883
        %v885 = vpop.f32.mrf.mxu0
        %v886 = vadd.f32 0.0, %v885
        %887 = vdwg.mxu0
        %888 = vmatpush.bf16.msra.mxu0 %v725
        %889 = vmatpush.bf16.msra.mxu0 %v717
        %890 = vmatpush.bf16.msra.mxu0 %v709
        %891 = vmatpush.bf16.msra.mxu0 %v701
        %892 = vmatpush.bf16.msra.mxu0 %v693
        %893 = vmatpush.bf16.msra.mxu0 %v685
        %894 = vmatpush.bf16.msra.mxu0 %v677
        %895 = vmatpush.bf16.msra.mxu0 %v669
        %896 = vmatmul.bf16.gmra.mxu0 %v405
        %v897 = vpop.f32.mrf.mxu0
        %v898 = vadd.f32 0.0, %v897
        %v899 = vpop.f32.mrf.mxu0
        %v900 = vadd.f32 0.0, %v899
        %901 = vdwg.mxu0
        %v902 = vmax.f32 %v800, %v802
        %v903 = vrot.slane %v902, 4
        %v904 = vmax.f32 %v902, %v903
        %v905 = vrot.slane %v904, 2
        %v906 = vmax.f32 %v904, %v905
        %v907 = vrot.slane %v906, 1
        %v908 = vmax.f32 %v906, %v907
        %v909 = vmax.f32 %v814, %v816
        %v910 = vrot.slane %v909, 4
        %v911 = vmax.f32 %v909, %v910
        %v912 = vrot.slane %v911, 2
        %v913 = vmax.f32 %v911, %v912
        %v914 = vrot.slane %v913, 1
        %v915 = vmax.f32 %v913, %v914
        %v916 = vmax.f32 %v828, %v830
        %v917 = vrot.slane %v916, 4
        %v918 = vmax.f32 %v916, %v917
        %v919 = vrot.slane %v918, 2
        %v920 = vmax.f32 %v918, %v919
        %v921 = vrot.slane %v920, 1
        %v922 = vmax.f32 %v920, %v921
        %v923 = vmax.f32 %v842, %v844
        %v924 = vrot.slane %v923, 4
        %v925 = vmax.f32 %v923, %v924
        %v926 = vrot.slane %v925, 2
        %v927 = vmax.f32 %v925, %v926
        %v928 = vrot.slane %v927, 1
        %v929 = vmax.f32 %v927, %v928
        %v930 = vmax.f32 %v856, %v858
        %v931 = vrot.slane %v930, 4
        %v932 = vmax.f32 %v930, %v931
        %v933 = vrot.slane %v932, 2
        %v934 = vmax.f32 %v932, %v933
        %v935 = vrot.slane %v934, 1
        %v936 = vmax.f32 %v934, %v935
        %v937 = vmax.f32 %v870, %v872
        %v938 = vrot.slane %v937, 4
        %v939 = vmax.f32 %v937, %v938
        %v940 = vrot.slane %v939, 2
        %v941 = vmax.f32 %v939, %v940
        %v942 = vrot.slane %v941, 1
        %v943 = vmax.f32 %v941, %v942
        %v944 = vmax.f32 %v884, %v886
        %v945 = vrot.slane %v944, 4
        %v946 = vmax.f32 %v944, %v945
        %v947 = vrot.slane %v946, 2
        %v948 = vmax.f32 %v946, %v947
        %v949 = vrot.slane %v948, 1
        %v950 = vmax.f32 %v948, %v949
        %v951 = vmax.f32 %v898, %v900
        %v952 = vrot.slane %v951, 4
        %v953 = vmax.f32 %v951, %v952
        %v954 = vrot.slane %v953, 2
        %v955 = vmax.f32 %v953, %v954
        %v956 = vrot.slane %v955, 1
        %v957 = vmax.f32 %v955, %v956
        %p958 = scmp.eq.s32.totalorder %s24, 0
        // Predicated region
        $region53: #{stn3d_forward.2} parent=43 // pred_check
          %p959 = pneg %p958
        $region54: #{stn3d_forward.2} parent=43 // pred_check_branch
          %961 = sbr.rel (%p959) target = $region56
        $region55: #{stn3d_forward.2} parent=43 // pred_region
          %v970 = vrot.slane %v915, 7
          %v971 = vrot.slane %v922, 6
          %v972 = vrot.slane %v929, 5
          %v973 = vrot.slane %v936, 4
          %v974 = vrot.slane %v943, 3
          %v975 = vrot.slane %v950, 2
          %v976 = vrot.slane %v957, 1
          %v977 = vsel %vm325, %v908, %v970
          %vm978 = vcmask 1042434
          %v979 = vsel %vm978, %v971, %v972
          %v980 = vsel %vm326, %v977, %v979
          %vm981 = vcmask 1044484
          %v982 = vsel %vm981, %v973, %v974
          %vm983 = vcmask 1046534
          %v984 = vsel %vm983, %v975, %v976
          %vm985 = vcmask 1045508
          %v986 = vsel %vm985, %v982, %v984
          %vm987 = vcmask 1043456
          %v988 = vsel %vm987, %v980, %v986
          %990 = vst [vmem:[%s307] sm:$0xff] %v988
        $region56: #{stn3d_forward.2} parent=43 // pred_fallthru
          _
        %p991 = scmp.ne.s32.totalorder %s24, 0
        // Predicated region
        $region57: #{stn3d_forward.2} parent=43 // pred_check
          %p992 = pneg %p991
        $region58: #{stn3d_forward.2} parent=43 // pred_check_branch
          %994 = sbr.rel (%p992) target = $region60
        $region59: #{stn3d_forward.2} parent=43 // pred_region
          %v995 = vld [vmem:[%s307] sm:$0xff]
          %v1004 = vrot.slane %v915, 7
          %v1005 = vrot.slane %v922, 6
          %v1006 = vrot.slane %v929, 5
          %v1007 = vrot.slane %v936, 4
          %v1008 = vrot.slane %v943, 3
          %v1009 = vrot.slane %v950, 2
          %v1010 = vrot.slane %v957, 1
          %v1011 = vsel %vm325, %v908, %v1004
          %vm1012 = vcmask 1042434
          %v1013 = vsel %vm1012, %v1005, %v1006
          %v1014 = vsel %vm326, %v1011, %v1013
          %vm1015 = vcmask 1044484
          %v1016 = vsel %vm1015, %v1007, %v1008
          %vm1017 = vcmask 1046534
          %v1018 = vsel %vm1017, %v1009, %v1010
          %vm1019 = vcmask 1045508
          %v1020 = vsel %vm1019, %v1016, %v1018
          %vm1021 = vcmask 1043456
          %v1022 = vsel %vm1021, %v1014, %v1020
          %v1024 = vmax.f32 %v995, %v1022
          %1025 = vst [vmem:[%s307] sm:$0xff] %v1024
        $region60: #{stn3d_forward.2} parent=43 // pred_fallthru
          _
        %p1026 = scmp.lt.s32.totalorder %s23, 1
        %s1027 = scalar_select %p1026, %s23, 1
        %s1028 = smul.addr %s1027, 8
        %s1029 = scalar_lea.vmem %s6, %s1028
        // Predicated region
        $region61: #{stn3d_forward.2} parent=43 // pred_check
          %p1030 = pneg %p182
        $region62: #{stn3d_forward.2} parent=43 // pred_check_branch
          %1032 = sbr.rel (%p1030) target = $region64
        $region63: #{stn3d_forward.2} parent=43 // pred_region
          _
        $region64: #{stn3d_forward.2} parent=43 // pred_fallthru
          _
      $region44: #{stn3d_forward.2} parent=5 // pred_fallthru
        _
      %p1033 = scmp.le.s32.totalorder 2, %s14
      // Predicated region
      $region65: #{stn3d_forward.2} parent=5 // pred_check
        %p1034 = pneg %p1033
      $region66: #{stn3d_forward.2} parent=5 // pred_check_branch
        %1036 = sbr.rel (%p1034) target = $region68
      $region67: #{stn3d_forward.2} parent=5 // pred_region
        %s1037 = ssub.s32 %s14, 2
        // Predicated region
        $region69: #{stn3d_forward.2} parent=67 // pred_check
          %p1038 = pneg %p188
        $region70: #{stn3d_forward.2} parent=67 // pred_check_branch
          %1040 = sbr.rel (%p1038) target = $region72
        $region71: #{stn3d_forward.2} parent=67 // pred_region
          %p1041 = scmp.lt.s32.totalorder %s25, 1
          %s1042 = scalar_select %p1041, %s25, 1
          %s1043 = smul.addr %s1042, 8
          %s1044 = scalar_lea.vmem %s6, %s1043
        $region72: #{stn3d_forward.2} parent=67 // pred_fallthru
          _
      $region68: #{stn3d_forward.2} parent=5 // pred_fallthru
        _
    $region6: #{stn3d_forward.2} parent=1 // loop_footer
      %s18 = sadd.s32 1, %s14
    $region7: #{stn3d_forward.2} parent=1 // loop_footer_branch
      %13 = sbr.rel target = $region3
    $region8: #{stn3d_forward.2} parent=1 // loop_exit
      _
    %1045 = vsyncpa [#allocation3], 1
    %s1046 = scalar_lea.sflag [#allocation3], 1
    %1047 = vsyncpa %s1046, 1
    %1048 = vsyncpa [#allocation5], 1

// kernel: stn3d_forward.3
$region0: #{stn3d_forward.3}
  #allocation0 [shape = 'u32[]', space=smem, size = 0x4, offset = 0x4, fixed_abs, tag = 'smem constant byte address 0x4 - core index']
  #allocation1 [shape = 'u32[72,128]{1,0:T(1,128)}', space=vmem, size = 0x9000, scoped, tag = 'internal scratch']
  %s0 = inlined_call_operand.vmem [shape: f32[2,1,1024], index: 0, kind: input, shape index: {}]
  %s1 = inlined_call_operand.vmem [shape: f32[1,1024], index: 1, kind: input, shape index: {}]
  %s2 = inlined_call_operand.vmem [shape: bf16[1024,512], index: 2, kind: input, shape index: {}]
  %s3 = inlined_call_operand.vmem [shape: f32[1,512], index: 3, kind: input, shape index: {}]
  %s4 = inlined_call_operand.vmem [shape: bf16[512,256], index: 4, kind: input, shape index: {}]
  %s5 = inlined_call_operand.vmem [shape: f32[1,256], index: 5, kind: input, shape index: {}]
  %s6 = inlined_call_operand.vmem [shape: bf16[256,9], index: 6, kind: input, shape index: {}]
  %s7 = inlined_call_operand.vmem [shape: f32[1,9], index: 7, kind: input, shape index: {}]
  %s8 = inlined_call_operand.vmem [shape: f32[1,9], index: 8, kind: input, shape index: {}]
  %s9 = inlined_call_operand.vmem [shape: f32[2,9], index: 9, kind: output, shape index: {}]
  %s10 = sld [smem:[#allocation0]]
  $region46: #{stn3d_forward.3} parent=0
    _
  %s12 = ssub.s32 1, %s10
  %s13 = scalar_select 0, %s12, %s10
  // Predicated region
  $region2: #{stn3d_forward.3} parent=0 // pred_check
    _
  $region3: #{stn3d_forward.3} parent=0 // pred_check_branch
    %15 = sbr.rel (0) target = $region5
  $region4: #{stn3d_forward.3} parent=0 // pred_region
    _
  $region5: #{stn3d_forward.3} parent=0 // pred_fallthru
    _
  // Predicated region
  $region6: #{stn3d_forward.3} parent=0 // pred_check
    _
  $region7: #{stn3d_forward.3} parent=0 // pred_check_branch
    %17 = sbr.rel (0) target = $region9
  $region8: #{stn3d_forward.3} parent=0 // pred_region
    _
  $region9: #{stn3d_forward.3} parent=0 // pred_fallthru
    _
  // Predicated region
  $region10: #{stn3d_forward.3} parent=0 // pred_check
    _
  $region11: #{stn3d_forward.3} parent=0 // pred_check_branch
    %19 = sbr.rel (0) target = $region13
  $region12: #{stn3d_forward.3} parent=0 // pred_region
    _
  $region13: #{stn3d_forward.3} parent=0 // pred_fallthru
    _
  // Predicated region
  $region14: #{stn3d_forward.3} parent=0 // pred_check
    _
  $region15: #{stn3d_forward.3} parent=0 // pred_check_branch
    %21 = sbr.rel (0) target = $region17
  $region16: #{stn3d_forward.3} parent=0 // pred_region
    _
  $region17: #{stn3d_forward.3} parent=0 // pred_fallthru
    _
  // Predicated region
  $region18: #{stn3d_forward.3} parent=0 // pred_check
    _
  $region19: #{stn3d_forward.3} parent=0 // pred_check_branch
    %23 = sbr.rel (0) target = $region21
  $region20: #{stn3d_forward.3} parent=0 // pred_region
    _
  $region21: #{stn3d_forward.3} parent=0 // pred_fallthru
    _
  // Predicated region
  $region22: #{stn3d_forward.3} parent=0 // pred_check
    _
  $region23: #{stn3d_forward.3} parent=0 // pred_check_branch
    %25 = sbr.rel (0) target = $region25
  $region24: #{stn3d_forward.3} parent=0 // pred_region
    _
  $region25: #{stn3d_forward.3} parent=0 // pred_fallthru
    _
  // Predicated region
  $region26: #{stn3d_forward.3} parent=0 // pred_check
    _
  $region27: #{stn3d_forward.3} parent=0 // pred_check_branch
    %27 = sbr.rel (0) target = $region29
  $region28: #{stn3d_forward.3} parent=0 // pred_region
    _
  $region29: #{stn3d_forward.3} parent=0 // pred_fallthru
    _
  // Predicated region
  $region30: #{stn3d_forward.3} parent=0 // pred_check
    _
  $region31: #{stn3d_forward.3} parent=0 // pred_check_branch
    %29 = sbr.rel (0) target = $region33
  $region32: #{stn3d_forward.3} parent=0 // pred_region
    _
  $region33: #{stn3d_forward.3} parent=0 // pred_fallthru
    _
  // Predicated region
  $region34: #{stn3d_forward.3} parent=0 // pred_check
    _
  $region35: #{stn3d_forward.3} parent=0 // pred_check_branch
    %31 = sbr.rel (0) target = $region37
  $region36: #{stn3d_forward.3} parent=0 // pred_region
    _
  $region37: #{stn3d_forward.3} parent=0 // pred_fallthru
    _
  %v32 = vld [vmem:[%s0] sm:$0xff]
  %v33 = vld [vmem:[%s0 + $0x8] sm:$0xff]
  %v34 = vld [vmem:[%s1] sm:$0xff]
  %v36 = vperm.slane %v34, 0
  %v37 = vperm.slane %v34, 1
  %v38 = vperm.slane %v34, 2
  %v39 = vperm.slane %v34, 3
  %v40 = vperm.slane %v34, 4
  %v41 = vperm.slane %v34, 5
  %v42 = vperm.slane %v34, 6
  %v43 = vperm.slane %v34, 7
  %v44 = vrot.slane %v37, 7
  %v45 = vrot.slane %v38, 6
  %v46 = vrot.slane %v39, 5
  %v47 = vrot.slane %v40, 4
  %v48 = vrot.slane %v41, 3
  %v49 = vrot.slane %v42, 2
  %v50 = vrot.slane %v43, 1
  %vm51 = vcmask 1040384
  %v52 = vsel %vm51, %v36, %v44
  %vm53 = vcmask 1042434
  %v54 = vsel %vm53, %v45, %v46
  %vm55 = vcmask 1041408
  %v56 = vsel %vm55, %v52, %v54
  %vm57 = vcmask 1044484
  %v58 = vsel %vm57, %v47, %v48
  %vm59 = vcmask 1046534
  %v60 = vsel %vm59, %v49, %v50
  %vm61 = vcmask 1045508
  %v62 = vsel %vm61, %v58, %v60
  %vm63 = vcmask 1043456
  %v64 = vsel %vm63, %v56, %v62
  %vm65 = vcmask 1041409
  %v66 = vsel %vm65, %v36, %v44
  %vm67 = vcmask 1043459
  %v68 = vsel %vm67, %v45, %v46
  %vm69 = vcmask 1042433
  %v70 = vsel %vm69, %v66, %v68
  %vm71 = vcmask 1045509
  %v72 = vsel %vm71, %v47, %v48
  %vm73 = vcmask 1046528
  %v74 = vsel %vm73, %v50, %v49
  %vm75 = vcmask 1046533
  %v76 = vsel %vm75, %v72, %v74
  %vm77 = vcmask 1044481
  %v78 = vsel %vm77, %v70, %v76
  %v79 = vrot.slane %v78, 1
  %v82 = vadd.f32 %v32, %v64
  %v83 = vadd.f32 %v33, %v79
  %v84 = vmax.f32 %v82, 0.0
  %v85 = vmax.f32 %v83, 0.0
  %v88 = vperm.slane %v84, 0
  %v89 = vperm.slane %v84, 1
  %v90 = vperm.slane %v84, 2
  %v91 = vperm.slane %v84, 3
  %v92 = vperm.slane %v84, 4
  %v93 = vperm.slane %v84, 5
  %v94 = vperm.slane %v84, 6
  %v95 = vperm.slane %v84, 7
  %v96 = vperm.slane %v85, 0
  %v97 = vperm.slane %v85, 1
  %v98 = vperm.slane %v85, 2
  %v99 = vperm.slane %v85, 3
  %v100 = vperm.slane %v85, 4
  %v101 = vperm.slane %v85, 5
  %v102 = vperm.slane %v85, 6
  %v103 = vperm.slane %v85, 7
  %v120 = vpack.c.bf16 %v88, %v88
  %v121 = vpack.c.bf16 %v89, %v89
  %v122 = vpack.c.bf16 %v90, %v90
  %v123 = vpack.c.bf16 %v91, %v91
  %v124 = vpack.c.bf16 %v92, %v92
  %v125 = vpack.c.bf16 %v93, %v93
  %v126 = vpack.c.bf16 %v94, %v94
  %v127 = vpack.c.bf16 %v95, %v95
  %v128 = vpack.c.bf16 %v96, %v96
  %v129 = vpack.c.bf16 %v97, %v97
  %v130 = vpack.c.bf16 %v98, %v98
  %v131 = vpack.c.bf16 %v99, %v99
  %v132 = vpack.c.bf16 %v100, %v100
  %v133 = vpack.c.bf16 %v101, %v101
  %v134 = vpack.c.bf16 %v102, %v102
  %v135 = vpack.c.bf16 %v103, %v103
  %v136 = vld [vmem:[%s2] sm:$0xff]
  %v137 = vld [vmem:[%s2 + $0x8] sm:$0xff]
  %v138 = vld [vmem:[%s2 + $0x10] sm:$0xff]
  %v139 = vld [vmem:[%s2 + $0x18] sm:$0xff]
  %v140 = vld [vmem:[%s2 + $0x20] sm:$0xff]
  %v141 = vld [vmem:[%s2 + $0x28] sm:$0xff]
  %v142 = vld [vmem:[%s2 + $0x30] sm:$0xff]
  %v143 = vld [vmem:[%s2 + $0x38] sm:$0xff]
  %v144 = vld [vmem:[%s2 + $0x40] sm:$0xff]
  %v145 = vld [vmem:[%s2 + $0x48] sm:$0xff]
  %v146 = vld [vmem:[%s2 + $0x50] sm:$0xff]
  %v147 = vld [vmem:[%s2 + $0x58] sm:$0xff]
  %v148 = vld [vmem:[%s2 + $0x60] sm:$0xff]
  %v149 = vld [vmem:[%s2 + $0x68] sm:$0xff]
  %v150 = vld [vmem:[%s2 + $0x70] sm:$0xff]
  %v151 = vld [vmem:[%s2 + $0x78] sm:$0xff]
  %v152 = vld [vmem:[%s2 + $0x80] sm:$0xff]
  %v153 = vld [vmem:[%s2 + $0x88] sm:$0xff]
  %v154 = vld [vmem:[%s2 + $0x90] sm:$0xff]
  %v155 = vld [vmem:[%s2 + $0x98] sm:$0xff]
  %v156 = vld [vmem:[%s2 + $0xa0] sm:$0xff]
  %v157 = vld [vmem:[%s2 + $0xa8] sm:$0xff]
  %v158 = vld [vmem:[%s2 + $0xb0] sm:$0xff]
  %v159 = vld [vmem:[%s2 + $0xb8] sm:$0xff]
  %v160 = vld [vmem:[%s2 + $0xc0] sm:$0xff]
  %v161 = vld [vmem:[%s2 + $0xc8] sm:$0xff]
  %v162 = vld [vmem:[%s2 + $0xd0] sm:$0xff]
  %v163 = vld [vmem:[%s2 + $0xd8] sm:$0xff]
  %v164 = vld [vmem:[%s2 + $0xe0] sm:$0xff]
  %v165 = vld [vmem:[%s2 + $0xe8] sm:$0xff]
  %v166 = vld [vmem:[%s2 + $0xf0] sm:$0xff]
  %v167 = vld [vmem:[%s2 + $0xf8] sm:$0xff]
  %v168 = vld [vmem:[%s2 + $0x100] sm:$0xff]
  %v169 = vld [vmem:[%s2 + $0x108] sm:$0xff]
  %v170 = vld [vmem:[%s2 + $0x110] sm:$0xff]
  %v171 = vld [vmem:[%s2 + $0x118] sm:$0xff]
  %v172 = vld [vmem:[%s2 + $0x120] sm:$0xff]
  %v173 = vld [vmem:[%s2 + $0x128] sm:$0xff]
  %v174 = vld [vmem:[%s2 + $0x130] sm:$0xff]
  %v175 = vld [vmem:[%s2 + $0x138] sm:$0xff]
  %v176 = vld [vmem:[%s2 + $0x140] sm:$0xff]
  %v177 = vld [vmem:[%s2 + $0x148] sm:$0xff]
  %v178 = vld [vmem:[%s2 + $0x150] sm:$0xff]
  %v179 = vld [vmem:[%s2 + $0x158] sm:$0xff]
  %v180 = vld [vmem:[%s2 + $0x160] sm:$0xff]
  %v181 = vld [vmem:[%s2 + $0x168] sm:$0xff]
  %v182 = vld [vmem:[%s2 + $0x170] sm:$0xff]
  %v183 = vld [vmem:[%s2 + $0x178] sm:$0xff]
  %v184 = vld [vmem:[%s2 + $0x180] sm:$0xff]
  %v185 = vld [vmem:[%s2 + $0x188] sm:$0xff]
  %v186 = vld [vmem:[%s2 + $0x190] sm:$0xff]
  %v187 = vld [vmem:[%s2 + $0x198] sm:$0xff]
  %v188 = vld [vmem:[%s2 + $0x1a0] sm:$0xff]
  %v189 = vld [vmem:[%s2 + $0x1a8] sm:$0xff]
  %v190 = vld [vmem:[%s2 + $0x1b0] sm:$0xff]
  %v191 = vld [vmem:[%s2 + $0x1b8] sm:$0xff]
  %v192 = vld [vmem:[%s2 + $0x1c0] sm:$0xff]
  %v193 = vld [vmem:[%s2 + $0x1c8] sm:$0xff]
  %v194 = vld [vmem:[%s2 + $0x1d0] sm:$0xff]
  %v195 = vld [vmem:[%s2 + $0x1d8] sm:$0xff]
  %v196 = vld [vmem:[%s2 + $0x1e0] sm:$0xff]
  %v197 = vld [vmem:[%s2 + $0x1e8] sm:$0xff]
  %v198 = vld [vmem:[%s2 + $0x1f0] sm:$0xff]
  %v199 = vld [vmem:[%s2 + $0x1f8] sm:$0xff]
  %v200 = vld [vmem:[%s2 + $0x200] sm:$0xff]
  %v201 = vld [vmem:[%s2 + $0x208] sm:$0xff]
  %v202 = vld [vmem:[%s2 + $0x210] sm:$0xff]
  %v203 = vld [vmem:[%s2 + $0x218] sm:$0xff]
  %v204 = vld [vmem:[%s2 + $0x220] sm:$0xff]
  %v205 = vld [vmem:[%s2 + $0x228] sm:$0xff]
  %v206 = vld [vmem:[%s2 + $0x230] sm:$0xff]
  %v207 = vld [vmem:[%s2 + $0x238] sm:$0xff]
  %v208 = vld [vmem:[%s2 + $0x240] sm:$0xff]
  %v209 = vld [vmem:[%s2 + $0x248] sm:$0xff]
  %v210 = vld [vmem:[%s2 + $0x250] sm:$0xff]
  %v211 = vld [vmem:[%s2 + $0x258] sm:$0xff]
  %v212 = vld [vmem:[%s2 + $0x260] sm:$0xff]
  %v213 = vld [vmem:[%s2 + $0x268] sm:$0xff]
  %v214 = vld [vmem:[%s2 + $0x270] sm:$0xff]
  %v215 = vld [vmem:[%s2 + $0x278] sm:$0xff]
  %v216 = vld [vmem:[%s2 + $0x280] sm:$0xff]
  %v217 = vld [vmem:[%s2 + $0x288] sm:$0xff]
  %v218 = vld [vmem:[%s2 + $0x290] sm:$0xff]
  %v219 = vld [vmem:[%s2 + $0x298] sm:$0xff]
  %v220 = vld [vmem:[%s2 + $0x2a0] sm:$0xff]
  %v221 = vld [vmem:[%s2 + $0x2a8] sm:$0xff]
  %v222 = vld [vmem:[%s2 + $0x2b0] sm:$0xff]
  %v223 = vld [vmem:[%s2 + $0x2b8] sm:$0xff]
  %v224 = vld [vmem:[%s2 + $0x2c0] sm:$0xff]
  %v225 = vld [vmem:[%s2 + $0x2c8] sm:$0xff]
  %v226 = vld [vmem:[%s2 + $0x2d0] sm:$0xff]
  %v227 = vld [vmem:[%s2 + $0x2d8] sm:$0xff]
  %v228 = vld [vmem:[%s2 + $0x2e0] sm:$0xff]
  %v229 = vld [vmem:[%s2 + $0x2e8] sm:$0xff]
  %v230 = vld [vmem:[%s2 + $0x2f0] sm:$0xff]
  %v231 = vld [vmem:[%s2 + $0x2f8] sm:$0xff]
  %v232 = vld [vmem:[%s2 + $0x300] sm:$0xff]
  %v233 = vld [vmem:[%s2 + $0x308] sm:$0xff]
  %v234 = vld [vmem:[%s2 + $0x310] sm:$0xff]
  %v235 = vld [vmem:[%s2 + $0x318] sm:$0xff]
  %v236 = vld [vmem:[%s2 + $0x320] sm:$0xff]
  %v237 = vld [vmem:[%s2 + $0x328] sm:$0xff]
  %v238 = vld [vmem:[%s2 + $0x330] sm:$0xff]
  %v239 = vld [vmem:[%s2 + $0x338] sm:$0xff]
  %v240 = vld [vmem:[%s2 + $0x340] sm:$0xff]
  %v241 = vld [vmem:[%s2 + $0x348] sm:$0xff]
  %v242 = vld [vmem:[%s2 + $0x350] sm:$0xff]
  %v243 = vld [vmem:[%s2 + $0x358] sm:$0xff]
  %v244 = vld [vmem:[%s2 + $0x360] sm:$0xff]
  %v245 = vld [vmem:[%s2 + $0x368] sm:$0xff]
  %v246 = vld [vmem:[%s2 + $0x370] sm:$0xff]
  %v247 = vld [vmem:[%s2 + $0x378] sm:$0xff]
  %v248 = vld [vmem:[%s2 + $0x380] sm:$0xff]
  %v249 = vld [vmem:[%s2 + $0x388] sm:$0xff]
  %v250 = vld [vmem:[%s2 + $0x390] sm:$0xff]
  %v251 = vld [vmem:[%s2 + $0x398] sm:$0xff]
  %v252 = vld [vmem:[%s2 + $0x3a0] sm:$0xff]
  %v253 = vld [vmem:[%s2 + $0x3a8] sm:$0xff]
  %v254 = vld [vmem:[%s2 + $0x3b0] sm:$0xff]
  %v255 = vld [vmem:[%s2 + $0x3b8] sm:$0xff]
  %v256 = vld [vmem:[%s2 + $0x3c0] sm:$0xff]
  %v257 = vld [vmem:[%s2 + $0x3c8] sm:$0xff]
  %v258 = vld [vmem:[%s2 + $0x3d0] sm:$0xff]
  %v259 = vld [vmem:[%s2 + $0x3d8] sm:$0xff]
  %v260 = vld [vmem:[%s2 + $0x3e0] sm:$0xff]
  %v261 = vld [vmem:[%s2 + $0x3e8] sm:$0xff]
  %v262 = vld [vmem:[%s2 + $0x3f0] sm:$0xff]
  %v263 = vld [vmem:[%s2 + $0x3f8] sm:$0xff]
  %v264 = vld [vmem:[%s2 + $0x400] sm:$0xff]
  %v265 = vld [vmem:[%s2 + $0x408] sm:$0xff]
  %v266 = vld [vmem:[%s2 + $0x410] sm:$0xff]
  %v267 = vld [vmem:[%s2 + $0x418] sm:$0xff]
  %v268 = vld [vmem:[%s2 + $0x420] sm:$0xff]
  %v269 = vld [vmem:[%s2 + $0x428] sm:$0xff]
  %v270 = vld [vmem:[%s2 + $0x430] sm:$0xff]
  %v271 = vld [vmem:[%s2 + $0x438] sm:$0xff]
  %v272 = vld [vmem:[%s2 + $0x440] sm:$0xff]
  %v273 = vld [vmem:[%s2 + $0x448] sm:$0xff]
  %v274 = vld [vmem:[%s2 + $0x450] sm:$0xff]
  %v275 = vld [vmem:[%s2 + $0x458] sm:$0xff]
  %v276 = vld [vmem:[%s2 + $0x460] sm:$0xff]
  %v277 = vld [vmem:[%s2 + $0x468] sm:$0xff]
  %v278 = vld [vmem:[%s2 + $0x470] sm:$0xff]
  %v279 = vld [vmem:[%s2 + $0x478] sm:$0xff]
  %v280 = vld [vmem:[%s2 + $0x480] sm:$0xff]
  %v281 = vld [vmem:[%s2 + $0x488] sm:$0xff]
  %v282 = vld [vmem:[%s2 + $0x490] sm:$0xff]
  %v283 = vld [vmem:[%s2 + $0x498] sm:$0xff]
  %v284 = vld [vmem:[%s2 + $0x4a0] sm:$0xff]
  %v285 = vld [vmem:[%s2 + $0x4a8] sm:$0xff]
  %v286 = vld [vmem:[%s2 + $0x4b0] sm:$0xff]
  %v287 = vld [vmem:[%s2 + $0x4b8] sm:$0xff]
  %v288 = vld [vmem:[%s2 + $0x4c0] sm:$0xff]
  %v289 = vld [vmem:[%s2 + $0x4c8] sm:$0xff]
  %v290 = vld [vmem:[%s2 + $0x4d0] sm:$0xff]
  %v291 = vld [vmem:[%s2 + $0x4d8] sm:$0xff]
  %v292 = vld [vmem:[%s2 + $0x4e0] sm:$0xff]
  %v293 = vld [vmem:[%s2 + $0x4e8] sm:$0xff]
  %v294 = vld [vmem:[%s2 + $0x4f0] sm:$0xff]
  %v295 = vld [vmem:[%s2 + $0x4f8] sm:$0xff]
  %v296 = vld [vmem:[%s2 + $0x500] sm:$0xff]
  %v297 = vld [vmem:[%s2 + $0x508] sm:$0xff]
  %v298 = vld [vmem:[%s2 + $0x510] sm:$0xff]
  %v299 = vld [vmem:[%s2 + $0x518] sm:$0xff]
  %v300 = vld [vmem:[%s2 + $0x520] sm:$0xff]
  %v301 = vld [vmem:[%s2 + $0x528] sm:$0xff]
  %v302 = vld [vmem:[%s2 + $0x530] sm:$0xff]
  %v303 = vld [vmem:[%s2 + $0x538] sm:$0xff]
  %v304 = vld [vmem:[%s2 + $0x540] sm:$0xff]
  %v305 = vld [vmem:[%s2 + $0x548] sm:$0xff]
  %v306 = vld [vmem:[%s2 + $0x550] sm:$0xff]
  %v307 = vld [vmem:[%s2 + $0x558] sm:$0xff]
  %v308 = vld [vmem:[%s2 + $0x560] sm:$0xff]
  %v309 = vld [vmem:[%s2 + $0x568] sm:$0xff]
  %v310 = vld [vmem:[%s2 + $0x570] sm:$0xff]
  %v311 = vld [vmem:[%s2 + $0x578] sm:$0xff]
  %v312 = vld [vmem:[%s2 + $0x580] sm:$0xff]
  %v313 = vld [vmem:[%s2 + $0x588] sm:$0xff]
  %v314 = vld [vmem:[%s2 + $0x590] sm:$0xff]
  %v315 = vld [vmem:[%s2 + $0x598] sm:$0xff]
  %v316 = vld [vmem:[%s2 + $0x5a0] sm:$0xff]
  %v317 = vld [vmem:[%s2 + $0x5a8] sm:$0xff]
  %v318 = vld [vmem:[%s2 + $0x5b0] sm:$0xff]
  %v319 = vld [vmem:[%s2 + $0x5b8] sm:$0xff]
  %v320 = vld [vmem:[%s2 + $0x5c0] sm:$0xff]
  %v321 = vld [vmem:[%s2 + $0x5c8] sm:$0xff]
  %v322 = vld [vmem:[%s2 + $0x5d0] sm:$0xff]
  %v323 = vld [vmem:[%s2 + $0x5d8] sm:$0xff]
  %v324 = vld [vmem:[%s2 + $0x5e0] sm:$0xff]
  %v325 = vld [vmem:[%s2 + $0x5e8] sm:$0xff]
  %v326 = vld [vmem:[%s2 + $0x5f0] sm:$0xff]
  %v327 = vld [vmem:[%s2 + $0x5f8] sm:$0xff]
  %v328 = vld [vmem:[%s2 + $0x600] sm:$0xff]
  %v329 = vld [vmem:[%s2 + $0x608] sm:$0xff]
  %v330 = vld [vmem:[%s2 + $0x610] sm:$0xff]
  %v331 = vld [vmem:[%s2 + $0x618] sm:$0xff]
  %v332 = vld [vmem:[%s2 + $0x620] sm:$0xff]
  %v333 = vld [vmem:[%s2 + $0x628] sm:$0xff]
  %v334 = vld [vmem:[%s2 + $0x630] sm:$0xff]
  %v335 = vld [vmem:[%s2 + $0x638] sm:$0xff]
  %v336 = vld [vmem:[%s2 + $0x640] sm:$0xff]
  %v337 = vld [vmem:[%s2 + $0x648] sm:$0xff]
  %v338 = vld [vmem:[%s2 + $0x650] sm:$0xff]
  %v339 = vld [vmem:[%s2 + $0x658] sm:$0xff]
  %v340 = vld [vmem:[%s2 + $0x660] sm:$0xff]
  %v341 = vld [vmem:[%s2 + $0x668] sm:$0xff]
  %v342 = vld [vmem:[%s2 + $0x670] sm:$0xff]
  %v343 = vld [vmem:[%s2 + $0x678] sm:$0xff]
  %v344 = vld [vmem:[%s2 + $0x680] sm:$0xff]
  %v345 = vld [vmem:[%s2 + $0x688] sm:$0xff]
  %v346 = vld [vmem:[%s2 + $0x690] sm:$0xff]
  %v347 = vld [vmem:[%s2 + $0x698] sm:$0xff]
  %v348 = vld [vmem:[%s2 + $0x6a0] sm:$0xff]
  %v349 = vld [vmem:[%s2 + $0x6a8] sm:$0xff]
  %v350 = vld [vmem:[%s2 + $0x6b0] sm:$0xff]
  %v351 = vld [vmem:[%s2 + $0x6b8] sm:$0xff]
  %v352 = vld [vmem:[%s2 + $0x6c0] sm:$0xff]
  %v353 = vld [vmem:[%s2 + $0x6c8] sm:$0xff]
  %v354 = vld [vmem:[%s2 + $0x6d0] sm:$0xff]
  %v355 = vld [vmem:[%s2 + $0x6d8] sm:$0xff]
  %v356 = vld [vmem:[%s2 + $0x6e0] sm:$0xff]
  %v357 = vld [vmem:[%s2 + $0x6e8] sm:$0xff]
  %v358 = vld [vmem:[%s2 + $0x6f0] sm:$0xff]
  %v359 = vld [vmem:[%s2 + $0x6f8] sm:$0xff]
  %v360 = vld [vmem:[%s2 + $0x700] sm:$0xff]
  %v361 = vld [vmem:[%s2 + $0x708] sm:$0xff]
  %v362 = vld [vmem:[%s2 + $0x710] sm:$0xff]
  %v363 = vld [vmem:[%s2 + $0x718] sm:$0xff]
  %v364 = vld [vmem:[%s2 + $0x720] sm:$0xff]
  %v365 = vld [vmem:[%s2 + $0x728] sm:$0xff]
  %v366 = vld [vmem:[%s2 + $0x730] sm:$0xff]
  %v367 = vld [vmem:[%s2 + $0x738] sm:$0xff]
  %v368 = vld [vmem:[%s2 + $0x740] sm:$0xff]
  %v369 = vld [vmem:[%s2 + $0x748] sm:$0xff]
  %v370 = vld [vmem:[%s2 + $0x750] sm:$0xff]
  %v371 = vld [vmem:[%s2 + $0x758] sm:$0xff]
  %v372 = vld [vmem:[%s2 + $0x760] sm:$0xff]
  %v373 = vld [vmem:[%s2 + $0x768] sm:$0xff]
  %v374 = vld [vmem:[%s2 + $0x770] sm:$0xff]
  %v375 = vld [vmem:[%s2 + $0x778] sm:$0xff]
  %v376 = vld [vmem:[%s2 + $0x780] sm:$0xff]
  %v377 = vld [vmem:[%s2 + $0x788] sm:$0xff]
  %v378 = vld [vmem:[%s2 + $0x790] sm:$0xff]
  %v379 = vld [vmem:[%s2 + $0x798] sm:$0xff]
  %v380 = vld [vmem:[%s2 + $0x7a0] sm:$0xff]
  %v381 = vld [vmem:[%s2 + $0x7a8] sm:$0xff]
  %v382 = vld [vmem:[%s2 + $0x7b0] sm:$0xff]
  %v383 = vld [vmem:[%s2 + $0x7b8] sm:$0xff]
  %v384 = vld [vmem:[%s2 + $0x7c0] sm:$0xff]
  %v385 = vld [vmem:[%s2 + $0x7c8] sm:$0xff]
  %v386 = vld [vmem:[%s2 + $0x7d0] sm:$0xff]
  %v387 = vld [vmem:[%s2 + $0x7d8] sm:$0xff]
  %v388 = vld [vmem:[%s2 + $0x7e0] sm:$0xff]
  %v389 = vld [vmem:[%s2 + $0x7e8] sm:$0xff]
  %v390 = vld [vmem:[%s2 + $0x7f0] sm:$0xff]
  %v391 = vld [vmem:[%s2 + $0x7f8] sm:$0xff]
  %v392 = vld [vmem:[%s3] sm:$0xf]
  %v394 = vperm.slane %v392, 0
  %v395 = vperm.slane %v392, 1
  %v396 = vperm.slane %v392, 2
  %v397 = vperm.slane %v392, 3
  %v418 = vunpack.c.l.b16 %v120
  %v419 = vunpack.c.l.b16 %v121
  %v420 = vunpack.c.l.b16 %v122
  %v421 = vunpack.c.l.b16 %v123
  %v422 = vunpack.c.l.b16 %v124
  %v423 = vunpack.c.l.b16 %v125
  %v424 = vunpack.c.l.b16 %v126
  %v425 = vunpack.c.l.b16 %v127
  %v426 = vunpack.c.l.b16 %v128
  %v427 = vunpack.c.l.b16 %v129
  %v428 = vunpack.c.l.b16 %v130
  %v429 = vunpack.c.l.b16 %v131
  %v430 = vunpack.c.l.b16 %v132
  %v431 = vunpack.c.l.b16 %v133
  %v432 = vunpack.c.l.b16 %v134
  %v433 = vunpack.c.l.b16 %v135
  %v434 = vrot.slane %v426, 7
  %v435 = vsel %vm65, %v434, %v418
  %v436 = vrot.slane %v427, 7
  %v437 = vsel %vm65, %v436, %v419
  %v438 = vrot.slane %v428, 7
  %v439 = vsel %vm65, %v438, %v420
  %v440 = vrot.slane %v429, 7
  %v441 = vsel %vm65, %v440, %v421
  %v442 = vrot.slane %v430, 7
  %v443 = vsel %vm65, %v442, %v422
  %v444 = vrot.slane %v431, 7
  %v445 = vsel %vm65, %v444, %v423
  %v446 = vrot.slane %v432, 7
  %v447 = vsel %vm65, %v446, %v424
  %v448 = vrot.slane %v433, 7
  %v449 = vsel %vm65, %v448, %v425
  %v450 = vpack.c.b16 %v435, %v435
  %v451 = vpack.c.b16 %v437, %v437
  %v452 = vpack.c.b16 %v439, %v439
  %v453 = vpack.c.b16 %v441, %v441
  %v454 = vpack.c.b16 %v443, %v443
  %v455 = vpack.c.b16 %v445, %v445
  %v456 = vpack.c.b16 %v447, %v447
  %v457 = vpack.c.b16 %v449, %v449
  %v722 = vunpack.c.l.b16 %v136
  %v723 = vunpack.c.h.b16 %v136
  %v724 = vunpack.c.l.b16 %v137
  %v725 = vunpack.c.h.b16 %v137
  %v726 = vunpack.c.l.b16 %v138
  %v727 = vunpack.c.h.b16 %v138
  %v728 = vunpack.c.l.b16 %v139
  %v729 = vunpack.c.h.b16 %v139
  %v730 = vunpack.c.l.b16 %v140
  %v731 = vunpack.c.h.b16 %v140
  %v732 = vunpack.c.l.b16 %v141
  %v733 = vunpack.c.h.b16 %v141
  %v734 = vunpack.c.l.b16 %v142
  %v735 = vunpack.c.h.b16 %v142
  %v736 = vunpack.c.l.b16 %v143
  %v737 = vunpack.c.h.b16 %v143
  %v738 = vunpack.c.l.b16 %v144
  %v739 = vunpack.c.h.b16 %v144
  %v740 = vunpack.c.l.b16 %v145
  %v741 = vunpack.c.h.b16 %v145
  %v742 = vunpack.c.l.b16 %v146
  %v743 = vunpack.c.h.b16 %v146
  %v744 = vunpack.c.l.b16 %v147
  %v745 = vunpack.c.h.b16 %v147
  %v746 = vunpack.c.l.b16 %v148
  %v747 = vunpack.c.h.b16 %v148
  %v748 = vunpack.c.l.b16 %v149
  %v749 = vunpack.c.h.b16 %v149
  %v750 = vunpack.c.l.b16 %v150
  %v751 = vunpack.c.h.b16 %v150
  %v752 = vunpack.c.l.b16 %v151
  %v753 = vunpack.c.h.b16 %v151
  %v754 = vunpack.c.l.b16 %v152
  %v755 = vunpack.c.h.b16 %v152
  %v756 = vunpack.c.l.b16 %v153
  %v757 = vunpack.c.h.b16 %v153
  %v758 = vunpack.c.l.b16 %v154
  %v759 = vunpack.c.h.b16 %v154
  %v760 = vunpack.c.l.b16 %v155
  %v761 = vunpack.c.h.b16 %v155
  %v762 = vunpack.c.l.b16 %v156
  %v763 = vunpack.c.h.b16 %v156
  %v764 = vunpack.c.l.b16 %v157
  %v765 = vunpack.c.h.b16 %v157
  %v766 = vunpack.c.l.b16 %v158
  %v767 = vunpack.c.h.b16 %v158
  %v768 = vunpack.c.l.b16 %v159
  %v769 = vunpack.c.h.b16 %v159
  %v770 = vunpack.c.l.b16 %v160
  %v771 = vunpack.c.h.b16 %v160
  %v772 = vunpack.c.l.b16 %v161
  %v773 = vunpack.c.h.b16 %v161
  %v774 = vunpack.c.l.b16 %v162
  %v775 = vunpack.c.h.b16 %v162
  %v776 = vunpack.c.l.b16 %v163
  %v777 = vunpack.c.h.b16 %v163
  %v778 = vunpack.c.l.b16 %v164
  %v779 = vunpack.c.h.b16 %v164
  %v780 = vunpack.c.l.b16 %v165
  %v781 = vunpack.c.h.b16 %v165
  %v782 = vunpack.c.l.b16 %v166
  %v783 = vunpack.c.h.b16 %v166
  %v784 = vunpack.c.l.b16 %v167
  %v785 = vunpack.c.h.b16 %v167
  %v786 = vunpack.c.l.b16 %v168
  %v787 = vunpack.c.h.b16 %v168
  %v788 = vunpack.c.l.b16 %v169
  %v789 = vunpack.c.h.b16 %v169
  %v790 = vunpack.c.l.b16 %v170
  %v791 = vunpack.c.h.b16 %v170
  %v792 = vunpack.c.l.b16 %v171
  %v793 = vunpack.c.h.b16 %v171
  %v794 = vunpack.c.l.b16 %v172
  %v795 = vunpack.c.h.b16 %v172
  %v796 = vunpack.c.l.b16 %v173
  %v797 = vunpack.c.h.b16 %v173
  %v798 = vunpack.c.l.b16 %v174
  %v799 = vunpack.c.h.b16 %v174
  %v800 = vunpack.c.l.b16 %v175
  %v801 = vunpack.c.h.b16 %v175
  %v802 = vunpack.c.l.b16 %v176
  %v803 = vunpack.c.h.b16 %v176
  %v804 = vunpack.c.l.b16 %v177
  %v805 = vunpack.c.h.b16 %v177
  %v806 = vunpack.c.l.b16 %v178
  %v807 = vunpack.c.h.b16 %v178
  %v808 = vunpack.c.l.b16 %v179
  %v809 = vunpack.c.h.b16 %v179
  %v810 = vunpack.c.l.b16 %v180
  %v811 = vunpack.c.h.b16 %v180
  %v812 = vunpack.c.l.b16 %v181
  %v813 = vunpack.c.h.b16 %v181
  %v814 = vunpack.c.l.b16 %v182
  %v815 = vunpack.c.h.b16 %v182
  %v816 = vunpack.c.l.b16 %v183
  %v817 = vunpack.c.h.b16 %v183
  %v818 = vunpack.c.l.b16 %v184
  %v819 = vunpack.c.h.b16 %v184
  %v820 = vunpack.c.l.b16 %v185
  %v821 = vunpack.c.h.b16 %v185
  %v822 = vunpack.c.l.b16 %v186
  %v823 = vunpack.c.h.b16 %v186
  %v824 = vunpack.c.l.b16 %v187
  %v825 = vunpack.c.h.b16 %v187
  %v826 = vunpack.c.l.b16 %v188
  %v827 = vunpack.c.h.b16 %v188
  %v828 = vunpack.c.l.b16 %v189
  %v829 = vunpack.c.h.b16 %v189
  %v830 = vunpack.c.l.b16 %v190
  %v831 = vunpack.c.h.b16 %v190
  %v832 = vunpack.c.l.b16 %v191
  %v833 = vunpack.c.h.b16 %v191
  %v834 = vunpack.c.l.b16 %v192
  %v835 = vunpack.c.h.b16 %v192
  %v836 = vunpack.c.l.b16 %v193
  %v837 = vunpack.c.h.b16 %v193
  %v838 = vunpack.c.l.b16 %v194
  %v839 = vunpack.c.h.b16 %v194
  %v840 = vunpack.c.l.b16 %v195
  %v841 = vunpack.c.h.b16 %v195
  %v842 = vunpack.c.l.b16 %v196
  %v843 = vunpack.c.h.b16 %v196
  %v844 = vunpack.c.l.b16 %v197
  %v845 = vunpack.c.h.b16 %v197
  %v846 = vunpack.c.l.b16 %v198
  %v847 = vunpack.c.h.b16 %v198
  %v848 = vunpack.c.l.b16 %v199
  %v849 = vunpack.c.h.b16 %v199
  %v850 = vunpack.c.l.b16 %v200
  %v851 = vunpack.c.h.b16 %v200
  %v852 = vunpack.c.l.b16 %v201
  %v853 = vunpack.c.h.b16 %v201
  %v854 = vunpack.c.l.b16 %v202
  %v855 = vunpack.c.h.b16 %v202
  %v856 = vunpack.c.l.b16 %v203
  %v857 = vunpack.c.h.b16 %v203
  %v858 = vunpack.c.l.b16 %v204
  %v859 = vunpack.c.h.b16 %v204
  %v860 = vunpack.c.l.b16 %v205
  %v861 = vunpack.c.h.b16 %v205
  %v862 = vunpack.c.l.b16 %v206
  %v863 = vunpack.c.h.b16 %v206
  %v864 = vunpack.c.l.b16 %v207
  %v865 = vunpack.c.h.b16 %v207
  %v866 = vunpack.c.l.b16 %v208
  %v867 = vunpack.c.h.b16 %v208
  %v868 = vunpack.c.l.b16 %v209
  %v869 = vunpack.c.h.b16 %v209
  %v870 = vunpack.c.l.b16 %v210
  %v871 = vunpack.c.h.b16 %v210
  %v872 = vunpack.c.l.b16 %v211
  %v873 = vunpack.c.h.b16 %v211
  %v874 = vunpack.c.l.b16 %v212
  %v875 = vunpack.c.h.b16 %v212
  %v876 = vunpack.c.l.b16 %v213
  %v877 = vunpack.c.h.b16 %v213
  %v878 = vunpack.c.l.b16 %v214
  %v879 = vunpack.c.h.b16 %v214
  %v880 = vunpack.c.l.b16 %v215
  %v881 = vunpack.c.h.b16 %v215
  %v882 = vunpack.c.l.b16 %v216
  %v883 = vunpack.c.h.b16 %v216
  %v884 = vunpack.c.l.b16 %v217
  %v885 = vunpack.c.h.b16 %v217
  %v886 = vunpack.c.l.b16 %v218
  %v887 = vunpack.c.h.b16 %v218
  %v888 = vunpack.c.l.b16 %v219
  %v889 = vunpack.c.h.b16 %v219
  %v890 = vunpack.c.l.b16 %v220
  %v891 = vunpack.c.h.b16 %v220
  %v892 = vunpack.c.l.b16 %v221
  %v893 = vunpack.c.h.b16 %v221
  %v894 = vunpack.c.l.b16 %v222
  %v895 = vunpack.c.h.b16 %v222
  %v896 = vunpack.c.l.b16 %v223
  %v897 = vunpack.c.h.b16 %v223
  %v898 = vunpack.c.l.b16 %v224
  %v899 = vunpack.c.h.b16 %v224
  %v900 = vunpack.c.l.b16 %v225
  %v901 = vunpack.c.h.b16 %v225
  %v902 = vunpack.c.l.b16 %v226
  %v903 = vunpack.c.h.b16 %v226
  %v904 = vunpack.c.l.b16 %v227
  %v905 = vunpack.c.h.b16 %v227
  %v906 = vunpack.c.l.b16 %v228
  %v907 = vunpack.c.h.b16 %v228
  %v908 = vunpack.c.l.b16 %v229
  %v909 = vunpack.c.h.b16 %v229
  %v910 = vunpack.c.l.b16 %v230
  %v911 = vunpack.c.h.b16 %v230
  %v912 = vunpack.c.l.b16 %v231
  %v913 = vunpack.c.h.b16 %v231
  %v914 = vunpack.c.l.b16 %v232
  %v915 = vunpack.c.h.b16 %v232
  %v916 = vunpack.c.l.b16 %v233
  %v917 = vunpack.c.h.b16 %v233
  %v918 = vunpack.c.l.b16 %v234
  %v919 = vunpack.c.h.b16 %v234
  %v920 = vunpack.c.l.b16 %v235
  %v921 = vunpack.c.h.b16 %v235
  %v922 = vunpack.c.l.b16 %v236
  %v923 = vunpack.c.h.b16 %v236
  %v924 = vunpack.c.l.b16 %v237
  %v925 = vunpack.c.h.b16 %v237
  %v926 = vunpack.c.l.b16 %v238
  %v927 = vunpack.c.h.b16 %v238
  %v928 = vunpack.c.l.b16 %v239
  %v929 = vunpack.c.h.b16 %v239
  %v930 = vunpack.c.l.b16 %v240
  %v931 = vunpack.c.h.b16 %v240
  %v932 = vunpack.c.l.b16 %v241
  %v933 = vunpack.c.h.b16 %v241
  %v934 = vunpack.c.l.b16 %v242
  %v935 = vunpack.c.h.b16 %v242
  %v936 = vunpack.c.l.b16 %v243
  %v937 = vunpack.c.h.b16 %v243
  %v938 = vunpack.c.l.b16 %v244
  %v939 = vunpack.c.h.b16 %v244
  %v940 = vunpack.c.l.b16 %v245
  %v941 = vunpack.c.h.b16 %v245
  %v942 = vunpack.c.l.b16 %v246
  %v943 = vunpack.c.h.b16 %v246
  %v944 = vunpack.c.l.b16 %v247
  %v945 = vunpack.c.h.b16 %v247
  %v946 = vunpack.c.l.b16 %v248
  %v947 = vunpack.c.h.b16 %v248
  %v948 = vunpack.c.l.b16 %v249
  %v949 = vunpack.c.h.b16 %v249
  %v950 = vunpack.c.l.b16 %v250
  %v951 = vunpack.c.h.b16 %v250
  %v952 = vunpack.c.l.b16 %v251
  %v953 = vunpack.c.h.b16 %v251
  %v954 = vunpack.c.l.b16 %v252
  %v955 = vunpack.c.h.b16 %v252
  %v956 = vunpack.c.l.b16 %v253
  %v957 = vunpack.c.h.b16 %v253
  %v958 = vunpack.c.l.b16 %v254
  %v959 = vunpack.c.h.b16 %v254
  %v960 = vunpack.c.l.b16 %v255
  %v961 = vunpack.c.h.b16 %v255
  %v962 = vunpack.c.l.b16 %v256
  %v963 = vunpack.c.h.b16 %v256
  %v964 = vunpack.c.l.b16 %v257
  %v965 = vunpack.c.h.b16 %v257
  %v966 = vunpack.c.l.b16 %v258
  %v967 = vunpack.c.h.b16 %v258
  %v968 = vunpack.c.l.b16 %v259
  %v969 = vunpack.c.h.b16 %v259
  %v970 = vunpack.c.l.b16 %v260
  %v971 = vunpack.c.h.b16 %v260
  %v972 = vunpack.c.l.b16 %v261
  %v973 = vunpack.c.h.b16 %v261
  %v974 = vunpack.c.l.b16 %v262
  %v975 = vunpack.c.h.b16 %v262
  %v976 = vunpack.c.l.b16 %v263
  %v977 = vunpack.c.h.b16 %v263
  %v978 = vunpack.c.l.b16 %v264
  %v979 = vunpack.c.h.b16 %v264
  %v980 = vunpack.c.l.b16 %v265
  %v981 = vunpack.c.h.b16 %v265
  %v982 = vunpack.c.l.b16 %v266
  %v983 = vunpack.c.h.b16 %v266
  %v984 = vunpack.c.l.b16 %v267
  %v985 = vunpack.c.h.b16 %v267
  %v986 = vunpack.c.l.b16 %v268
  %v987 = vunpack.c.h.b16 %v268
  %v988 = vunpack.c.l.b16 %v269
  %v989 = vunpack.c.h.b16 %v269
  %v990 = vunpack.c.l.b16 %v270
  %v991 = vunpack.c.h.b16 %v270
  %v992 = vunpack.c.l.b16 %v271
  %v993 = vunpack.c.h.b16 %v271
  %v994 = vunpack.c.l.b16 %v272
  %v995 = vunpack.c.h.b16 %v272
  %v996 = vunpack.c.l.b16 %v273
  %v997 = vunpack.c.h.b16 %v273
  %v998 = vunpack.c.l.b16 %v274
  %v999 = vunpack.c.h.b16 %v274
  %v1000 = vunpack.c.l.b16 %v275
  %v1001 = vunpack.c.h.b16 %v275
  %v1002 = vunpack.c.l.b16 %v276
  %v1003 = vunpack.c.h.b16 %v276
  %v1004 = vunpack.c.l.b16 %v277
  %v1005 = vunpack.c.h.b16 %v277
  %v1006 = vunpack.c.l.b16 %v278
  %v1007 = vunpack.c.h.b16 %v278
  %v1008 = vunpack.c.l.b16 %v279
  %v1009 = vunpack.c.h.b16 %v279
  %v1010 = vunpack.c.l.b16 %v280
  %v1011 = vunpack.c.h.b16 %v280
  %v1012 = vunpack.c.l.b16 %v281
  %v1013 = vunpack.c.h.b16 %v281
  %v1014 = vunpack.c.l.b16 %v282
  %v1015 = vunpack.c.h.b16 %v282
  %v1016 = vunpack.c.l.b16 %v283
  %v1017 = vunpack.c.h.b16 %v283
  %v1018 = vunpack.c.l.b16 %v284
  %v1019 = vunpack.c.h.b16 %v284
  %v1020 = vunpack.c.l.b16 %v285
  %v1021 = vunpack.c.h.b16 %v285
  %v1022 = vunpack.c.l.b16 %v286
  %v1023 = vunpack.c.h.b16 %v286
  %v1024 = vunpack.c.l.b16 %v287
  %v1025 = vunpack.c.h.b16 %v287
  %v1026 = vunpack.c.l.b16 %v288
  %v1027 = vunpack.c.h.b16 %v288
  %v1028 = vunpack.c.l.b16 %v289
  %v1029 = vunpack.c.h.b16 %v289
  %v1030 = vunpack.c.l.b16 %v290
  %v1031 = vunpack.c.h.b16 %v290
  %v1032 = vunpack.c.l.b16 %v291
  %v1033 = vunpack.c.h.b16 %v291
  %v1034 = vunpack.c.l.b16 %v292
  %v1035 = vunpack.c.h.b16 %v292
  %v1036 = vunpack.c.l.b16 %v293
  %v1037 = vunpack.c.h.b16 %v293
  %v1038 = vunpack.c.l.b16 %v294
  %v1039 = vunpack.c.h.b16 %v294
  %v1040 = vunpack.c.l.b16 %v295
  %v1041 = vunpack.c.h.b16 %v295
  %v1042 = vunpack.c.l.b16 %v296
  %v1043 = vunpack.c.h.b16 %v296
  %v1044 = vunpack.c.l.b16 %v297
  %v1045 = vunpack.c.h.b16 %v297
  %v1046 = vunpack.c.l.b16 %v298
  %v1047 = vunpack.c.h.b16 %v298
  %v1048 = vunpack.c.l.b16 %v299
  %v1049 = vunpack.c.h.b16 %v299
  %v1050 = vunpack.c.l.b16 %v300
  %v1051 = vunpack.c.h.b16 %v300
  %v1052 = vunpack.c.l.b16 %v301
  %v1053 = vunpack.c.h.b16 %v301
  %v1054 = vunpack.c.l.b16 %v302
  %v1055 = vunpack.c.h.b16 %v302
  %v1056 = vunpack.c.l.b16 %v303
  %v1057 = vunpack.c.h.b16 %v303
  %v1058 = vunpack.c.l.b16 %v304
  %v1059 = vunpack.c.h.b16 %v304
  %v1060 = vunpack.c.l.b16 %v305
  %v1061 = vunpack.c.h.b16 %v305
  %v1062 = vunpack.c.l.b16 %v306
  %v1063 = vunpack.c.h.b16 %v306
  %v1064 = vunpack.c.l.b16 %v307
  %v1065 = vunpack.c.h.b16 %v307
  %v1066 = vunpack.c.l.b16 %v308
  %v1067 = vunpack.c.h.b16 %v308
  %v1068 = vunpack.c.l.b16 %v309
  %v1069 = vunpack.c.h.b16 %v309
  %v1070 = vunpack.c.l.b16 %v310
  %v1071 = vunpack.c.h.b16 %v310
  %v1072 = vunpack.c.l.b16 %v311
  %v1073 = vunpack.c.h.b16 %v311
  %v1074 = vunpack.c.l.b16 %v312
  %v1075 = vunpack.c.h.b16 %v312
  %v1076 = vunpack.c.l.b16 %v313
  %v1077 = vunpack.c.h.b16 %v313
  %v1078 = vunpack.c.l.b16 %v314
  %v1079 = vunpack.c.h.b16 %v314
  %v1080 = vunpack.c.l.b16 %v315
  %v1081 = vunpack.c.h.b16 %v315
  %v1082 = vunpack.c.l.b16 %v316
  %v1083 = vunpack.c.h.b16 %v316
  %v1084 = vunpack.c.l.b16 %v317
  %v1085 = vunpack.c.h.b16 %v317
  %v1086 = vunpack.c.l.b16 %v318
  %v1087 = vunpack.c.h.b16 %v318
  %v1088 = vunpack.c.l.b16 %v319
  %v1089 = vunpack.c.h.b16 %v319
  %v1090 = vunpack.c.l.b16 %v320
  %v1091 = vunpack.c.h.b16 %v320
  %v1092 = vunpack.c.l.b16 %v321
  %v1093 = vunpack.c.h.b16 %v321
  %v1094 = vunpack.c.l.b16 %v322
  %v1095 = vunpack.c.h.b16 %v322
  %v1096 = vunpack.c.l.b16 %v323
  %v1097 = vunpack.c.h.b16 %v323
  %v1098 = vunpack.c.l.b16 %v324
  %v1099 = vunpack.c.h.b16 %v324
  %v1100 = vunpack.c.l.b16 %v325
  %v1101 = vunpack.c.h.b16 %v325
  %v1102 = vunpack.c.l.b16 %v326
  %v1103 = vunpack.c.h.b16 %v326
  %v1104 = vunpack.c.l.b16 %v327
  %v1105 = vunpack.c.h.b16 %v327
  %v1106 = vunpack.c.l.b16 %v328
  %v1107 = vunpack.c.h.b16 %v328
  %v1108 = vunpack.c.l.b16 %v329
  %v1109 = vunpack.c.h.b16 %v329
  %v1110 = vunpack.c.l.b16 %v330
  %v1111 = vunpack.c.h.b16 %v330
  %v1112 = vunpack.c.l.b16 %v331
  %v1113 = vunpack.c.h.b16 %v331
  %v1114 = vunpack.c.l.b16 %v332
  %v1115 = vunpack.c.h.b16 %v332
  %v1116 = vunpack.c.l.b16 %v333
  %v1117 = vunpack.c.h.b16 %v333
  %v1118 = vunpack.c.l.b16 %v334
  %v1119 = vunpack.c.h.b16 %v334
  %v1120 = vunpack.c.l.b16 %v335
  %v1121 = vunpack.c.h.b16 %v335
  %v1122 = vunpack.c.l.b16 %v336
  %v1123 = vunpack.c.h.b16 %v336
  %v1124 = vunpack.c.l.b16 %v337
  %v1125 = vunpack.c.h.b16 %v337
  %v1126 = vunpack.c.l.b16 %v338
  %v1127 = vunpack.c.h.b16 %v338
  %v1128 = vunpack.c.l.b16 %v339
  %v1129 = vunpack.c.h.b16 %v339
  %v1130 = vunpack.c.l.b16 %v340
  %v1131 = vunpack.c.h.b16 %v340
  %v1132 = vunpack.c.l.b16 %v341
  %v1133 = vunpack.c.h.b16 %v341
  %v1134 = vunpack.c.l.b16 %v342
  %v1135 = vunpack.c.h.b16 %v342
  %v1136 = vunpack.c.l.b16 %v343
  %v1137 = vunpack.c.h.b16 %v343
  %v1138 = vunpack.c.l.b16 %v344
  %v1139 = vunpack.c.h.b16 %v344
  %v1140 = vunpack.c.l.b16 %v345
  %v1141 = vunpack.c.h.b16 %v345
  %v1142 = vunpack.c.l.b16 %v346
  %v1143 = vunpack.c.h.b16 %v346
  %v1144 = vunpack.c.l.b16 %v347
  %v1145 = vunpack.c.h.b16 %v347
  %v1146 = vunpack.c.l.b16 %v348
  %v1147 = vunpack.c.h.b16 %v348
  %v1148 = vunpack.c.l.b16 %v349
  %v1149 = vunpack.c.h.b16 %v349
  %v1150 = vunpack.c.l.b16 %v350
  %v1151 = vunpack.c.h.b16 %v350
  %v1152 = vunpack.c.l.b16 %v351
  %v1153 = vunpack.c.h.b16 %v351
  %v1154 = vunpack.c.l.b16 %v352
  %v1155 = vunpack.c.h.b16 %v352
  %v1156 = vunpack.c.l.b16 %v353
  %v1157 = vunpack.c.h.b16 %v353
  %v1158 = vunpack.c.l.b16 %v354
  %v1159 = vunpack.c.h.b16 %v354
  %v1160 = vunpack.c.l.b16 %v355
  %v1161 = vunpack.c.h.b16 %v355
  %v1162 = vunpack.c.l.b16 %v356
  %v1163 = vunpack.c.h.b16 %v356
  %v1164 = vunpack.c.l.b16 %v357
  %v1165 = vunpack.c.h.b16 %v357
  %v1166 = vunpack.c.l.b16 %v358
  %v1167 = vunpack.c.h.b16 %v358
  %v1168 = vunpack.c.l.b16 %v359
  %v1169 = vunpack.c.h.b16 %v359
  %v1170 = vunpack.c.l.b16 %v360
  %v1171 = vunpack.c.h.b16 %v360
  %v1172 = vunpack.c.l.b16 %v361
  %v1173 = vunpack.c.h.b16 %v361
  %v1174 = vunpack.c.l.b16 %v362
  %v1175 = vunpack.c.h.b16 %v362
  %v1176 = vunpack.c.l.b16 %v363
  %v1177 = vunpack.c.h.b16 %v363
  %v1178 = vunpack.c.l.b16 %v364
  %v1179 = vunpack.c.h.b16 %v364
  %v1180 = vunpack.c.l.b16 %v365
  %v1181 = vunpack.c.h.b16 %v365
  %v1182 = vunpack.c.l.b16 %v366
  %v1183 = vunpack.c.h.b16 %v366
  %v1184 = vunpack.c.l.b16 %v367
  %v1185 = vunpack.c.h.b16 %v367
  %v1186 = vunpack.c.l.b16 %v368
  %v1187 = vunpack.c.h.b16 %v368
  %v1188 = vunpack.c.l.b16 %v369
  %v1189 = vunpack.c.h.b16 %v369
  %v1190 = vunpack.c.l.b16 %v370
  %v1191 = vunpack.c.h.b16 %v370
  %v1192 = vunpack.c.l.b16 %v371
  %v1193 = vunpack.c.h.b16 %v371
  %v1194 = vunpack.c.l.b16 %v372
  %v1195 = vunpack.c.h.b16 %v372
  %v1196 = vunpack.c.l.b16 %v373
  %v1197 = vunpack.c.h.b16 %v373
  %v1198 = vunpack.c.l.b16 %v374
  %v1199 = vunpack.c.h.b16 %v374
  %v1200 = vunpack.c.l.b16 %v375
  %v1201 = vunpack.c.h.b16 %v375
  %v1202 = vunpack.c.l.b16 %v376
  %v1203 = vunpack.c.h.b16 %v376
  %v1204 = vunpack.c.l.b16 %v377
  %v1205 = vunpack.c.h.b16 %v377
  %v1206 = vunpack.c.l.b16 %v378
  %v1207 = vunpack.c.h.b16 %v378
  %v1208 = vunpack.c.l.b16 %v379
  %v1209 = vunpack.c.h.b16 %v379
  %v1210 = vunpack.c.l.b16 %v380
  %v1211 = vunpack.c.h.b16 %v380
  %v1212 = vunpack.c.l.b16 %v381
  %v1213 = vunpack.c.h.b16 %v381
  %v1214 = vunpack.c.l.b16 %v382
  %v1215 = vunpack.c.h.b16 %v382
  %v1216 = vunpack.c.l.b16 %v383
  %v1217 = vunpack.c.h.b16 %v383
  %v1218 = vunpack.c.l.b16 %v384
  %v1219 = vunpack.c.h.b16 %v384
  %v1220 = vunpack.c.l.b16 %v385
  %v1221 = vunpack.c.h.b16 %v385
  %v1222 = vunpack.c.l.b16 %v386
  %v1223 = vunpack.c.h.b16 %v386
  %v1224 = vunpack.c.l.b16 %v387
  %v1225 = vunpack.c.h.b16 %v387
  %v1226 = vunpack.c.l.b16 %v388
  %v1227 = vunpack.c.h.b16 %v388
  %v1228 = vunpack.c.l.b16 %v389
  %v1229 = vunpack.c.h.b16 %v389
  %v1230 = vunpack.c.l.b16 %v390
  %v1231 = vunpack.c.h.b16 %v390
  %v1232 = vunpack.c.l.b16 %v391
  %v1233 = vunpack.c.h.b16 %v391
  %v1234 = vpack.c.b16 %v726, %v722
  %v1235 = vpack.c.b16 %v727, %v723
  %v1236 = vpack.c.b16 %v728, %v724
  %v1237 = vpack.c.b16 %v729, %v725
  %v1238 = vpack.c.b16 %v734, %v730
  %v1239 = vpack.c.b16 %v735, %v731
  %v1240 = vpack.c.b16 %v736, %v732
  %v1241 = vpack.c.b16 %v737, %v733
  %v1242 = vpack.c.b16 %v742, %v738
  %v1243 = vpack.c.b16 %v743, %v739
  %v1244 = vpack.c.b16 %v744, %v740
  %v1245 = vpack.c.b16 %v745, %v741
  %v1246 = vpack.c.b16 %v750, %v746
  %v1247 = vpack.c.b16 %v751, %v747
  %v1248 = vpack.c.b16 %v752, %v748
  %v1249 = vpack.c.b16 %v753, %v749
  %v1250 = vpack.c.b16 %v758, %v754
  %v1251 = vpack.c.b16 %v759, %v755
  %v1252 = vpack.c.b16 %v760, %v756
  %v1253 = vpack.c.b16 %v761, %v757
  %v1254 = vpack.c.b16 %v766, %v762
  %v1255 = vpack.c.b16 %v767, %v763
  %v1256 = vpack.c.b16 %v768, %v764
  %v1257 = vpack.c.b16 %v769, %v765
  %v1258 = vpack.c.b16 %v774, %v770
  %v1259 = vpack.c.b16 %v775, %v771
  %v1260 = vpack.c.b16 %v776, %v772
  %v1261 = vpack.c.b16 %v777, %v773
  %v1262 = vpack.c.b16 %v782, %v778
  %v1263 = vpack.c.b16 %v783, %v779
  %v1264 = vpack.c.b16 %v784, %v780
  %v1265 = vpack.c.b16 %v785, %v781
  %v1266 = vpack.c.b16 %v790, %v786
  %v1267 = vpack.c.b16 %v791, %v787
  %v1268 = vpack.c.b16 %v792, %v788
  %v1269 = vpack.c.b16 %v793, %v789
  %v1270 = vpack.c.b16 %v798, %v794
  %v1271 = vpack.c.b16 %v799, %v795
  %v1272 = vpack.c.b16 %v800, %v796
  %v1273 = vpack.c.b16 %v801, %v797
  %v1274 = vpack.c.b16 %v806, %v802
  %v1275 = vpack.c.b16 %v807, %v803
  %v1276 = vpack.c.b16 %v808, %v804
  %v1277 = vpack.c.b16 %v809, %v805
  %v1278 = vpack.c.b16 %v814, %v810
  %v1279 = vpack.c.b16 %v815, %v811
  %v1280 = vpack.c.b16 %v816, %v812
  %v1281 = vpack.c.b16 %v817, %v813
  %v1282 = vpack.c.b16 %v822, %v818
  %v1283 = vpack.c.b16 %v823, %v819
  %v1284 = vpack.c.b16 %v824, %v820
  %v1285 = vpack.c.b16 %v825, %v821
  %v1286 = vpack.c.b16 %v830, %v826
  %v1287 = vpack.c.b16 %v831, %v827
  %v1288 = vpack.c.b16 %v832, %v828
  %v1289 = vpack.c.b16 %v833, %v829
  %v1290 = vpack.c.b16 %v838, %v834
  %v1291 = vpack.c.b16 %v839, %v835
  %v1292 = vpack.c.b16 %v840, %v836
  %v1293 = vpack.c.b16 %v841, %v837
  %v1294 = vpack.c.b16 %v846, %v842
  %v1295 = vpack.c.b16 %v847, %v843
  %v1296 = vpack.c.b16 %v848, %v844
  %v1297 = vpack.c.b16 %v849, %v845
  %v1298 = vpack.c.b16 %v854, %v850
  %v1299 = vpack.c.b16 %v855, %v851
  %v1300 = vpack.c.b16 %v856, %v852
  %v1301 = vpack.c.b16 %v857, %v853
  %v1302 = vpack.c.b16 %v862, %v858
  %v1303 = vpack.c.b16 %v863, %v859
  %v1304 = vpack.c.b16 %v864, %v860
  %v1305 = vpack.c.b16 %v865, %v861
  %v1306 = vpack.c.b16 %v870, %v866
  %v1307 = vpack.c.b16 %v871, %v867
  %v1308 = vpack.c.b16 %v872, %v868
  %v1309 = vpack.c.b16 %v873, %v869
  %v1310 = vpack.c.b16 %v878, %v874
  %v1311 = vpack.c.b16 %v879, %v875
  %v1312 = vpack.c.b16 %v880, %v876
  %v1313 = vpack.c.b16 %v881, %v877
  %v1314 = vpack.c.b16 %v886, %v882
  %v1315 = vpack.c.b16 %v887, %v883
  %v1316 = vpack.c.b16 %v888, %v884
  %v1317 = vpack.c.b16 %v889, %v885
  %v1318 = vpack.c.b16 %v894, %v890
  %v1319 = vpack.c.b16 %v895, %v891
  %v1320 = vpack.c.b16 %v896, %v892
  %v1321 = vpack.c.b16 %v897, %v893
  %v1322 = vpack.c.b16 %v902, %v898
  %v1323 = vpack.c.b16 %v903, %v899
  %v1324 = vpack.c.b16 %v904, %v900
  %v1325 = vpack.c.b16 %v905, %v901
  %v1326 = vpack.c.b16 %v910, %v906
  %v1327 = vpack.c.b16 %v911, %v907
  %v1328 = vpack.c.b16 %v912, %v908
  %v1329 = vpack.c.b16 %v913, %v909
  %v1330 = vpack.c.b16 %v918, %v914
  %v1331 = vpack.c.b16 %v919, %v915
  %v1332 = vpack.c.b16 %v920, %v916
  %v1333 = vpack.c.b16 %v921, %v917
  %v1334 = vpack.c.b16 %v926, %v922
  %v1335 = vpack.c.b16 %v927, %v923
  %v1336 = vpack.c.b16 %v928, %v924
  %v1337 = vpack.c.b16 %v929, %v925
  %v1338 = vpack.c.b16 %v934, %v930
  %v1339 = vpack.c.b16 %v935, %v931
  %v1340 = vpack.c.b16 %v936, %v932
  %v1341 = vpack.c.b16 %v937, %v933
  %v1342 = vpack.c.b16 %v942, %v938
  %v1343 = vpack.c.b16 %v943, %v939
  %v1344 = vpack.c.b16 %v944, %v940
  %v1345 = vpack.c.b16 %v945, %v941
  %v1346 = vpack.c.b16 %v950, %v946
  %v1347 = vpack.c.b16 %v951, %v947
  %v1348 = vpack.c.b16 %v952, %v948
  %v1349 = vpack.c.b16 %v953, %v949
  %v1350 = vpack.c.b16 %v958, %v954
  %v1351 = vpack.c.b16 %v959, %v955
  %v1352 = vpack.c.b16 %v960, %v956
  %v1353 = vpack.c.b16 %v961, %v957
  %v1354 = vpack.c.b16 %v966, %v962
  %v1355 = vpack.c.b16 %v967, %v963
  %v1356 = vpack.c.b16 %v968, %v964
  %v1357 = vpack.c.b16 %v969, %v965
  %v1358 = vpack.c.b16 %v974, %v970
  %v1359 = vpack.c.b16 %v975, %v971
  %v1360 = vpack.c.b16 %v976, %v972
  %v1361 = vpack.c.b16 %v977, %v973
  %v1362 = vpack.c.b16 %v982, %v978
  %v1363 = vpack.c.b16 %v983, %v979
  %v1364 = vpack.c.b16 %v984, %v980
  %v1365 = vpack.c.b16 %v985, %v981
  %v1366 = vpack.c.b16 %v990, %v986
  %v1367 = vpack.c.b16 %v991, %v987
  %v1368 = vpack.c.b16 %v992, %v988
  %v1369 = vpack.c.b16 %v993, %v989
  %v1370 = vpack.c.b16 %v998, %v994
  %v1371 = vpack.c.b16 %v999, %v995
  %v1372 = vpack.c.b16 %v1000, %v996
  %v1373 = vpack.c.b16 %v1001, %v997
  %v1374 = vpack.c.b16 %v1006, %v1002
  %v1375 = vpack.c.b16 %v1007, %v1003
  %v1376 = vpack.c.b16 %v1008, %v1004
  %v1377 = vpack.c.b16 %v1009, %v1005
  %v1378 = vpack.c.b16 %v1014, %v1010
  %v1379 = vpack.c.b16 %v1015, %v1011
  %v1380 = vpack.c.b16 %v1016, %v1012
  %v1381 = vpack.c.b16 %v1017, %v1013
  %v1382 = vpack.c.b16 %v1022, %v1018
  %v1383 = vpack.c.b16 %v1023, %v1019
  %v1384 = vpack.c.b16 %v1024, %v1020
  %v1385 = vpack.c.b16 %v1025, %v1021
  %v1386 = vpack.c.b16 %v1030, %v1026
  %v1387 = vpack.c.b16 %v1031, %v1027
  %v1388 = vpack.c.b16 %v1032, %v1028
  %v1389 = vpack.c.b16 %v1033, %v1029
  %v1390 = vpack.c.b16 %v1038, %v1034
  %v1391 = vpack.c.b16 %v1039, %v1035
  %v1392 = vpack.c.b16 %v1040, %v1036
  %v1393 = vpack.c.b16 %v1041, %v1037
  %v1394 = vpack.c.b16 %v1046, %v1042
  %v1395 = vpack.c.b16 %v1047, %v1043
  %v1396 = vpack.c.b16 %v1048, %v1044
  %v1397 = vpack.c.b16 %v1049, %v1045
  %v1398 = vpack.c.b16 %v1054, %v1050
  %v1399 = vpack.c.b16 %v1055, %v1051
  %v1400 = vpack.c.b16 %v1056, %v1052
  %v1401 = vpack.c.b16 %v1057, %v1053
  %v1402 = vpack.c.b16 %v1062, %v1058
  %v1403 = vpack.c.b16 %v1063, %v1059
  %v1404 = vpack.c.b16 %v1064, %v1060
  %v1405 = vpack.c.b16 %v1065, %v1061
  %v1406 = vpack.c.b16 %v1070, %v1066
  %v1407 = vpack.c.b16 %v1071, %v1067
  %v1408 = vpack.c.b16 %v1072, %v1068
  %v1409 = vpack.c.b16 %v1073, %v1069
  %v1410 = vpack.c.b16 %v1078, %v1074
  %v1411 = vpack.c.b16 %v1079, %v1075
  %v1412 = vpack.c.b16 %v1080, %v1076
  %v1413 = vpack.c.b16 %v1081, %v1077
  %v1414 = vpack.c.b16 %v1086, %v1082
  %v1415 = vpack.c.b16 %v1087, %v1083
  %v1416 = vpack.c.b16 %v1088, %v1084
  %v1417 = vpack.c.b16 %v1089, %v1085
  %v1418 = vpack.c.b16 %v1094, %v1090
  %v1419 = vpack.c.b16 %v1095, %v1091
  %v1420 = vpack.c.b16 %v1096, %v1092
  %v1421 = vpack.c.b16 %v1097, %v1093
  %v1422 = vpack.c.b16 %v1102, %v1098
  %v1423 = vpack.c.b16 %v1103, %v1099
  %v1424 = vpack.c.b16 %v1104, %v1100
  %v1425 = vpack.c.b16 %v1105, %v1101
  %v1426 = vpack.c.b16 %v1110, %v1106
  %v1427 = vpack.c.b16 %v1111, %v1107
  %v1428 = vpack.c.b16 %v1112, %v1108
  %v1429 = vpack.c.b16 %v1113, %v1109
  %v1430 = vpack.c.b16 %v1118, %v1114
  %v1431 = vpack.c.b16 %v1119, %v1115
  %v1432 = vpack.c.b16 %v1120, %v1116
  %v1433 = vpack.c.b16 %v1121, %v1117
  %v1434 = vpack.c.b16 %v1126, %v1122
  %v1435 = vpack.c.b16 %v1127, %v1123
  %v1436 = vpack.c.b16 %v1128, %v1124
  %v1437 = vpack.c.b16 %v1129, %v1125
  %v1438 = vpack.c.b16 %v1134, %v1130
  %v1439 = vpack.c.b16 %v1135, %v1131
  %v1440 = vpack.c.b16 %v1136, %v1132
  %v1441 = vpack.c.b16 %v1137, %v1133
  %v1442 = vpack.c.b16 %v1142, %v1138
  %v1443 = vpack.c.b16 %v1143, %v1139
  %v1444 = vpack.c.b16 %v1144, %v1140
  %v1445 = vpack.c.b16 %v1145, %v1141
  %v1446 = vpack.c.b16 %v1150, %v1146
  %v1447 = vpack.c.b16 %v1151, %v1147
  %v1448 = vpack.c.b16 %v1152, %v1148
  %v1449 = vpack.c.b16 %v1153, %v1149
  %v1450 = vpack.c.b16 %v1158, %v1154
  %v1451 = vpack.c.b16 %v1159, %v1155
  %v1452 = vpack.c.b16 %v1160, %v1156
  %v1453 = vpack.c.b16 %v1161, %v1157
  %v1454 = vpack.c.b16 %v1166, %v1162
  %v1455 = vpack.c.b16 %v1167, %v1163
  %v1456 = vpack.c.b16 %v1168, %v1164
  %v1457 = vpack.c.b16 %v1169, %v1165
  %v1458 = vpack.c.b16 %v1174, %v1170
  %v1459 = vpack.c.b16 %v1175, %v1171
  %v1460 = vpack.c.b16 %v1176, %v1172
  %v1461 = vpack.c.b16 %v1177, %v1173
  %v1462 = vpack.c.b16 %v1182, %v1178
  %v1463 = vpack.c.b16 %v1183, %v1179
  %v1464 = vpack.c.b16 %v1184, %v1180
  %v1465 = vpack.c.b16 %v1185, %v1181
  %v1466 = vpack.c.b16 %v1190, %v1186
  %v1467 = vpack.c.b16 %v1191, %v1187
  %v1468 = vpack.c.b16 %v1192, %v1188
  %v1469 = vpack.c.b16 %v1193, %v1189
  %v1470 = vpack.c.b16 %v1198, %v1194
  %v1471 = vpack.c.b16 %v1199, %v1195
  %v1472 = vpack.c.b16 %v1200, %v1196
  %v1473 = vpack.c.b16 %v1201, %v1197
  %v1474 = vpack.c.b16 %v1206, %v1202
  %v1475 = vpack.c.b16 %v1207, %v1203
  %v1476 = vpack.c.b16 %v1208, %v1204
  %v1477 = vpack.c.b16 %v1209, %v1205
  %v1478 = vpack.c.b16 %v1214, %v1210
  %v1479 = vpack.c.b16 %v1215, %v1211
  %v1480 = vpack.c.b16 %v1216, %v1212
  %v1481 = vpack.c.b16 %v1217, %v1213
  %v1482 = vpack.c.b16 %v1222, %v1218
  %v1483 = vpack.c.b16 %v1223, %v1219
  %v1484 = vpack.c.b16 %v1224, %v1220
  %v1485 = vpack.c.b16 %v1225, %v1221
  %v1486 = vpack.c.b16 %v1230, %v1226
  %v1487 = vpack.c.b16 %v1231, %v1227
  %v1488 = vpack.c.b16 %v1232, %v1228
  %v1489 = vpack.c.b16 %v1233, %v1229
  %1746 = vmatpush.bf16.msra.mxu0 %v1262
  %1747 = vmatpush.bf16.msra.mxu0 %v1258
  %1748 = vmatpush.bf16.msra.mxu0 %v1254
  %1749 = vmatpush.bf16.msra.mxu0 %v1250
  %1750 = vmatpush.bf16.msra.mxu0 %v1246
  %1751 = vmatpush.bf16.msra.mxu0 %v1242
  %1752 = vmatpush.bf16.msra.mxu0 %v1238
  %1753 = vmatpush.bf16.msra.mxu0 %v1234
  %1754 = vmatmul.bf16.gmra.mxu0 %v450
  %v1755 = vpop.f32.mrf.mxu0
  %v1756 = vadd.f32 %v394, %v1755
  %v1757 = vpop.f32.mrf.mxu0
  %1758 = vdwg.mxu0
  %1759 = vmatpush.bf16.msra.mxu0 %v1294
  %1760 = vmatpush.bf16.msra.mxu0 %v1290
  %1761 = vmatpush.bf16.msra.mxu0 %v1286
  %1762 = vmatpush.bf16.msra.mxu0 %v1282
  %1763 = vmatpush.bf16.msra.mxu0 %v1278
  %1764 = vmatpush.bf16.msra.mxu0 %v1274
  %1765 = vmatpush.bf16.msra.mxu0 %v1270
  %1766 = vmatpush.bf16.msra.mxu0 %v1266
  %1767 = vmatmul.bf16.gmra.mxu0 %v451
  %v1768 = vpop.f32.mrf.mxu0
  %v1769 = vadd.f32 %v1756, %v1768
  %v1770 = vpop.f32.mrf.mxu0
  %1771 = vdwg.mxu0
  %1772 = vmatpush.bf16.msra.mxu0 %v1326
  %1773 = vmatpush.bf16.msra.mxu0 %v1322
  %1774 = vmatpush.bf16.msra.mxu0 %v1318
  %1775 = vmatpush.bf16.msra.mxu0 %v1314
  %1776 = vmatpush.bf16.msra.mxu0 %v1310
  %1777 = vmatpush.bf16.msra.mxu0 %v1306
  %1778 = vmatpush.bf16.msra.mxu0 %v1302
  %1779 = vmatpush.bf16.msra.mxu0 %v1298
  %1780 = vmatmul.bf16.gmra.mxu0 %v452
  %v1781 = vpop.f32.mrf.mxu0
  %v1782 = vadd.f32 %v1769, %v1781
  %v1783 = vpop.f32.mrf.mxu0
  %1784 = vdwg.mxu0
  %1785 = vmatpush.bf16.msra.mxu0 %v1358
  %1786 = vmatpush.bf16.msra.mxu0 %v1354
  %1787 = vmatpush.bf16.msra.mxu0 %v1350
  %1788 = vmatpush.bf16.msra.mxu0 %v1346
  %1789 = vmatpush.bf16.msra.mxu0 %v1342
  %1790 = vmatpush.bf16.msra.mxu0 %v1338
  %1791 = vmatpush.bf16.msra.mxu0 %v1334
  %1792 = vmatpush.bf16.msra.mxu0 %v1330
  %1793 = vmatmul.bf16.gmra.mxu0 %v453
  %v1794 = vpop.f32.mrf.mxu0
  %v1795 = vadd.f32 %v1782, %v1794
  %v1796 = vpop.f32.mrf.mxu0
  %1797 = vdwg.mxu0
  %1798 = vmatpush.bf16.msra.mxu0 %v1390
  %1799 = vmatpush.bf16.msra.mxu0 %v1386
  %1800 = vmatpush.bf16.msra.mxu0 %v1382
  %1801 = vmatpush.bf16.msra.mxu0 %v1378
  %1802 = vmatpush.bf16.msra.mxu0 %v1374
  %1803 = vmatpush.bf16.msra.mxu0 %v1370
  %1804 = vmatpush.bf16.msra.mxu0 %v1366
  %1805 = vmatpush.bf16.msra.mxu0 %v1362
  %1806 = vmatmul.bf16.gmra.mxu0 %v454
  %v1807 = vpop.f32.mrf.mxu0
  %v1808 = vadd.f32 %v1795, %v1807
  %v1809 = vpop.f32.mrf.mxu0
  %1810 = vdwg.mxu0
  %1811 = vmatpush.bf16.msra.mxu0 %v1422
  %1812 = vmatpush.bf16.msra.mxu0 %v1418
  %1813 = vmatpush.bf16.msra.mxu0 %v1414
  %1814 = vmatpush.bf16.msra.mxu0 %v1410
  %1815 = vmatpush.bf16.msra.mxu0 %v1406
  %1816 = vmatpush.bf16.msra.mxu0 %v1402
  %1817 = vmatpush.bf16.msra.mxu0 %v1398
  %1818 = vmatpush.bf16.msra.mxu0 %v1394
  %1819 = vmatmul.bf16.gmra.mxu0 %v455
  %v1820 = vpop.f32.mrf.mxu0
  %v1821 = vadd.f32 %v1808, %v1820
  %v1822 = vpop.f32.mrf.mxu0
  %1823 = vdwg.mxu0
  %1824 = vmatpush.bf16.msra.mxu0 %v1454
  %1825 = vmatpush.bf16.msra.mxu0 %v1450
  %1826 = vmatpush.bf16.msra.mxu0 %v1446
  %1827 = vmatpush.bf16.msra.mxu0 %v1442
  %1828 = vmatpush.bf16.msra.mxu0 %v1438
  %1829 = vmatpush.bf16.msra.mxu0 %v1434
  %1830 = vmatpush.bf16.msra.mxu0 %v1430
  %1831 = vmatpush.bf16.msra.mxu0 %v1426
  %1832 = vmatmul.bf16.gmra.mxu0 %v456
  %v1833 = vpop.f32.mrf.mxu0
  %v1834 = vadd.f32 %v1821, %v1833
  %v1835 = vpop.f32.mrf.mxu0
  %1836 = vdwg.mxu0
  %1837 = vmatpush.bf16.msra.mxu0 %v1486
  %1838 = vmatpush.bf16.msra.mxu0 %v1482
  %1839 = vmatpush.bf16.msra.mxu0 %v1478
  %1840 = vmatpush.bf16.msra.mxu0 %v1474
  %1841 = vmatpush.bf16.msra.mxu0 %v1470
  %1842 = vmatpush.bf16.msra.mxu0 %v1466
  %1843 = vmatpush.bf16.msra.mxu0 %v1462
  %1844 = vmatpush.bf16.msra.mxu0 %v1458
  %1845 = vmatmul.bf16.gmra.mxu0 %v457
  %v1846 = vpop.f32.mrf.mxu0
  %v1847 = vadd.f32 %v1834, %v1846
  %v1848 = vpop.f32.mrf.mxu0
  %1849 = vdwg.mxu0
  %1850 = vmatpush.bf16.msra.mxu0 %v1263
  %1851 = vmatpush.bf16.msra.mxu0 %v1259
  %1852 = vmatpush.bf16.msra.mxu0 %v1255
  %1853 = vmatpush.bf16.msra.mxu0 %v1251
  %1854 = vmatpush.bf16.msra.mxu0 %v1247
  %1855 = vmatpush.bf16.msra.mxu0 %v1243
  %1856 = vmatpush.bf16.msra.mxu0 %v1239
  %1857 = vmatpush.bf16.msra.mxu0 %v1235
  %1858 = vmatmul.bf16.gmra.mxu0 %v450
  %v1859 = vpop.f32.mrf.mxu0
  %v1860 = vadd.f32 %v395, %v1859
  %v1861 = vpop.f32.mrf.mxu0
  %1862 = vdwg.mxu0
  %1863 = vmatpush.bf16.msra.mxu0 %v1295
  %1864 = vmatpush.bf16.msra.mxu0 %v1291
  %1865 = vmatpush.bf16.msra.mxu0 %v1287
  %1866 = vmatpush.bf16.msra.mxu0 %v1283
  %1867 = vmatpush.bf16.msra.mxu0 %v1279
  %1868 = vmatpush.bf16.msra.mxu0 %v1275
  %1869 = vmatpush.bf16.msra.mxu0 %v1271
  %1870 = vmatpush.bf16.msra.mxu0 %v1267
  %1871 = vmatmul.bf16.gmra.mxu0 %v451
  %v1872 = vpop.f32.mrf.mxu0
  %v1873 = vadd.f32 %v1860, %v1872
  %v1874 = vpop.f32.mrf.mxu0
  %1875 = vdwg.mxu0
  %1876 = vmatpush.bf16.msra.mxu0 %v1327
  %1877 = vmatpush.bf16.msra.mxu0 %v1323
  %1878 = vmatpush.bf16.msra.mxu0 %v1319
  %1879 = vmatpush.bf16.msra.mxu0 %v1315
  %1880 = vmatpush.bf16.msra.mxu0 %v1311
  %1881 = vmatpush.bf16.msra.mxu0 %v1307
  %1882 = vmatpush.bf16.msra.mxu0 %v1303
  %1883 = vmatpush.bf16.msra.mxu0 %v1299
  %1884 = vmatmul.bf16.gmra.mxu0 %v452
  %v1885 = vpop.f32.mrf.mxu0
  %v1886 = vadd.f32 %v1873, %v1885
  %v1887 = vpop.f32.mrf.mxu0
  %1888 = vdwg.mxu0
  %1889 = vmatpush.bf16.msra.mxu0 %v1359
  %1890 = vmatpush.bf16.msra.mxu0 %v1355
  %1891 = vmatpush.bf16.msra.mxu0 %v1351
  %1892 = vmatpush.bf16.msra.mxu0 %v1347
  %1893 = vmatpush.bf16.msra.mxu0 %v1343
  %1894 = vmatpush.bf16.msra.mxu0 %v1339
  %1895 = vmatpush.bf16.msra.mxu0 %v1335
  %1896 = vmatpush.bf16.msra.mxu0 %v1331
  %1897 = vmatmul.bf16.gmra.mxu0 %v453
  %v1898 = vpop.f32.mrf.mxu0
  %v1899 = vadd.f32 %v1886, %v1898
  %v1900 = vpop.f32.mrf.mxu0
  %1901 = vdwg.mxu0
  %1902 = vmatpush.bf16.msra.mxu0 %v1391
  %1903 = vmatpush.bf16.msra.mxu0 %v1387
  %1904 = vmatpush.bf16.msra.mxu0 %v1383
  %1905 = vmatpush.bf16.msra.mxu0 %v1379
  %1906 = vmatpush.bf16.msra.mxu0 %v1375
  %1907 = vmatpush.bf16.msra.mxu0 %v1371
  %1908 = vmatpush.bf16.msra.mxu0 %v1367
  %1909 = vmatpush.bf16.msra.mxu0 %v1363
  %1910 = vmatmul.bf16.gmra.mxu0 %v454
  %v1911 = vpop.f32.mrf.mxu0
  %v1912 = vadd.f32 %v1899, %v1911
  %v1913 = vpop.f32.mrf.mxu0
  %1914 = vdwg.mxu0
  %1915 = vmatpush.bf16.msra.mxu0 %v1423
  %1916 = vmatpush.bf16.msra.mxu0 %v1419
  %1917 = vmatpush.bf16.msra.mxu0 %v1415
  %1918 = vmatpush.bf16.msra.mxu0 %v1411
  %1919 = vmatpush.bf16.msra.mxu0 %v1407
  %1920 = vmatpush.bf16.msra.mxu0 %v1403
  %1921 = vmatpush.bf16.msra.mxu0 %v1399
  %1922 = vmatpush.bf16.msra.mxu0 %v1395
  %1923 = vmatmul.bf16.gmra.mxu0 %v455
  %v1924 = vpop.f32.mrf.mxu0
  %v1925 = vadd.f32 %v1912, %v1924
  %v1926 = vpop.f32.mrf.mxu0
  %1927 = vdwg.mxu0
  %1928 = vmatpush.bf16.msra.mxu0 %v1455
  %1929 = vmatpush.bf16.msra.mxu0 %v1451
  %1930 = vmatpush.bf16.msra.mxu0 %v1447
  %1931 = vmatpush.bf16.msra.mxu0 %v1443
  %1932 = vmatpush.bf16.msra.mxu0 %v1439
  %1933 = vmatpush.bf16.msra.mxu0 %v1435
  %1934 = vmatpush.bf16.msra.mxu0 %v1431
  %1935 = vmatpush.bf16.msra.mxu0 %v1427
  %1936 = vmatmul.bf16.gmra.mxu0 %v456
  %v1937 = vpop.f32.mrf.mxu0
  %v1938 = vadd.f32 %v1925, %v1937
  %v1939 = vpop.f32.mrf.mxu0
  %1940 = vdwg.mxu0
  %1941 = vmatpush.bf16.msra.mxu0 %v1487
  %1942 = vmatpush.bf16.msra.mxu0 %v1483
  %1943 = vmatpush.bf16.msra.mxu0 %v1479
  %1944 = vmatpush.bf16.msra.mxu0 %v1475
  %1945 = vmatpush.bf16.msra.mxu0 %v1471
  %1946 = vmatpush.bf16.msra.mxu0 %v1467
  %1947 = vmatpush.bf16.msra.mxu0 %v1463
  %1948 = vmatpush.bf16.msra.mxu0 %v1459
  %1949 = vmatmul.bf16.gmra.mxu0 %v457
  %v1950 = vpop.f32.mrf.mxu0
  %v1951 = vadd.f32 %v1938, %v1950
  %v1952 = vpop.f32.mrf.mxu0
  %1953 = vdwg.mxu0
  %1954 = vmatpush.bf16.msra.mxu0 %v1264
  %1955 = vmatpush.bf16.msra.mxu0 %v1260
  %1956 = vmatpush.bf16.msra.mxu0 %v1256
  %1957 = vmatpush.bf16.msra.mxu0 %v1252
  %1958 = vmatpush.bf16.msra.mxu0 %v1248
  %1959 = vmatpush.bf16.msra.mxu0 %v1244
  %1960 = vmatpush.bf16.msra.mxu0 %v1240
  %1961 = vmatpush.bf16.msra.mxu0 %v1236
  %1962 = vmatmul.bf16.gmra.mxu0 %v450
  %v1963 = vpop.f32.mrf.mxu0
  %v1964 = vadd.f32 %v396, %v1963
  %v1965 = vpop.f32.mrf.mxu0
  %1966 = vdwg.mxu0
  %1967 = vmatpush.bf16.msra.mxu0 %v1296
  %1968 = vmatpush.bf16.msra.mxu0 %v1292
  %1969 = vmatpush.bf16.msra.mxu0 %v1288
  %1970 = vmatpush.bf16.msra.mxu0 %v1284
  %1971 = vmatpush.bf16.msra.mxu0 %v1280
  %1972 = vmatpush.bf16.msra.mxu0 %v1276
  %1973 = vmatpush.bf16.msra.mxu0 %v1272
  %1974 = vmatpush.bf16.msra.mxu0 %v1268
  %1975 = vmatmul.bf16.gmra.mxu0 %v451
  %v1976 = vpop.f32.mrf.mxu0
  %v1977 = vadd.f32 %v1964, %v1976
  %v1978 = vpop.f32.mrf.mxu0
  %1979 = vdwg.mxu0
  %1980 = vmatpush.bf16.msra.mxu0 %v1328
  %1981 = vmatpush.bf16.msra.mxu0 %v1324
  %1982 = vmatpush.bf16.msra.mxu0 %v1320
  %1983 = vmatpush.bf16.msra.mxu0 %v1316
  %1984 = vmatpush.bf16.msra.mxu0 %v1312
  %1985 = vmatpush.bf16.msra.mxu0 %v1308
  %1986 = vmatpush.bf16.msra.mxu0 %v1304
  %1987 = vmatpush.bf16.msra.mxu0 %v1300
  %1988 = vmatmul.bf16.gmra.mxu0 %v452
  %v1989 = vpop.f32.mrf.mxu0
  %v1990 = vadd.f32 %v1977, %v1989
  %v1991 = vpop.f32.mrf.mxu0
  %1992 = vdwg.mxu0
  %1993 = vmatpush.bf16.msra.mxu0 %v1360
  %1994 = vmatpush.bf16.msra.mxu0 %v1356
  %1995 = vmatpush.bf16.msra.mxu0 %v1352
  %1996 = vmatpush.bf16.msra.mxu0 %v1348
  %1997 = vmatpush.bf16.msra.mxu0 %v1344
  %1998 = vmatpush.bf16.msra.mxu0 %v1340
  %1999 = vmatpush.bf16.msra.mxu0 %v1336
  %2000 = vmatpush.bf16.msra.mxu0 %v1332
  %2001 = vmatmul.bf16.gmra.mxu0 %v453
  %v2002 = vpop.f32.mrf.mxu0
  %v2003 = vadd.f32 %v1990, %v2002
  %v2004 = vpop.f32.mrf.mxu0
  %2005 = vdwg.mxu0
  %2006 = vmatpush.bf16.msra.mxu0 %v1392
  %2007 = vmatpush.bf16.msra.mxu0 %v1388
  %2008 = vmatpush.bf16.msra.mxu0 %v1384
  %2009 = vmatpush.bf16.msra.mxu0 %v1380
  %2010 = vmatpush.bf16.msra.mxu0 %v1376
  %2011 = vmatpush.bf16.msra.mxu0 %v1372
  %2012 = vmatpush.bf16.msra.mxu0 %v1368
  %2013 = vmatpush.bf16.msra.mxu0 %v1364
  %2014 = vmatmul.bf16.gmra.mxu0 %v454
  %v2015 = vpop.f32.mrf.mxu0
  %v2016 = vadd.f32 %v2003, %v2015
  %v2017 = vpop.f32.mrf.mxu0
  %2018 = vdwg.mxu0
  %2019 = vmatpush.bf16.msra.mxu0 %v1424
  %2020 = vmatpush.bf16.msra.mxu0 %v1420
  %2021 = vmatpush.bf16.msra.mxu0 %v1416
  %2022 = vmatpush.bf16.msra.mxu0 %v1412
  %2023 = vmatpush.bf16.msra.mxu0 %v1408
  %2024 = vmatpush.bf16.msra.mxu0 %v1404
  %2025 = vmatpush.bf16.msra.mxu0 %v1400
  %2026 = vmatpush.bf16.msra.mxu0 %v1396
  %2027 = vmatmul.bf16.gmra.mxu0 %v455
  %v2028 = vpop.f32.mrf.mxu0
  %v2029 = vadd.f32 %v2016, %v2028
  %v2030 = vpop.f32.mrf.mxu0
  %2031 = vdwg.mxu0
  %2032 = vmatpush.bf16.msra.mxu0 %v1456
  %2033 = vmatpush.bf16.msra.mxu0 %v1452
  %2034 = vmatpush.bf16.msra.mxu0 %v1448
  %2035 = vmatpush.bf16.msra.mxu0 %v1444
  %2036 = vmatpush.bf16.msra.mxu0 %v1440
  %2037 = vmatpush.bf16.msra.mxu0 %v1436
  %2038 = vmatpush.bf16.msra.mxu0 %v1432
  %2039 = vmatpush.bf16.msra.mxu0 %v1428
  %2040 = vmatmul.bf16.gmra.mxu0 %v456
  %v2041 = vpop.f32.mrf.mxu0
  %v2042 = vadd.f32 %v2029, %v2041
  %v2043 = vpop.f32.mrf.mxu0
  %2044 = vdwg.mxu0
  %2045 = vmatpush.bf16.msra.mxu0 %v1488
  %2046 = vmatpush.bf16.msra.mxu0 %v1484
  %2047 = vmatpush.bf16.msra.mxu0 %v1480
  %2048 = vmatpush.bf16.msra.mxu0 %v1476
  %2049 = vmatpush.bf16.msra.mxu0 %v1472
  %2050 = vmatpush.bf16.msra.mxu0 %v1468
  %2051 = vmatpush.bf16.msra.mxu0 %v1464
  %2052 = vmatpush.bf16.msra.mxu0 %v1460
  %2053 = vmatmul.bf16.gmra.mxu0 %v457
  %v2054 = vpop.f32.mrf.mxu0
  %v2055 = vadd.f32 %v2042, %v2054
  %v2056 = vpop.f32.mrf.mxu0
  %2057 = vdwg.mxu0
  %2058 = vmatpush.bf16.msra.mxu0 %v1265
  %2059 = vmatpush.bf16.msra.mxu0 %v1261
  %2060 = vmatpush.bf16.msra.mxu0 %v1257
  %2061 = vmatpush.bf16.msra.mxu0 %v1253
  %2062 = vmatpush.bf16.msra.mxu0 %v1249
  %2063 = vmatpush.bf16.msra.mxu0 %v1245
  %2064 = vmatpush.bf16.msra.mxu0 %v1241
  %2065 = vmatpush.bf16.msra.mxu0 %v1237
  %2066 = vmatmul.bf16.gmra.mxu0 %v450
  %v2067 = vpop.f32.mrf.mxu0
  %v2068 = vadd.f32 %v397, %v2067
  %v2069 = vpop.f32.mrf.mxu0
  %2070 = vdwg.mxu0
  %2071 = vmatpush.bf16.msra.mxu0 %v1297
  %2072 = vmatpush.bf16.msra.mxu0 %v1293
  %2073 = vmatpush.bf16.msra.mxu0 %v1289
  %2074 = vmatpush.bf16.msra.mxu0 %v1285
  %2075 = vmatpush.bf16.msra.mxu0 %v1281
  %2076 = vmatpush.bf16.msra.mxu0 %v1277
  %2077 = vmatpush.bf16.msra.mxu0 %v1273
  %2078 = vmatpush.bf16.msra.mxu0 %v1269
  %2079 = vmatmul.bf16.gmra.mxu0 %v451
  %v2080 = vpop.f32.mrf.mxu0
  %v2081 = vadd.f32 %v2068, %v2080
  %v2082 = vpop.f32.mrf.mxu0
  %2083 = vdwg.mxu0
  %2084 = vmatpush.bf16.msra.mxu0 %v1329
  %2085 = vmatpush.bf16.msra.mxu0 %v1325
  %2086 = vmatpush.bf16.msra.mxu0 %v1321
  %2087 = vmatpush.bf16.msra.mxu0 %v1317
  %2088 = vmatpush.bf16.msra.mxu0 %v1313
  %2089 = vmatpush.bf16.msra.mxu0 %v1309
  %2090 = vmatpush.bf16.msra.mxu0 %v1305
  %2091 = vmatpush.bf16.msra.mxu0 %v1301
  %2092 = vmatmul.bf16.gmra.mxu0 %v452
  %v2093 = vpop.f32.mrf.mxu0
  %v2094 = vadd.f32 %v2081, %v2093
  %v2095 = vpop.f32.mrf.mxu0
  %2096 = vdwg.mxu0
  %2097 = vmatpush.bf16.msra.mxu0 %v1361
  %2098 = vmatpush.bf16.msra.mxu0 %v1357
  %2099 = vmatpush.bf16.msra.mxu0 %v1353
  %2100 = vmatpush.bf16.msra.mxu0 %v1349
  %2101 = vmatpush.bf16.msra.mxu0 %v1345
  %2102 = vmatpush.bf16.msra.mxu0 %v1341
  %2103 = vmatpush.bf16.msra.mxu0 %v1337
  %2104 = vmatpush.bf16.msra.mxu0 %v1333
  %2105 = vmatmul.bf16.gmra.mxu0 %v453
  %v2106 = vpop.f32.mrf.mxu0
  %v2107 = vadd.f32 %v2094, %v2106
  %v2108 = vpop.f32.mrf.mxu0
  %2109 = vdwg.mxu0
  %2110 = vmatpush.bf16.msra.mxu0 %v1393
  %2111 = vmatpush.bf16.msra.mxu0 %v1389
  %2112 = vmatpush.bf16.msra.mxu0 %v1385
  %2113 = vmatpush.bf16.msra.mxu0 %v1381
  %2114 = vmatpush.bf16.msra.mxu0 %v1377
  %2115 = vmatpush.bf16.msra.mxu0 %v1373
  %2116 = vmatpush.bf16.msra.mxu0 %v1369
  %2117 = vmatpush.bf16.msra.mxu0 %v1365
  %2118 = vmatmul.bf16.gmra.mxu0 %v454
  %v2119 = vpop.f32.mrf.mxu0
  %v2120 = vadd.f32 %v2107, %v2119
  %v2121 = vpop.f32.mrf.mxu0
  %2122 = vdwg.mxu0
  %2123 = vmatpush.bf16.msra.mxu0 %v1425
  %2124 = vmatpush.bf16.msra.mxu0 %v1421
  %2125 = vmatpush.bf16.msra.mxu0 %v1417
  %2126 = vmatpush.bf16.msra.mxu0 %v1413
  %2127 = vmatpush.bf16.msra.mxu0 %v1409
  %2128 = vmatpush.bf16.msra.mxu0 %v1405
  %2129 = vmatpush.bf16.msra.mxu0 %v1401
  %2130 = vmatpush.bf16.msra.mxu0 %v1397
  %2131 = vmatmul.bf16.gmra.mxu0 %v455
  %v2132 = vpop.f32.mrf.mxu0
  %v2133 = vadd.f32 %v2120, %v2132
  %v2134 = vpop.f32.mrf.mxu0
  %2135 = vdwg.mxu0
  %2136 = vmatpush.bf16.msra.mxu0 %v1457
  %2137 = vmatpush.bf16.msra.mxu0 %v1453
  %2138 = vmatpush.bf16.msra.mxu0 %v1449
  %2139 = vmatpush.bf16.msra.mxu0 %v1445
  %2140 = vmatpush.bf16.msra.mxu0 %v1441
  %2141 = vmatpush.bf16.msra.mxu0 %v1437
  %2142 = vmatpush.bf16.msra.mxu0 %v1433
  %2143 = vmatpush.bf16.msra.mxu0 %v1429
  %2144 = vmatmul.bf16.gmra.mxu0 %v456
  %v2145 = vpop.f32.mrf.mxu0
  %v2146 = vadd.f32 %v2133, %v2145
  %v2147 = vpop.f32.mrf.mxu0
  %2148 = vdwg.mxu0
  %2149 = vmatpush.bf16.msra.mxu0 %v1489
  %2150 = vmatpush.bf16.msra.mxu0 %v1485
  %2151 = vmatpush.bf16.msra.mxu0 %v1481
  %2152 = vmatpush.bf16.msra.mxu0 %v1477
  %2153 = vmatpush.bf16.msra.mxu0 %v1473
  %2154 = vmatpush.bf16.msra.mxu0 %v1469
  %2155 = vmatpush.bf16.msra.mxu0 %v1465
  %2156 = vmatpush.bf16.msra.mxu0 %v1461
  %2157 = vmatmul.bf16.gmra.mxu0 %v457
  %v2158 = vpop.f32.mrf.mxu0
  %v2159 = vadd.f32 %v2146, %v2158
  %v2160 = vpop.f32.mrf.mxu0
  %2161 = vdwg.mxu0
  %v2162 = vmax.f32 %v1847, 0.0
  %v2163 = vmax.f32 %v1951, 0.0
  %v2164 = vmax.f32 %v2055, 0.0
  %v2165 = vmax.f32 %v2159, 0.0
  %v2166 = vpack.c.bf16 %v2162, %v2162
  %v2167 = vpack.c.bf16 %v2163, %v2163
  %v2168 = vpack.c.bf16 %v2164, %v2164
  %v2169 = vpack.c.bf16 %v2165, %v2165
  %v2170 = vld [vmem:[%s4] sm:$0xff]
  %v2171 = vld [vmem:[%s4 + $0x8] sm:$0xff]
  %v2172 = vld [vmem:[%s4 + $0x10] sm:$0xff]
  %v2173 = vld [vmem:[%s4 + $0x18] sm:$0xff]
  %v2174 = vld [vmem:[%s4 + $0x20] sm:$0xff]
  %v2175 = vld [vmem:[%s4 + $0x28] sm:$0xff]
  %v2176 = vld [vmem:[%s4 + $0x30] sm:$0xff]
  %v2177 = vld [vmem:[%s4 + $0x38] sm:$0xff]
  %v2178 = vld [vmem:[%s4 + $0x40] sm:$0xff]
  %v2179 = vld [vmem:[%s4 + $0x48] sm:$0xff]
  %v2180 = vld [vmem:[%s4 + $0x50] sm:$0xff]
  %v2181 = vld [vmem:[%s4 + $0x58] sm:$0xff]
  %v2182 = vld [vmem:[%s4 + $0x60] sm:$0xff]
  %v2183 = vld [vmem:[%s4 + $0x68] sm:$0xff]
  %v2184 = vld [vmem:[%s4 + $0x70] sm:$0xff]
  %v2185 = vld [vmem:[%s4 + $0x78] sm:$0xff]
  %v2186 = vld [vmem:[%s4 + $0x80] sm:$0xff]
  %v2187 = vld [vmem:[%s4 + $0x88] sm:$0xff]
  %v2188 = vld [vmem:[%s4 + $0x90] sm:$0xff]
  %v2189 = vld [vmem:[%s4 + $0x98] sm:$0xff]
  %v2190 = vld [vmem:[%s4 + $0xa0] sm:$0xff]
  %v2191 = vld [vmem:[%s4 + $0xa8] sm:$0xff]
  %v2192 = vld [vmem:[%s4 + $0xb0] sm:$0xff]
  %v2193 = vld [vmem:[%s4 + $0xb8] sm:$0xff]
  %v2194 = vld [vmem:[%s4 + $0xc0] sm:$0xff]
  %v2195 = vld [vmem:[%s4 + $0xc8] sm:$0xff]
  %v2196 = vld [vmem:[%s4 + $0xd0] sm:$0xff]
  %v2197 = vld [vmem:[%s4 + $0xd8] sm:$0xff]
  %v2198 = vld [vmem:[%s4 + $0xe0] sm:$0xff]
  %v2199 = vld [vmem:[%s4 + $0xe8] sm:$0xff]
  %v2200 = vld [vmem:[%s4 + $0xf0] sm:$0xff]
  %v2201 = vld [vmem:[%s4 + $0xf8] sm:$0xff]
  %v2202 = vld [vmem:[%s4 + $0x100] sm:$0xff]
  %v2203 = vld [vmem:[%s4 + $0x108] sm:$0xff]
  %v2204 = vld [vmem:[%s4 + $0x110] sm:$0xff]
  %v2205 = vld [vmem:[%s4 + $0x118] sm:$0xff]
  %v2206 = vld [vmem:[%s4 + $0x120] sm:$0xff]
  %v2207 = vld [vmem:[%s4 + $0x128] sm:$0xff]
  %v2208 = vld [vmem:[%s4 + $0x130] sm:$0xff]
  %v2209 = vld [vmem:[%s4 + $0x138] sm:$0xff]
  %v2210 = vld [vmem:[%s4 + $0x140] sm:$0xff]
  %v2211 = vld [vmem:[%s4 + $0x148] sm:$0xff]
  %v2212 = vld [vmem:[%s4 + $0x150] sm:$0xff]
  %v2213 = vld [vmem:[%s4 + $0x158] sm:$0xff]
  %v2214 = vld [vmem:[%s4 + $0x160] sm:$0xff]
  %v2215 = vld [vmem:[%s4 + $0x168] sm:$0xff]
  %v2216 = vld [vmem:[%s4 + $0x170] sm:$0xff]
  %v2217 = vld [vmem:[%s4 + $0x178] sm:$0xff]
  %v2218 = vld [vmem:[%s4 + $0x180] sm:$0xff]
  %v2219 = vld [vmem:[%s4 + $0x188] sm:$0xff]
  %v2220 = vld [vmem:[%s4 + $0x190] sm:$0xff]
  %v2221 = vld [vmem:[%s4 + $0x198] sm:$0xff]
  %v2222 = vld [vmem:[%s4 + $0x1a0] sm:$0xff]
  %v2223 = vld [vmem:[%s4 + $0x1a8] sm:$0xff]
  %v2224 = vld [vmem:[%s4 + $0x1b0] sm:$0xff]
  %v2225 = vld [vmem:[%s4 + $0x1b8] sm:$0xff]
  %v2226 = vld [vmem:[%s4 + $0x1c0] sm:$0xff]
  %v2227 = vld [vmem:[%s4 + $0x1c8] sm:$0xff]
  %v2228 = vld [vmem:[%s4 + $0x1d0] sm:$0xff]
  %v2229 = vld [vmem:[%s4 + $0x1d8] sm:$0xff]
  %v2230 = vld [vmem:[%s4 + $0x1e0] sm:$0xff]
  %v2231 = vld [vmem:[%s4 + $0x1e8] sm:$0xff]
  %v2232 = vld [vmem:[%s4 + $0x1f0] sm:$0xff]
  %v2233 = vld [vmem:[%s4 + $0x1f8] sm:$0xff]
  %v2234 = vld [vmem:[%s5] sm:$0x3]
  %v2236 = vperm.slane %v2234, 0
  %v2237 = vperm.slane %v2234, 1
  %v2304 = vunpack.c.l.b16 %v2170
  %v2305 = vunpack.c.h.b16 %v2170
  %v2306 = vunpack.c.l.b16 %v2171
  %v2307 = vunpack.c.h.b16 %v2171
  %v2308 = vunpack.c.l.b16 %v2172
  %v2309 = vunpack.c.h.b16 %v2172
  %v2310 = vunpack.c.l.b16 %v2173
  %v2311 = vunpack.c.h.b16 %v2173
  %v2312 = vunpack.c.l.b16 %v2174
  %v2313 = vunpack.c.h.b16 %v2174
  %v2314 = vunpack.c.l.b16 %v2175
  %v2315 = vunpack.c.h.b16 %v2175
  %v2316 = vunpack.c.l.b16 %v2176
  %v2317 = vunpack.c.h.b16 %v2176
  %v2318 = vunpack.c.l.b16 %v2177
  %v2319 = vunpack.c.h.b16 %v2177
  %v2320 = vunpack.c.l.b16 %v2178
  %v2321 = vunpack.c.h.b16 %v2178
  %v2322 = vunpack.c.l.b16 %v2179
  %v2323 = vunpack.c.h.b16 %v2179
  %v2324 = vunpack.c.l.b16 %v2180
  %v2325 = vunpack.c.h.b16 %v2180
  %v2326 = vunpack.c.l.b16 %v2181
  %v2327 = vunpack.c.h.b16 %v2181
  %v2328 = vunpack.c.l.b16 %v2182
  %v2329 = vunpack.c.h.b16 %v2182
  %v2330 = vunpack.c.l.b16 %v2183
  %v2331 = vunpack.c.h.b16 %v2183
  %v2332 = vunpack.c.l.b16 %v2184
  %v2333 = vunpack.c.h.b16 %v2184
  %v2334 = vunpack.c.l.b16 %v2185
  %v2335 = vunpack.c.h.b16 %v2185
  %v2336 = vunpack.c.l.b16 %v2186
  %v2337 = vunpack.c.h.b16 %v2186
  %v2338 = vunpack.c.l.b16 %v2187
  %v2339 = vunpack.c.h.b16 %v2187
  %v2340 = vunpack.c.l.b16 %v2188
  %v2341 = vunpack.c.h.b16 %v2188
  %v2342 = vunpack.c.l.b16 %v2189
  %v2343 = vunpack.c.h.b16 %v2189
  %v2344 = vunpack.c.l.b16 %v2190
  %v2345 = vunpack.c.h.b16 %v2190
  %v2346 = vunpack.c.l.b16 %v2191
  %v2347 = vunpack.c.h.b16 %v2191
  %v2348 = vunpack.c.l.b16 %v2192
  %v2349 = vunpack.c.h.b16 %v2192
  %v2350 = vunpack.c.l.b16 %v2193
  %v2351 = vunpack.c.h.b16 %v2193
  %v2352 = vunpack.c.l.b16 %v2194
  %v2353 = vunpack.c.h.b16 %v2194
  %v2354 = vunpack.c.l.b16 %v2195
  %v2355 = vunpack.c.h.b16 %v2195
  %v2356 = vunpack.c.l.b16 %v2196
  %v2357 = vunpack.c.h.b16 %v2196
  %v2358 = vunpack.c.l.b16 %v2197
  %v2359 = vunpack.c.h.b16 %v2197
  %v2360 = vunpack.c.l.b16 %v2198
  %v2361 = vunpack.c.h.b16 %v2198
  %v2362 = vunpack.c.l.b16 %v2199
  %v2363 = vunpack.c.h.b16 %v2199
  %v2364 = vunpack.c.l.b16 %v2200
  %v2365 = vunpack.c.h.b16 %v2200
  %v2366 = vunpack.c.l.b16 %v2201
  %v2367 = vunpack.c.h.b16 %v2201
  %v2368 = vunpack.c.l.b16 %v2202
  %v2369 = vunpack.c.h.b16 %v2202
  %v2370 = vunpack.c.l.b16 %v2203
  %v2371 = vunpack.c.h.b16 %v2203
  %v2372 = vunpack.c.l.b16 %v2204
  %v2373 = vunpack.c.h.b16 %v2204
  %v2374 = vunpack.c.l.b16 %v2205
  %v2375 = vunpack.c.h.b16 %v2205
  %v2376 = vunpack.c.l.b16 %v2206
  %v2377 = vunpack.c.h.b16 %v2206
  %v2378 = vunpack.c.l.b16 %v2207
  %v2379 = vunpack.c.h.b16 %v2207
  %v2380 = vunpack.c.l.b16 %v2208
  %v2381 = vunpack.c.h.b16 %v2208
  %v2382 = vunpack.c.l.b16 %v2209
  %v2383 = vunpack.c.h.b16 %v2209
  %v2384 = vunpack.c.l.b16 %v2210
  %v2385 = vunpack.c.h.b16 %v2210
  %v2386 = vunpack.c.l.b16 %v2211
  %v2387 = vunpack.c.h.b16 %v2211
  %v2388 = vunpack.c.l.b16 %v2212
  %v2389 = vunpack.c.h.b16 %v2212
  %v2390 = vunpack.c.l.b16 %v2213
  %v2391 = vunpack.c.h.b16 %v2213
  %v2392 = vunpack.c.l.b16 %v2214
  %v2393 = vunpack.c.h.b16 %v2214
  %v2394 = vunpack.c.l.b16 %v2215
  %v2395 = vunpack.c.h.b16 %v2215
  %v2396 = vunpack.c.l.b16 %v2216
  %v2397 = vunpack.c.h.b16 %v2216
  %v2398 = vunpack.c.l.b16 %v2217
  %v2399 = vunpack.c.h.b16 %v2217
  %v2400 = vunpack.c.l.b16 %v2218
  %v2401 = vunpack.c.h.b16 %v2218
  %v2402 = vunpack.c.l.b16 %v2219
  %v2403 = vunpack.c.h.b16 %v2219
  %v2404 = vunpack.c.l.b16 %v2220
  %v2405 = vunpack.c.h.b16 %v2220
  %v2406 = vunpack.c.l.b16 %v2221
  %v2407 = vunpack.c.h.b16 %v2221
  %v2408 = vunpack.c.l.b16 %v2222
  %v2409 = vunpack.c.h.b16 %v2222
  %v2410 = vunpack.c.l.b16 %v2223
  %v2411 = vunpack.c.h.b16 %v2223
  %v2412 = vunpack.c.l.b16 %v2224
  %v2413 = vunpack.c.h.b16 %v2224
  %v2414 = vunpack.c.l.b16 %v2225
  %v2415 = vunpack.c.h.b16 %v2225
  %v2416 = vunpack.c.l.b16 %v2226
  %v2417 = vunpack.c.h.b16 %v2226
  %v2418 = vunpack.c.l.b16 %v2227
  %v2419 = vunpack.c.h.b16 %v2227
  %v2420 = vunpack.c.l.b16 %v2228
  %v2421 = vunpack.c.h.b16 %v2228
  %v2422 = vunpack.c.l.b16 %v2229
  %v2423 = vunpack.c.h.b16 %v2229
  %v2424 = vunpack.c.l.b16 %v2230
  %v2425 = vunpack.c.h.b16 %v2230
  %v2426 = vunpack.c.l.b16 %v2231
  %v2427 = vunpack.c.h.b16 %v2231
  %v2428 = vunpack.c.l.b16 %v2232
  %v2429 = vunpack.c.h.b16 %v2232
  %v2430 = vunpack.c.l.b16 %v2233
  %v2431 = vunpack.c.h.b16 %v2233
  %v2432 = vpack.c.b16 %v2306, %v2304
  %v2433 = vpack.c.b16 %v2307, %v2305
  %v2434 = vpack.c.b16 %v2310, %v2308
  %v2435 = vpack.c.b16 %v2311, %v2309
  %v2436 = vpack.c.b16 %v2314, %v2312
  %v2437 = vpack.c.b16 %v2315, %v2313
  %v2438 = vpack.c.b16 %v2318, %v2316
  %v2439 = vpack.c.b16 %v2319, %v2317
  %v2440 = vpack.c.b16 %v2322, %v2320
  %v2441 = vpack.c.b16 %v2323, %v2321
  %v2442 = vpack.c.b16 %v2326, %v2324
  %v2443 = vpack.c.b16 %v2327, %v2325
  %v2444 = vpack.c.b16 %v2330, %v2328
  %v2445 = vpack.c.b16 %v2331, %v2329
  %v2446 = vpack.c.b16 %v2334, %v2332
  %v2447 = vpack.c.b16 %v2335, %v2333
  %v2448 = vpack.c.b16 %v2338, %v2336
  %v2449 = vpack.c.b16 %v2339, %v2337
  %v2450 = vpack.c.b16 %v2342, %v2340
  %v2451 = vpack.c.b16 %v2343, %v2341
  %v2452 = vpack.c.b16 %v2346, %v2344
  %v2453 = vpack.c.b16 %v2347, %v2345
  %v2454 = vpack.c.b16 %v2350, %v2348
  %v2455 = vpack.c.b16 %v2351, %v2349
  %v2456 = vpack.c.b16 %v2354, %v2352
  %v2457 = vpack.c.b16 %v2355, %v2353
  %v2458 = vpack.c.b16 %v2358, %v2356
  %v2459 = vpack.c.b16 %v2359, %v2357
  %v2460 = vpack.c.b16 %v2362, %v2360
  %v2461 = vpack.c.b16 %v2363, %v2361
  %v2462 = vpack.c.b16 %v2366, %v2364
  %v2463 = vpack.c.b16 %v2367, %v2365
  %v2464 = vpack.c.b16 %v2370, %v2368
  %v2465 = vpack.c.b16 %v2371, %v2369
  %v2466 = vpack.c.b16 %v2374, %v2372
  %v2467 = vpack.c.b16 %v2375, %v2373
  %v2468 = vpack.c.b16 %v2378, %v2376
  %v2469 = vpack.c.b16 %v2379, %v2377
  %v2470 = vpack.c.b16 %v2382, %v2380
  %v2471 = vpack.c.b16 %v2383, %v2381
  %v2472 = vpack.c.b16 %v2386, %v2384
  %v2473 = vpack.c.b16 %v2387, %v2385
  %v2474 = vpack.c.b16 %v2390, %v2388
  %v2475 = vpack.c.b16 %v2391, %v2389
  %v2476 = vpack.c.b16 %v2394, %v2392
  %v2477 = vpack.c.b16 %v2395, %v2393
  %v2478 = vpack.c.b16 %v2398, %v2396
  %v2479 = vpack.c.b16 %v2399, %v2397
  %v2480 = vpack.c.b16 %v2402, %v2400
  %v2481 = vpack.c.b16 %v2403, %v2401
  %v2482 = vpack.c.b16 %v2406, %v2404
  %v2483 = vpack.c.b16 %v2407, %v2405
  %v2484 = vpack.c.b16 %v2410, %v2408
  %v2485 = vpack.c.b16 %v2411, %v2409
  %v2486 = vpack.c.b16 %v2414, %v2412
  %v2487 = vpack.c.b16 %v2415, %v2413
  %v2488 = vpack.c.b16 %v2418, %v2416
  %v2489 = vpack.c.b16 %v2419, %v2417
  %v2490 = vpack.c.b16 %v2422, %v2420
  %v2491 = vpack.c.b16 %v2423, %v2421
  %v2492 = vpack.c.b16 %v2426, %v2424
  %v2493 = vpack.c.b16 %v2427, %v2425
  %v2494 = vpack.c.b16 %v2430, %v2428
  %v2495 = vpack.c.b16 %v2431, %v2429
  %2560 = vmatpush.bf16.msra.mxu0 %v2446
  %2561 = vmatpush.bf16.msra.mxu0 %v2444
  %2562 = vmatpush.bf16.msra.mxu0 %v2442
  %2563 = vmatpush.bf16.msra.mxu0 %v2440
  %2564 = vmatpush.bf16.msra.mxu0 %v2438
  %2565 = vmatpush.bf16.msra.mxu0 %v2436
  %2566 = vmatpush.bf16.msra.mxu0 %v2434
  %2567 = vmatpush.bf16.msra.mxu0 %v2432
  %2568 = vmatmul.bf16.gmra.mxu0 %v2166
  %v2569 = vpop.f32.mrf.mxu0
  %v2570 = vadd.f32 %v2236, %v2569
  %v2571 = vpop.f32.mrf.mxu0
  %2572 = vdwg.mxu0
  %2573 = vmatpush.bf16.msra.mxu0 %v2462
  %2574 = vmatpush.bf16.msra.mxu0 %v2460
  %2575 = vmatpush.bf16.msra.mxu0 %v2458
  %2576 = vmatpush.bf16.msra.mxu0 %v2456
  %2577 = vmatpush.bf16.msra.mxu0 %v2454
  %2578 = vmatpush.bf16.msra.mxu0 %v2452
  %2579 = vmatpush.bf16.msra.mxu0 %v2450
  %2580 = vmatpush.bf16.msra.mxu0 %v2448
  %2581 = vmatmul.bf16.gmra.mxu0 %v2167
  %v2582 = vpop.f32.mrf.mxu0
  %v2583 = vadd.f32 %v2570, %v2582
  %v2584 = vpop.f32.mrf.mxu0
  %2585 = vdwg.mxu0
  %2586 = vmatpush.bf16.msra.mxu0 %v2478
  %2587 = vmatpush.bf16.msra.mxu0 %v2476
  %2588 = vmatpush.bf16.msra.mxu0 %v2474
  %2589 = vmatpush.bf16.msra.mxu0 %v2472
  %2590 = vmatpush.bf16.msra.mxu0 %v2470
  %2591 = vmatpush.bf16.msra.mxu0 %v2468
  %2592 = vmatpush.bf16.msra.mxu0 %v2466
  %2593 = vmatpush.bf16.msra.mxu0 %v2464
  %2594 = vmatmul.bf16.gmra.mxu0 %v2168
  %v2595 = vpop.f32.mrf.mxu0
  %v2596 = vadd.f32 %v2583, %v2595
  %v2597 = vpop.f32.mrf.mxu0
  %2598 = vdwg.mxu0
  %2599 = vmatpush.bf16.msra.mxu0 %v2494
  %2600 = vmatpush.bf16.msra.mxu0 %v2492
  %2601 = vmatpush.bf16.msra.mxu0 %v2490
  %2602 = vmatpush.bf16.msra.mxu0 %v2488
  %2603 = vmatpush.bf16.msra.mxu0 %v2486
  %2604 = vmatpush.bf16.msra.mxu0 %v2484
  %2605 = vmatpush.bf16.msra.mxu0 %v2482
  %2606 = vmatpush.bf16.msra.mxu0 %v2480
  %2607 = vmatmul.bf16.gmra.mxu0 %v2169
  %v2608 = vpop.f32.mrf.mxu0
  %v2609 = vadd.f32 %v2596, %v2608
  %v2610 = vpop.f32.mrf.mxu0
  %2611 = vdwg.mxu0
  %2612 = vmatpush.bf16.msra.mxu0 %v2447
  %2613 = vmatpush.bf16.msra.mxu0 %v2445
  %2614 = vmatpush.bf16.msra.mxu0 %v2443
  %2615 = vmatpush.bf16.msra.mxu0 %v2441
  %2616 = vmatpush.bf16.msra.mxu0 %v2439
  %2617 = vmatpush.bf16.msra.mxu0 %v2437
  %2618 = vmatpush.bf16.msra.mxu0 %v2435
  %2619 = vmatpush.bf16.msra.mxu0 %v2433
  %2620 = vmatmul.bf16.gmra.mxu0 %v2166
  %v2621 = vpop.f32.mrf.mxu0
  %v2622 = vadd.f32 %v2237, %v2621
  %v2623 = vpop.f32.mrf.mxu0
  %2624 = vdwg.mxu0
  %2625 = vmatpush.bf16.msra.mxu0 %v2463
  %2626 = vmatpush.bf16.msra.mxu0 %v2461
  %2627 = vmatpush.bf16.msra.mxu0 %v2459
  %2628 = vmatpush.bf16.msra.mxu0 %v2457
  %2629 = vmatpush.bf16.msra.mxu0 %v2455
  %2630 = vmatpush.bf16.msra.mxu0 %v2453
  %2631 = vmatpush.bf16.msra.mxu0 %v2451
  %2632 = vmatpush.bf16.msra.mxu0 %v2449
  %2633 = vmatmul.bf16.gmra.mxu0 %v2167
  %v2634 = vpop.f32.mrf.mxu0
  %v2635 = vadd.f32 %v2622, %v2634
  %v2636 = vpop.f32.mrf.mxu0
  %2637 = vdwg.mxu0
  %2638 = vmatpush.bf16.msra.mxu0 %v2479
  %2639 = vmatpush.bf16.msra.mxu0 %v2477
  %2640 = vmatpush.bf16.msra.mxu0 %v2475
  %2641 = vmatpush.bf16.msra.mxu0 %v2473
  %2642 = vmatpush.bf16.msra.mxu0 %v2471
  %2643 = vmatpush.bf16.msra.mxu0 %v2469
  %2644 = vmatpush.bf16.msra.mxu0 %v2467
  %2645 = vmatpush.bf16.msra.mxu0 %v2465
  %2646 = vmatmul.bf16.gmra.mxu0 %v2168
  %v2647 = vpop.f32.mrf.mxu0
  %v2648 = vadd.f32 %v2635, %v2647
  %v2649 = vpop.f32.mrf.mxu0
  %2650 = vdwg.mxu0
  %2651 = vmatpush.bf16.msra.mxu0 %v2495
  %2652 = vmatpush.bf16.msra.mxu0 %v2493
  %2653 = vmatpush.bf16.msra.mxu0 %v2491
  %2654 = vmatpush.bf16.msra.mxu0 %v2489
  %2655 = vmatpush.bf16.msra.mxu0 %v2487
  %2656 = vmatpush.bf16.msra.mxu0 %v2485
  %2657 = vmatpush.bf16.msra.mxu0 %v2483
  %2658 = vmatpush.bf16.msra.mxu0 %v2481
  %2659 = vmatmul.bf16.gmra.mxu0 %v2169
  %v2660 = vpop.f32.mrf.mxu0
  %v2661 = vadd.f32 %v2648, %v2660
  %v2662 = vpop.f32.mrf.mxu0
  %2663 = vdwg.mxu0
  %v2664 = vmax.f32 %v2609, 0.0
  %v2665 = vmax.f32 %v2661, 0.0
  %v2666 = vpack.c.bf16 %v2664, %v2664
  %v2667 = vpack.c.bf16 %v2665, %v2665
  %v2668 = vld [vmem:[%s6] sm:$0xf]
  %v2669 = vld [vmem:[%s6 + $0x4] sm:$0xf]
  %v2670 = vld [vmem:[%s6 + $0x8] sm:$0xf]
  %v2671 = vld [vmem:[%s6 + $0xc] sm:$0xf]
  %v2672 = vld [vmem:[%s6 + $0x10] sm:$0xf]
  %v2673 = vld [vmem:[%s6 + $0x14] sm:$0xf]
  %v2674 = vld [vmem:[%s6 + $0x18] sm:$0xf]
  %v2675 = vld [vmem:[%s6 + $0x1c] sm:$0xf]
  %v2676 = vld [vmem:[%s6 + $0x20] sm:$0xf]
  %v2677 = vld [vmem:[%s6 + $0x24] sm:$0xf]
  %v2678 = vld [vmem:[%s6 + $0x28] sm:$0xf]
  %v2679 = vld [vmem:[%s6 + $0x2c] sm:$0xf]
  %v2680 = vld [vmem:[%s6 + $0x30] sm:$0xf]
  %v2681 = vld [vmem:[%s6 + $0x34] sm:$0xf]
  %v2682 = vld [vmem:[%s6 + $0x38] sm:$0xf]
  %v2683 = vld [vmem:[%s6 + $0x3c] sm:$0xf]
  %v2684 = vld [vmem:[%s6 + $0x40] sm:$0xf]
  %v2685 = vld [vmem:[%s6 + $0x44] sm:$0xf]
  %v2686 = vld [vmem:[%s6 + $0x48] sm:$0xf]
  %v2687 = vld [vmem:[%s6 + $0x4c] sm:$0xf]
  %v2688 = vld [vmem:[%s6 + $0x50] sm:$0xf]
  %v2689 = vld [vmem:[%s6 + $0x54] sm:$0xf]
  %v2690 = vld [vmem:[%s6 + $0x58] sm:$0xf]
  %v2691 = vld [vmem:[%s6 + $0x5c] sm:$0xf]
  %v2692 = vld [vmem:[%s6 + $0x60] sm:$0xf]
  %v2693 = vld [vmem:[%s6 + $0x64] sm:$0xf]
  %v2694 = vld [vmem:[%s6 + $0x68] sm:$0xf]
  %v2695 = vld [vmem:[%s6 + $0x6c] sm:$0xf]
  %v2696 = vld [vmem:[%s6 + $0x70] sm:$0xf]
  %v2697 = vld [vmem:[%s6 + $0x74] sm:$0xf]
  %v2698 = vld [vmem:[%s6 + $0x78] sm:$0xf]
  %v2699 = vld [vmem:[%s6 + $0x7c] sm:$0xf]
  %v2700 = vld [vmem:[%s7] sm:$0x1]
  %v2702 = vperm.slane %v2700, 0
  %v2736 = vunpack.c.l.b16 %v2668
  %v2737 = vunpack.c.l.b16 %v2669
  %v2738 = vunpack.c.l.b16 %v2670
  %v2739 = vunpack.c.l.b16 %v2671
  %v2740 = vunpack.c.l.b16 %v2672
  %v2741 = vunpack.c.l.b16 %v2673
  %v2742 = vunpack.c.l.b16 %v2674
  %v2743 = vunpack.c.l.b16 %v2675
  %v2744 = vunpack.c.l.b16 %v2676
  %v2745 = vunpack.c.l.b16 %v2677
  %v2746 = vunpack.c.l.b16 %v2678
  %v2747 = vunpack.c.l.b16 %v2679
  %v2748 = vunpack.c.l.b16 %v2680
  %v2749 = vunpack.c.l.b16 %v2681
  %v2750 = vunpack.c.l.b16 %v2682
  %v2751 = vunpack.c.l.b16 %v2683
  %v2752 = vunpack.c.l.b16 %v2684
  %v2753 = vunpack.c.l.b16 %v2685
  %v2754 = vunpack.c.l.b16 %v2686
  %v2755 = vunpack.c.l.b16 %v2687
  %v2756 = vunpack.c.l.b16 %v2688
  %v2757 = vunpack.c.l.b16 %v2689
  %v2758 = vunpack.c.l.b16 %v2690
  %v2759 = vunpack.c.l.b16 %v2691
  %v2760 = vunpack.c.l.b16 %v2692
  %v2761 = vunpack.c.l.b16 %v2693
  %v2762 = vunpack.c.l.b16 %v2694
  %v2763 = vunpack.c.l.b16 %v2695
  %v2764 = vunpack.c.l.b16 %v2696
  %v2765 = vunpack.c.l.b16 %v2697
  %v2766 = vunpack.c.l.b16 %v2698
  %v2767 = vunpack.c.l.b16 %v2699
  %v2768 = vpack.c.b16 %v2737, %v2736
  %v2769 = vpack.c.b16 %v2739, %v2738
  %v2770 = vpack.c.b16 %v2741, %v2740
  %v2771 = vpack.c.b16 %v2743, %v2742
  %v2772 = vpack.c.b16 %v2745, %v2744
  %v2773 = vpack.c.b16 %v2747, %v2746
  %v2774 = vpack.c.b16 %v2749, %v2748
  %v2775 = vpack.c.b16 %v2751, %v2750
  %v2776 = vpack.c.b16 %v2753, %v2752
  %v2777 = vpack.c.b16 %v2755, %v2754
  %v2778 = vpack.c.b16 %v2757, %v2756
  %v2779 = vpack.c.b16 %v2759, %v2758
  %v2780 = vpack.c.b16 %v2761, %v2760
  %v2781 = vpack.c.b16 %v2763, %v2762
  %v2782 = vpack.c.b16 %v2765, %v2764
  %v2783 = vpack.c.b16 %v2767, %v2766
  %2800 = vmatpush.bf16.msra.mxu0 %v2775
  %2801 = vmatpush.bf16.msra.mxu0 %v2774
  %2802 = vmatpush.bf16.msra.mxu0 %v2773
  %2803 = vmatpush.bf16.msra.mxu0 %v2772
  %2804 = vmatpush.bf16.msra.mxu0 %v2771
  %2805 = vmatpush.bf16.msra.mxu0 %v2770
  %2806 = vmatpush.bf16.msra.mxu0 %v2769
  %2807 = vmatpush.bf16.msra.mxu0 %v2768
  %2808 = vmatmul.bf16.gmra.mxu0 %v2666
  %v2809 = vpop.f32.mrf.mxu0
  %v2810 = vadd.f32 %v2702, %v2809
  %v2811 = vpop.f32.mrf.mxu0
  %2812 = vdwg.mxu0
  %2813 = vmatpush.bf16.msra.mxu0 %v2783
  %2814 = vmatpush.bf16.msra.mxu0 %v2782
  %2815 = vmatpush.bf16.msra.mxu0 %v2781
  %2816 = vmatpush.bf16.msra.mxu0 %v2780
  %2817 = vmatpush.bf16.msra.mxu0 %v2779
  %2818 = vmatpush.bf16.msra.mxu0 %v2778
  %2819 = vmatpush.bf16.msra.mxu0 %v2777
  %2820 = vmatpush.bf16.msra.mxu0 %v2776
  %2821 = vmatmul.bf16.gmra.mxu0 %v2667
  %v2822 = vpop.f32.mrf.mxu0
  %v2823 = vadd.f32 %v2810, %v2822
  %v2824 = vpop.f32.mrf.mxu0
  %2825 = vdwg.mxu0
  %v2826 = vld [vmem:[%s8] sm:$0x1]
  %v2828 = vperm.slane %v2826, 0
  %v2830 = vadd.f32 %v2823, %v2828
  %vm2831 = vcmask 66560
  %2832 = vst.msk [vmem:[%s9] sm:$0x3] %vm2831, %v2830
  // Predicated region
  $region38: #{stn3d_forward.3} parent=0 // pred_check
    _
  $region39: #{stn3d_forward.3} parent=0 // pred_check_branch
    %2834 = sbr.rel (0) target = $region41
  $region40: #{stn3d_forward.3} parent=0 // pred_region
    _
  $region41: #{stn3d_forward.3} parent=0 // pred_fallthru
    _
  // Predicated region
  $region42: #{stn3d_forward.3} parent=0 // pred_check
    _
  $region43: #{stn3d_forward.3} parent=0 // pred_check_branch
    %2836 = sbr.rel (0) target = $region45
  $region44: #{stn3d_forward.3} parent=0 // pred_region
    _
  $region45: #{stn3d_forward.3} parent=0 // pred_fallthru
    _

</llo_original>
